<compile_context>
chip_gen: v7x
topology: tpu7x:2x2x1
jax: 0.10.0
libtpu: 0.0.40
codegen_flags: <defaults>
</compile_context>

<pallas_src>
import functools

import numpy as np
import jax
import jax.numpy as jnp
from jax.experimental import pallas as pl
from jax.experimental.pallas import tpu as pltpu


# ---------------------------------------------------------------------------
# Fused DoubleConv kernel:  [Conv3d(3x3x3, pad=1) -> GroupNorm -> ReLU] x 2
# ---------------------------------------------------------------------------
def _double_conv_kernel(x_ref, band1_ref, band2_ref, gn1_ref, gn2_ref,
                        gsum_ref, gbc_ref, o_ref, xpad_ref, hpad_ref,
                        *, D, H, HP, W, Cin, Cout, eps):
    lin1 = W * Cin
    wco = W * Cout
    rows = D * HP                       # matmul M dim (includes HP row pad)

    def zero_halo(pad_ref, lanes):
        # D halo slabs + the H padding rows; interior [1:D+1, 0:H, :] is fully
        # overwritten below.  Cheap: border only, bf16.
        pad_ref[pl.ds(0, 1), :, :] = jnp.zeros((1, HP, lanes), jnp.bfloat16)
        pad_ref[pl.ds(D + 1, 1), :, :] = jnp.zeros((1, HP, lanes), jnp.bfloat16)
        pad_ref[pl.ds(1, D), pl.ds(H, HP - H), :] = jnp.zeros(
            (D, HP - H, lanes), jnp.bfloat16)

    def conv_gn_relu(pad_ref, band_ref, gn_ref, lin):
        # 3x3x3 conv as 9 banded matmuls: kw folded into the band, kd a
        # leading-dim slab view (no relayout), kh an XLU roll of the partial.
        acc = jnp.zeros((rows, wco), jnp.float32)
        for kh in range(3):
            part = jnp.zeros((rows, wco), jnp.float32)
            for kd in range(3):
                slab = pad_ref[pl.ds(kd, D), :, :].reshape(rows, lin)
                part = part + jnp.dot(slab, band_ref[kd, kh],
                                      preferred_element_type=jnp.float32)
            shift = (1 - kh) % rows     # +1 / 0 / -1 row shift (zero rows wrap)
            if shift:
                part = pltpu.roll(part, shift, axis=0)
            acc = acc + part
        # valid output rows (hp < H); aligned vreg slice when H % 8 == 0
        y = acc.reshape(D, HP, wco)[:, :H, :].reshape(D * H, wco)
        gn = gn_ref[...]                                   # (3, wco)
        y = y + gn[0:1, :]                                 # conv bias (per lane)
        # GroupNorm: single-pass stats + factored group reduce/broadcast.
        # (uncentered variance; fine in f32 for post-conv activations)
        s = jnp.concatenate([jnp.sum(y, axis=0, keepdims=True),
                             jnp.sum(y * y, axis=0, keepdims=True)], axis=0)
        g = jnp.dot(jnp.dot(s, gsum_ref[...],
                            preferred_element_type=jnp.float32),
                    gbc_ref[...], preferred_element_type=jnp.float32)
        mean = g[0:1, :]
        var = g[1:2, :] - mean * mean
        scale = jax.lax.rsqrt(var + eps) * gn[1:2, :]
        return jnp.maximum(y * scale + (gn[2:3, :] - mean * scale), 0.0)

    zero_halo(xpad_ref, lin1)
    zero_halo(hpad_ref, wco)

    # ---- conv1: input block -> padded bf16 scratch (interior only) ----
    xpad_ref[pl.ds(1, D), pl.ds(0, H), :] = x_ref[0]
    h1 = conv_gn_relu(xpad_ref, band1_ref, gn1_ref, lin1)

    # ---- conv2 consumes the conv1 activation straight from VMEM ----
    hpad_ref[pl.ds(1, D), pl.ds(0, H), :] = (
        h1.reshape(D, H, wco).astype(jnp.bfloat16))
    h2 = conv_gn_relu(hpad_ref, band2_ref, gn2_ref, wco)

    o_ref[0] = h2.reshape(D, H, wco)          # minor dim = W*Cout (lane-dense)


# ---------------------------------------------------------------------------
# Wrapper-side precomputation (weights / GroupNorm constants)
# ---------------------------------------------------------------------------
def _band_weights(w, W):
    """(3,3,3,Ci,Co) conv weights -> (3,3,W*Ci,W*Co) banded matrices.

    B[kd,kh][w_in*Ci + ci, w_out*Co + co] = w[kd, kh, w_in-w_out+1, ci, co]
    (zero outside the 3-tap band), so one matmul per (kd,kh) performs the kw
    convolution including the W zero-padding boundary."""
    KD, KH, KW, Ci, Co = w.shape
    t = np.zeros((KW, W, W), np.float32)
    for kw in range(KW):
        for wo in range(W):
            wi = wo + kw - KW // 2
            if 0 <= wi < W:
                t[kw, wo, wi] = 1.0
    band = jnp.einsum('kwv,abkcd->abvcwd', jnp.asarray(t), w)
    return band.reshape(KD, KH, W * Ci, W * Co)


def _gn_lane_vectors(bias, gamma, beta, W):
    """Per-lane (W*Cout) conv-bias / gamma / beta vectors stacked to (3, W*Cout)."""
    tile = lambda v: jnp.tile(v.astype(jnp.float32), W)
    return jnp.stack([tile(bias), tile(gamma), tile(beta)], axis=0)


def _group_matrices(Cout, G, W, D, H):
    """Factored GroupNorm reduction: (wco, G) averaging + (G, wco) broadcast."""
    cs = Cout // G
    grp = (np.arange(W * Cout) % Cout) // cs
    onehot = (grp[:, None] == np.arange(G)[None, :]).astype(np.float32)
    gsum = onehot / float(D * H * W * cs)          # (wco, G) with 1/count
    gbc = onehot.T                                 # (G, wco) 0/1
    return jnp.asarray(gsum), jnp.asarray(gbc)


def double_conv(x_ndhwc, params, *, num_groups, eps=1e-5):
    """Fused DoubleConv.  x_ndhwc: (N, D, H, W, Cin) f32 -> (N, D, H, W, Cout) f32."""
    N, D, H, W, Cin = x_ndhwc.shape
    Cout = params['w1'].shape[-1]
    assert params['w1'].shape[3] == Cin
    assert Cout % num_groups == 0, "num_channels must be divisible by num_groups"

    # HP: padded H rows, rounded to the bf16 sublane packing so slab views /
    # flattens are layout-free.  Needs HP >= H+1 (one zero row per slab).
    HP = ((H + 1 + 15) // 16) * 16

    band1 = _band_weights(params['w1'], W).astype(jnp.bfloat16)   # (3,3,W*Cin,W*Cout)
    band2 = _band_weights(params['w2'], W).astype(jnp.bfloat16)   # (3,3,W*Cout,W*Cout)
    gn1 = _gn_lane_vectors(params['b1'], params['g1'], params['be1'], W)
    gn2 = _gn_lane_vectors(params['b2'], params['g2'], params['be2'], W)
    gsum, gbc = _group_matrices(Cout, num_groups, W, D, H)

    wco = W * Cout
    G = num_groups
    # lane-dense bf16 input (halves input DMA; matmul operands are bf16 anyway)
    x_merged = x_ndhwc.reshape(N, D, H, W * Cin).astype(jnp.bfloat16)

    kern = functools.partial(_double_conv_kernel, D=D, H=H, HP=HP, W=W,
                             Cin=Cin, Cout=Cout, eps=eps)
    out = pl.pallas_call(
        kern,
        out_shape=jax.ShapeDtypeStruct((N, D, H, wco), jnp.float32),
        grid_spec=pltpu.PrefetchScalarGridSpec(
            num_scalar_prefetch=0,
            grid=(N,),
            in_specs=[
                pl.BlockSpec((1, D, H, W * Cin), lambda n: (n, 0, 0, 0)),
                pl.BlockSpec((3, 3, W * Cin, wco), lambda n: (0, 0, 0, 0)),
                pl.BlockSpec((3, 3, wco, wco), lambda n: (0, 0, 0, 0)),
                pl.BlockSpec((3, wco), lambda n: (0, 0)),
                pl.BlockSpec((3, wco), lambda n: (0, 0)),
                pl.BlockSpec((wco, G), lambda n: (0, 0)),
                pl.BlockSpec((G, wco), lambda n: (0, 0)),
            ],
            out_specs=pl.BlockSpec((1, D, H, wco), lambda n: (n, 0, 0, 0)),
            scratch_shapes=[
                pltpu.VMEM((D + 2, HP, W * Cin), jnp.bfloat16),
                pltpu.VMEM((D + 2, HP, wco), jnp.bfloat16),
            ],
        ),
        compiler_params=pltpu.CompilerParams(
            dimension_semantics=("parallel",),
            vmem_limit_bytes=48 * 1024 * 1024,   # sized against v7x's 64 MiB/TC
        ),
    )(x_merged, band1, band2, gn1, gn2, gsum, gbc)

    return out.reshape(N, D, H, W, Cout)


# ---------------------------------------------------------------------------
# Trilinear upsample (scale=2, align_corners=True) + pad + concat (NDHWC glue)
# ---------------------------------------------------------------------------
def _lerp_matrix(n_in, n_out):
    if n_in == 1:
        return jnp.ones((n_out, 1), jnp.float32)
    i = np.arange(n_out)
    src = i * (n_in - 1) / (n_out - 1)              # align_corners=True mapping
    lo = np.floor(src).astype(np.int64)
    hi = np.minimum(lo + 1, n_in - 1)
    frac = (src - lo).astype(np.float32)
    A = np.zeros((n_out, n_in), np.float32)
    np.add.at(A, (i, lo), 1.0 - frac)
    np.add.at(A, (i, hi), frac)
    return jnp.asarray(A)


def _trilinear_up2x_ndhwc(x):
    N, D, H, W, C = x.shape
    return jnp.einsum('ndhwc,Dd,Hh,Ww->nDHWc', x,
                      _lerp_matrix(D, 2 * D), _lerp_matrix(H, 2 * H),
                      _lerp_matrix(W, 2 * W),
                      precision=jax.lax.Precision.HIGHEST)


def _prep_input(x1_ncdhw, x2_ncdhw):
    """NCDHW decoder/skip features -> concatenated NDHWC DoubleConv input."""
    x1 = jnp.transpose(x1_ncdhw, (0, 2, 3, 4, 1))
    x2 = jnp.transpose(x2_ncdhw, (0, 2, 3, 4, 1))
    x1 = _trilinear_up2x_ndhwc(x1)
    dz = x2.shape[1] - x1.shape[1]
    dy = x2.shape[2] - x1.shape[2]
    dx = x2.shape[3] - x1.shape[3]
    # TODO(synk): negative diffs (cropping case of F.pad) are not handled.
    x1 = jnp.pad(x1, ((0, 0), (dz // 2, dz - dz // 2), (dy // 2, dy - dy // 2),
                      (dx // 2, dx - dx // 2), (0, 0)))
    return jnp.concatenate([x2, x1], axis=-1)        # torch.cat([x2, x1], dim=1)


def up_forward(x1, x2, params, *, num_groups=8):
    """Pallas forward of `Up`.  x1/x2: NCDHW float32.  Returns NCDHW float32."""
    x = _prep_input(x1, x2)
    h = double_conv(x, params, num_groups=num_groups)
    return jnp.transpose(h, (0, 4, 1, 2, 3))         # NDHWC -> NCDHW


def init_params(key, in_channels, out_channels):
    k1, k2, k3, k4 = jax.random.split(key, 4)
    return {
        'w1': 0.1 * jax.random.normal(
            k1, (3, 3, 3, in_channels, out_channels), jnp.float32),
        'b1': 0.01 * jax.random.normal(k2, (out_channels,), jnp.float32),
        'g1': jnp.ones((out_channels,), jnp.float32),
        'be1': jnp.zeros((out_channels,), jnp.float32),
        'w2': 0.1 * jax.random.normal(
            k3, (3, 3, 3, out_channels, out_channels), jnp.float32),
        'b2': 0.01 * jax.random.normal(k4, (out_channels,), jnp.float32),
        'g2': jnp.ones((out_channels,), jnp.float32),
        'be2': jnp.zeros((out_channels,), jnp.float32),
    }


# ---------------------------------------------------------------------------
# Plain-JAX reference (for a loose numerical check)
# ---------------------------------------------------------------------------
def _ref_conv_gn_relu(x, w, b, gamma, beta, G, eps=1e-5):
    y = jax.lax.conv_general_dilated(
        x, w, window_strides=(1, 1, 1), padding='SAME',
        dimension_numbers=('NDHWC', 'DHWIO', 'NDHWC'),
        precision=jax.lax.Precision.HIGHEST)
    y = y + b
    N, D, H, W, Co = y.shape
    yg = y.reshape(N, D, H, W, G, Co // G)
    mean = jnp.mean(yg, axis=(1, 2, 3, 5), keepdims=True)
    var = jnp.mean((yg - mean) ** 2, axis=(1, 2, 3, 5), keepdims=True)
    yg = (yg - mean) * jax.lax.rsqrt(var + eps)
    return jnp.maximum(yg.reshape(N, D, H, W, Co) * gamma + beta, 0.0)


def up_forward_reference(x1, x2, params, *, num_groups=8):
    x = _prep_input(x1, x2)
    h = _ref_conv_gn_relu(x, params['w1'], params['b1'],
                          params['g1'], params['be1'], num_groups)
    h = _ref_conv_gn_relu(h, params['w2'], params['b2'],
                          params['g2'], params['be2'], num_groups)
    return jnp.transpose(h, (0, 4, 1, 2, 3))


if __name__ == "__main__":
    key = jax.random.PRNGKey(0)
    kx1, kx2, kp = jax.random.split(key, 3)

    in_channels, out_channels, num_groups = 32, 16, 8
    N = 2
    # decoder feature (to be upsampled) and skip-connection feature (NCDHW)
    x1 = jax.random.normal(kx1, (N, in_channels // 2, 4, 4, 4), jnp.float32)
    x2 = jax.random.normal(kx2, (N, in_channels // 2, 8, 8, 8), jnp.float32)

    params = init_params(kp, in_channels, out_channels)

    fwd = jax.jit(functools.partial(up_forward, num_groups=num_groups))
    out = fwd(x1, x2, params)
    jax.block_until_ready(out)
    assert out.shape == (N, out_channels, 8, 8, 8)

    # loose tolerance: conv matmuls run on the MXU in bfloat16 with f32
    # accumulation (and a single-pass GroupNorm variance)
    ref = up_forward_reference(x1, x2, params, num_groups=num_groups)
    max_err = float(jnp.max(jnp.abs(out - ref)))
    assert max_err < 0.2, f"max abs error vs reference: {max_err}"

    print("KERNEL_OK")
</pallas_src>

<mosaic_0001>
module attributes {stable_mosaic.version = 11 : i64} {
  func.func @_double_conv_kernel(%arg0: i32, %arg1: memref<1x8x8x256xbf16, #tpu.memory_space<vmem>>, %arg2: memref<3x3x256x128xbf16, #tpu.memory_space<vmem>>, %arg3: memref<3x3x128x128xbf16, #tpu.memory_space<vmem>>, %arg4: memref<3x128xf32, #tpu.memory_space<vmem>>, %arg5: memref<3x128xf32, #tpu.memory_space<vmem>>, %arg6: memref<128x8xf32, #tpu.memory_space<vmem>>, %arg7: memref<8x128xf32, #tpu.memory_space<vmem>>, %arg8: memref<1x8x8x128xf32, #tpu.memory_space<vmem>>, %arg9: memref<10x16x256xbf16, #tpu.memory_space<vmem>>, %arg10: memref<10x16x128xbf16, #tpu.memory_space<vmem>>) attributes {dimension_semantics = [#tpu.dimension_semantics<parallel>], iteration_bounds = array<i64: 2>, scalar_prefetch = 0 : i64, scratch_operands = 2 : i64, tpu.core_type = #tpu.core_type<tc>, window_params = [{transform_indices = @transform_0, window_bounds = array<i64: 1, 8, 8, 256>}, {pipeline_mode = #tpu.pipeline_mode<synchronous>, transform_indices = @transform_1, window_bounds = array<i64: 3, 3, 256, 128>}, {pipeline_mode = #tpu.pipeline_mode<synchronous>, transform_indices = @transform_2, window_bounds = array<i64: 3, 3, 128, 128>}, {pipeline_mode = #tpu.pipeline_mode<synchronous>, transform_indices = @transform_3, window_bounds = array<i64: 3, 128>}, {pipeline_mode = #tpu.pipeline_mode<synchronous>, transform_indices = @transform_4, window_bounds = array<i64: 3, 128>}, {pipeline_mode = #tpu.pipeline_mode<synchronous>, transform_indices = @transform_5, window_bounds = array<i64: 128, 8>}, {pipeline_mode = #tpu.pipeline_mode<synchronous>, transform_indices = @transform_6, window_bounds = array<i64: 8, 128>}, {transform_indices = @transform_7, window_bounds = array<i64: 1, 8, 8, 128>}]} {
    %cst = arith.constant 0.000000e+00 : bf16
    %0 = vector.broadcast %cst : bf16 to vector<1x16x256xbf16>
    %c0 = arith.constant 0 : index
    %c0_0 = arith.constant 0 : index
    %c0_1 = arith.constant 0 : index
    %1 = vector.load %arg9[%c0, %c0_0, %c0_1] : memref<10x16x256xbf16, #tpu.memory_space<vmem>>, vector<1x16x256xbf16>
    tpu.vector_store %arg9[%c0, %c0_0, %c0_1], %0 {strides = array<i32>} : memref<10x16x256xbf16, #tpu.memory_space<vmem>>, vector<1x16x256xbf16>,
    %cst_2 = arith.constant 0.000000e+00 : bf16
    %2 = vector.broadcast %cst_2 : bf16 to vector<1x16x256xbf16>
    %c9 = arith.constant 9 : index
    %c0_3 = arith.constant 0 : index
    %c0_4 = arith.constant 0 : index
    %3 = vector.load %arg9[%c9, %c0_3, %c0_4] : memref<10x16x256xbf16, #tpu.memory_space<vmem>>, vector<1x16x256xbf16>
    tpu.vector_store %arg9[%c9, %c0_3, %c0_4], %2 {strides = array<i32>} : memref<10x16x256xbf16, #tpu.memory_space<vmem>>, vector<1x16x256xbf16>,
    %cst_5 = arith.constant 0.000000e+00 : bf16
    %4 = vector.broadcast %cst_5 : bf16 to vector<8x8x256xbf16>
    %c1 = arith.constant 1 : index
    %c8 = arith.constant 8 : index
    %c0_6 = arith.constant 0 : index
    %5 = vector.load %arg9[%c1, %c8, %c0_6] : memref<10x16x256xbf16, #tpu.memory_space<vmem>>, vector<8x8x256xbf16>
    tpu.vector_store %arg9[%c1, %c8, %c0_6], %4 {strides = array<i32>} : memref<10x16x256xbf16, #tpu.memory_space<vmem>>, vector<8x8x256xbf16>,
    %cst_7 = arith.constant 0.000000e+00 : bf16
    %6 = vector.broadcast %cst_7 : bf16 to vector<1x16x128xbf16>
    %c0_8 = arith.constant 0 : index
    %c0_9 = arith.constant 0 : index
    %c0_10 = arith.constant 0 : index
    %7 = vector.load %arg10[%c0_8, %c0_9, %c0_10] : memref<10x16x128xbf16, #tpu.memory_space<vmem>>, vector<1x16x128xbf16>
    tpu.vector_store %arg10[%c0_8, %c0_9, %c0_10], %6 {strides = array<i32>} : memref<10x16x128xbf16, #tpu.memory_space<vmem>>, vector<1x16x128xbf16>,
    %cst_11 = arith.constant 0.000000e+00 : bf16
    %8 = vector.broadcast %cst_11 : bf16 to vector<1x16x128xbf16>
    %c9_12 = arith.constant 9 : index
    %c0_13 = arith.constant 0 : index
    %c0_14 = arith.constant 0 : index
    %9 = vector.load %arg10[%c9_12, %c0_13, %c0_14] : memref<10x16x128xbf16, #tpu.memory_space<vmem>>, vector<1x16x128xbf16>
    tpu.vector_store %arg10[%c9_12, %c0_13, %c0_14], %8 {strides = array<i32>} : memref<10x16x128xbf16, #tpu.memory_space<vmem>>, vector<1x16x128xbf16>,
    %cst_15 = arith.constant 0.000000e+00 : bf16
    %10 = vector.broadcast %cst_15 : bf16 to vector<8x8x128xbf16>
    %c1_16 = arith.constant 1 : index
    %c8_17 = arith.constant 8 : index
    %c0_18 = arith.constant 0 : index
    %11 = vector.load %arg10[%c1_16, %c8_17, %c0_18] : memref<10x16x128xbf16, #tpu.memory_space<vmem>>, vector<8x8x128xbf16>
    tpu.vector_store %arg10[%c1_16, %c8_17, %c0_18], %10 {strides = array<i32>} : memref<10x16x128xbf16, #tpu.memory_space<vmem>>, vector<8x8x128xbf16>,
    %c0_19 = arith.constant 0 : index
    %c0_20 = arith.constant 0 : index
    %c0_21 = arith.constant 0 : index
    %c0_22 = arith.constant 0 : index
    %12 = vector.load %arg1[%c0_19, %c0_20, %c0_21, %c0_22] : memref<1x8x8x256xbf16, #tpu.memory_space<vmem>>, vector<1x8x8x256xbf16>
    %13 = vector.shape_cast %12 : vector<1x8x8x256xbf16> to vector<8x8x256xbf16>
    %c1_23 = arith.constant 1 : index
    %c0_24 = arith.constant 0 : index
    %c0_25 = arith.constant 0 : index
    %14 = vector.load %arg9[%c1_23, %c0_24, %c0_25] : memref<10x16x256xbf16, #tpu.memory_space<vmem>>, vector<8x8x256xbf16>
    tpu.vector_store %arg9[%c1_23, %c0_24, %c0_25], %13 {strides = array<i32>} : memref<10x16x256xbf16, #tpu.memory_space<vmem>>, vector<8x8x256xbf16>,
    %cst_26 = arith.constant 0.000000e+00 : f32
    %15 = vector.broadcast %cst_26 : f32 to vector<128x128xf32>
    %cst_27 = arith.constant 0.000000e+00 : f32
    %16 = vector.broadcast %cst_27 : f32 to vector<128x128xf32>
    %c0_28 = arith.constant 0 : index
    %c0_29 = arith.constant 0 : index
    %c0_30 = arith.constant 0 : index
    %17 = vector.load %arg9[%c0_28, %c0_29, %c0_30] : memref<10x16x256xbf16, #tpu.memory_space<vmem>>, vector<8x16x256xbf16>
    %18 = vector.shape_cast %17 : vector<8x16x256xbf16> to vector<128x256xbf16>
    %c0_31 = arith.constant 0 : index
    %c0_32 = arith.constant 0 : index
    %c0_33 = arith.constant 0 : index
    %c0_34 = arith.constant 0 : index
    %19 = vector.load %arg2[%c0_31, %c0_32, %c0_33, %c0_34] : memref<3x3x256x128xbf16, #tpu.memory_space<vmem>>, vector<1x1x256x128xbf16>
    %20 = vector.shape_cast %19 : vector<1x1x256x128xbf16> to vector<256x128xbf16>
    %cst_35 = arith.constant dense<0.000000e+00> : vector<128x128xf32>
    %21 = tpu.matmul %18, %20, %cst_35 {dimension_numbers = #tpu.dot_dimension_numbers<[1], [0], [0], [1], [0, 0, 1, 1], [], []>} : vector<128x256xbf16>, vector<256x128xbf16>, vector<128x128xf32> -> vector<128x128xf32>
    %22 = arith.addf %16, %21 : vector<128x128xf32>
    %c1_36 = arith.constant 1 : index
    %c0_37 = arith.constant 0 : index
    %c0_38 = arith.constant 0 : index
    %23 = vector.load %arg9[%c1_36, %c0_37, %c0_38] : memref<10x16x256xbf16, #tpu.memory_space<vmem>>, vector<8x16x256xbf16>
    %24 = vector.shape_cast %23 : vector<8x16x256xbf16> to vector<128x256xbf16>
    %c1_39 = arith.constant 1 : index
    %c0_40 = arith.constant 0 : index
    %c0_41 = arith.constant 0 : index
    %c0_42 = arith.constant 0 : index
    %25 = vector.load %arg2[%c1_39, %c0_40, %c0_41, %c0_42] : memref<3x3x256x128xbf16, #tpu.memory_space<vmem>>, vector<1x1x256x128xbf16>
    %26 = vector.shape_cast %25 : vector<1x1x256x128xbf16> to vector<256x128xbf16>
    %cst_43 = arith.constant dense<0.000000e+00> : vector<128x128xf32>
    %27 = tpu.matmul %24, %26, %cst_43 {dimension_numbers = #tpu.dot_dimension_numbers<[1], [0], [0], [1], [0, 0, 1, 1], [], []>} : vector<128x256xbf16>, vector<256x128xbf16>, vector<128x128xf32> -> vector<128x128xf32>
    %28 = arith.addf %22, %27 : vector<128x128xf32>
    %c2 = arith.constant 2 : index
    %c0_44 = arith.constant 0 : index
    %c0_45 = arith.constant 0 : index
    %29 = vector.load %arg9[%c2, %c0_44, %c0_45] : memref<10x16x256xbf16, #tpu.memory_space<vmem>>, vector<8x16x256xbf16>
    %30 = vector.shape_cast %29 : vector<8x16x256xbf16> to vector<128x256xbf16>
    %c2_46 = arith.constant 2 : index
    %c0_47 = arith.constant 0 : index
    %c0_48 = arith.constant 0 : index
    %c0_49 = arith.constant 0 : index
    %31 = vector.load %arg2[%c2_46, %c0_47, %c0_48, %c0_49] : memref<3x3x256x128xbf16, #tpu.memory_space<vmem>>, vector<1x1x256x128xbf16>
    %32 = vector.shape_cast %31 : vector<1x1x256x128xbf16> to vector<256x128xbf16>
    %cst_50 = arith.constant dense<0.000000e+00> : vector<128x128xf32>
    %33 = tpu.matmul %30, %32, %cst_50 {dimension_numbers = #tpu.dot_dimension_numbers<[1], [0], [0], [1], [0, 0, 1, 1], [], []>} : vector<128x256xbf16>, vector<256x128xbf16>, vector<128x128xf32> -> vector<128x128xf32>
    %34 = arith.addf %28, %33 : vector<128x128xf32>
    %c1_i32 = arith.constant 1 : i32
    %35 = tpu.dynamic_rotate %34 by %c1_i32 dim 0 : vector<128x128xf32>, i32 -> vector<128x128xf32>
    %36 = arith.addf %15, %35 : vector<128x128xf32>
    %cst_51 = arith.constant 0.000000e+00 : f32
    %37 = vector.broadcast %cst_51 : f32 to vector<128x128xf32>
    %c0_52 = arith.constant 0 : index
    %c0_53 = arith.constant 0 : index
    %c0_54 = arith.constant 0 : index
    %38 = vector.load %arg9[%c0_52, %c0_53, %c0_54] : memref<10x16x256xbf16, #tpu.memory_space<vmem>>, vector<8x16x256xbf16>
    %39 = vector.shape_cast %38 : vector<8x16x256xbf16> to vector<128x256xbf16>
    %c0_55 = arith.constant 0 : index
    %c1_56 = arith.constant 1 : index
    %c0_57 = arith.constant 0 : index
    %c0_58 = arith.constant 0 : index
    %40 = vector.load %arg2[%c0_55, %c1_56, %c0_57, %c0_58] : memref<3x3x256x128xbf16, #tpu.memory_space<vmem>>, vector<1x1x256x128xbf16>
    %41 = vector.shape_cast %40 : vector<1x1x256x128xbf16> to vector<256x128xbf16>
    %cst_59 = arith.constant dense<0.000000e+00> : vector<128x128xf32>
    %42 = tpu.matmul %39, %41, %cst_59 {dimension_numbers = #tpu.dot_dimension_numbers<[1], [0], [0], [1], [0, 0, 1, 1], [], []>} : vector<128x256xbf16>, vector<256x128xbf16>, vector<128x128xf32> -> vector<128x128xf32>
    %43 = arith.addf %37, %42 : vector<128x128xf32>
    %c1_60 = arith.constant 1 : index
    %c0_61 = arith.constant 0 : index
    %c0_62 = arith.constant 0 : index
    %44 = vector.load %arg9[%c1_60, %c0_61, %c0_62] : memref<10x16x256xbf16, #tpu.memory_space<vmem>>, vector<8x16x256xbf16>
    %45 = vector.shape_cast %44 : vector<8x16x256xbf16> to vector<128x256xbf16>
    %c1_63 = arith.constant 1 : index
    %c1_64 = arith.constant 1 : index
    %c0_65 = arith.constant 0 : index
    %c0_66 = arith.constant 0 : index
    %46 = vector.load %arg2[%c1_63, %c1_64, %c0_65, %c0_66] : memref<3x3x256x128xbf16, #tpu.memory_space<vmem>>, vector<1x1x256x128xbf16>
    %47 = vector.shape_cast %46 : vector<1x1x256x128xbf16> to vector<256x128xbf16>
    %cst_67 = arith.constant dense<0.000000e+00> : vector<128x128xf32>
    %48 = tpu.matmul %45, %47, %cst_67 {dimension_numbers = #tpu.dot_dimension_numbers<[1], [0], [0], [1], [0, 0, 1, 1], [], []>} : vector<128x256xbf16>, vector<256x128xbf16>, vector<128x128xf32> -> vector<128x128xf32>
    %49 = arith.addf %43, %48 : vector<128x128xf32>
    %c2_68 = arith.constant 2 : index
    %c0_69 = arith.constant 0 : index
    %c0_70 = arith.constant 0 : index
    %50 = vector.load %arg9[%c2_68, %c0_69, %c0_70] : memref<10x16x256xbf16, #tpu.memory_space<vmem>>, vector<8x16x256xbf16>
    %51 = vector.shape_cast %50 : vector<8x16x256xbf16> to vector<128x256xbf16>
    %c2_71 = arith.constant 2 : index
    %c1_72 = arith.constant 1 : index
    %c0_73 = arith.constant 0 : index
    %c0_74 = arith.constant 0 : index
    %52 = vector.load %arg2[%c2_71, %c1_72, %c0_73, %c0_74] : memref<3x3x256x128xbf16, #tpu.memory_space<vmem>>, vector<1x1x256x128xbf16>
    %53 = vector.shape_cast %52 : vector<1x1x256x128xbf16> to vector<256x128xbf16>
    %cst_75 = arith.constant dense<0.000000e+00> : vector<128x128xf32>
    %54 = tpu.matmul %51, %53, %cst_75 {dimension_numbers = #tpu.dot_dimension_numbers<[1], [0], [0], [1], [0, 0, 1, 1], [], []>} : vector<128x256xbf16>, vector<256x128xbf16>, vector<128x128xf32> -> vector<128x128xf32>
    %55 = arith.addf %49, %54 : vector<128x128xf32>
    %56 = arith.addf %36, %55 : vector<128x128xf32>
    %cst_76 = arith.constant 0.000000e+00 : f32
    %57 = vector.broadcast %cst_76 : f32 to vector<128x128xf32>
    %c0_77 = arith.constant 0 : index
    %c0_78 = arith.constant 0 : index
    %c0_79 = arith.constant 0 : index
    %58 = vector.load %arg9[%c0_77, %c0_78, %c0_79] : memref<10x16x256xbf16, #tpu.memory_space<vmem>>, vector<8x16x256xbf16>
    %59 = vector.shape_cast %58 : vector<8x16x256xbf16> to vector<128x256xbf16>
    %c0_80 = arith.constant 0 : index
    %c2_81 = arith.constant 2 : index
    %c0_82 = arith.constant 0 : index
    %c0_83 = arith.constant 0 : index
    %60 = vector.load %arg2[%c0_80, %c2_81, %c0_82, %c0_83] : memref<3x3x256x128xbf16, #tpu.memory_space<vmem>>, vector<1x1x256x128xbf16>
    %61 = vector.shape_cast %60 : vector<1x1x256x128xbf16> to vector<256x128xbf16>
    %cst_84 = arith.constant dense<0.000000e+00> : vector<128x128xf32>
    %62 = tpu.matmul %59, %61, %cst_84 {dimension_numbers = #tpu.dot_dimension_numbers<[1], [0], [0], [1], [0, 0, 1, 1], [], []>} : vector<128x256xbf16>, vector<256x128xbf16>, vector<128x128xf32> -> vector<128x128xf32>
    %63 = arith.addf %57, %62 : vector<128x128xf32>
    %c1_85 = arith.constant 1 : index
    %c0_86 = arith.constant 0 : index
    %c0_87 = arith.constant 0 : index
    %64 = vector.load %arg9[%c1_85, %c0_86, %c0_87] : memref<10x16x256xbf16, #tpu.memory_space<vmem>>, vector<8x16x256xbf16>
    %65 = vector.shape_cast %64 : vector<8x16x256xbf16> to vector<128x256xbf16>
    %c1_88 = arith.constant 1 : index
    %c2_89 = arith.constant 2 : index
    %c0_90 = arith.constant 0 : index
    %c0_91 = arith.constant 0 : index
    %66 = vector.load %arg2[%c1_88, %c2_89, %c0_90, %c0_91] : memref<3x3x256x128xbf16, #tpu.memory_space<vmem>>, vector<1x1x256x128xbf16>
    %67 = vector.shape_cast %66 : vector<1x1x256x128xbf16> to vector<256x128xbf16>
    %cst_92 = arith.constant dense<0.000000e+00> : vector<128x128xf32>
    %68 = tpu.matmul %65, %67, %cst_92 {dimension_numbers = #tpu.dot_dimension_numbers<[1], [0], [0], [1], [0, 0, 1, 1], [], []>} : vector<128x256xbf16>, vector<256x128xbf16>, vector<128x128xf32> -> vector<128x128xf32>
    %69 = arith.addf %63, %68 : vector<128x128xf32>
    %c2_93 = arith.constant 2 : index
    %c0_94 = arith.constant 0 : index
    %c0_95 = arith.constant 0 : index
    %70 = vector.load %arg9[%c2_93, %c0_94, %c0_95] : memref<10x16x256xbf16, #tpu.memory_space<vmem>>, vector<8x16x256xbf16>
    %71 = vector.shape_cast %70 : vector<8x16x256xbf16> to vector<128x256xbf16>
    %c2_96 = arith.constant 2 : index
    %c2_97 = arith.constant 2 : index
    %c0_98 = arith.constant 0 : index
    %c0_99 = arith.constant 0 : index
    %72 = vector.load %arg2[%c2_96, %c2_97, %c0_98, %c0_99] : memref<3x3x256x128xbf16, #tpu.memory_space<vmem>>, vector<1x1x256x128xbf16>
    %73 = vector.shape_cast %72 : vector<1x1x256x128xbf16> to vector<256x128xbf16>
    %cst_100 = arith.constant dense<0.000000e+00> : vector<128x128xf32>
    %74 = tpu.matmul %71, %73, %cst_100 {dimension_numbers = #tpu.dot_dimension_numbers<[1], [0], [0], [1], [0, 0, 1, 1], [], []>} : vector<128x256xbf16>, vector<256x128xbf16>, vector<128x128xf32> -> vector<128x128xf32>
    %75 = arith.addf %69, %74 : vector<128x128xf32>
    %c127_i32 = arith.constant 127 : i32
    %76 = tpu.dynamic_rotate %75 by %c127_i32 dim 0 : vector<128x128xf32>, i32 -> vector<128x128xf32>
    %77 = arith.addf %56, %76 : vector<128x128xf32>
    %78 = vector.shape_cast %77 : vector<128x128xf32> to vector<8x16x128xf32>
    %79 = vector.extract_strided_slice %78 {offsets = [0, 0, 0], sizes = [8, 8, 128], strides = [1, 1, 1]} : vector<8x16x128xf32> to vector<8x8x128xf32>
    %80 = vector.shape_cast %79 : vector<8x8x128xf32> to vector<64x128xf32>
    %c0_101 = arith.constant 0 : index
    %c0_102 = arith.constant 0 : index
    %81 = vector.load %arg4[%c0_101, %c0_102] : memref<3x128xf32, #tpu.memory_space<vmem>>, vector<3x128xf32>
    %82 = vector.extract_strided_slice %81 {offsets = [0, 0], sizes = [1, 128], strides = [1, 1]} : vector<3x128xf32> to vector<1x128xf32>
    %83 = vector.broadcast %82 : vector<1x128xf32> to vector<64x128xf32>
    %84 = arith.addf %80, %83 : vector<64x128xf32>
    %cst_103 = arith.constant dense<0.000000e+00> : vector<128xf32>
    %85 = vector.multi_reduction <add>, %84, %cst_103 [0] : vector<64x128xf32> to vector<128xf32>
    %86 = vector.shape_cast %85 : vector<128xf32> to vector<1x128xf32>
    %87 = arith.mulf %84, %84 : vector<64x128xf32>
    %cst_104 = arith.constant dense<0.000000e+00> : vector<128xf32>
    %88 = vector.multi_reduction <add>, %87, %cst_104 [0] : vector<64x128xf32> to vector<128xf32>
    %89 = vector.shape_cast %88 : vector<128xf32> to vector<1x128xf32>
    %90 = tpu.concatenate %86, %89 in 0 : vector<1x128xf32>, vector<1x128xf32> -> vector<2x128xf32>
    %c0_105 = arith.constant 0 : index
    %c0_106 = arith.constant 0 : index
    %91 = vector.load %arg6[%c0_105, %c0_106] : memref<128x8xf32, #tpu.memory_space<vmem>>, vector<128x8xf32>
    %cst_107 = arith.constant dense<0.000000e+00> : vector<2x8xf32>
    %92 = tpu.matmul %90, %91, %cst_107 {dimension_numbers = #tpu.dot_dimension_numbers<[1], [0], [0], [1], [0, 0, 1, 1], [], []>} : vector<2x128xf32>, vector<128x8xf32>, vector<2x8xf32> -> vector<2x8xf32>
    %c0_108 = arith.constant 0 : index
    %c0_109 = arith.constant 0 : index
    %93 = vector.load %arg7[%c0_108, %c0_109] : memref<8x128xf32, #tpu.memory_space<vmem>>, vector<8x128xf32>
    %cst_110 = arith.constant dense<0.000000e+00> : vector<2x128xf32>
    %94 = tpu.matmul %92, %93, %cst_110 {dimension_numbers = #tpu.dot_dimension_numbers<[1], [0], [0], [1], [0, 0, 1, 1], [], []>} : vector<2x8xf32>, vector<8x128xf32>, vector<2x128xf32> -> vector<2x128xf32>
    %95 = vector.extract_strided_slice %94 {offsets = [0, 0], sizes = [1, 128], strides = [1, 1]} : vector<2x128xf32> to vector<1x128xf32>
    %96 = vector.extract_strided_slice %94 {offsets = [1, 0], sizes = [1, 128], strides = [1, 1]} : vector<2x128xf32> to vector<1x128xf32>
    %97 = arith.mulf %95, %95 : vector<1x128xf32>
    %98 = arith.subf %96, %97 : vector<1x128xf32>
    %cst_111 = arith.constant 9.99999974E-6 : f32
    %99 = vector.broadcast %cst_111 : f32 to vector<1x128xf32>
    %100 = arith.addf %98, %99 : vector<1x128xf32>
    %101 = math.rsqrt %100 : vector<1x128xf32>
    %102 = vector.extract_strided_slice %81 {offsets = [1, 0], sizes = [1, 128], strides = [1, 1]} : vector<3x128xf32> to vector<1x128xf32>
    %103 = arith.mulf %101, %102 : vector<1x128xf32>
    %104 = vector.broadcast %103 : vector<1x128xf32> to vector<64x128xf32>
    %105 = arith.mulf %84, %104 : vector<64x128xf32>
    %106 = vector.extract_strided_slice %81 {offsets = [2, 0], sizes = [1, 128], strides = [1, 1]} : vector<3x128xf32> to vector<1x128xf32>
    %107 = arith.mulf %95, %103 : vector<1x128xf32>
    %108 = arith.subf %106, %107 : vector<1x128xf32>
    %109 = vector.broadcast %108 : vector<1x128xf32> to vector<64x128xf32>
    %110 = arith.addf %105, %109 : vector<64x128xf32>
    %cst_112 = arith.constant 0.000000e+00 : f32
    %111 = vector.broadcast %cst_112 : f32 to vector<64x128xf32>
    %112 = arith.maximumf %110, %111 : vector<64x128xf32>
    %113 = vector.shape_cast %112 : vector<64x128xf32> to vector<8x8x128xf32>
    %114 = arith.truncf %113 : vector<8x8x128xf32> to vector<8x8x128xbf16>
    %c1_113 = arith.constant 1 : index
    %c0_114 = arith.constant 0 : index
    %c0_115 = arith.constant 0 : index
    %115 = vector.load %arg10[%c1_113, %c0_114, %c0_115] : memref<10x16x128xbf16, #tpu.memory_space<vmem>>, vector<8x8x128xbf16>
    tpu.vector_store %arg10[%c1_113, %c0_114, %c0_115], %114 {strides = array<i32>} : memref<10x16x128xbf16, #tpu.memory_space<vmem>>, vector<8x8x128xbf16>,
    %cst_116 = arith.constant 0.000000e+00 : f32
    %116 = vector.broadcast %cst_116 : f32 to vector<128x128xf32>
    %cst_117 = arith.constant 0.000000e+00 : f32
    %117 = vector.broadcast %cst_117 : f32 to vector<128x128xf32>
    %c0_118 = arith.constant 0 : index
    %c0_119 = arith.constant 0 : index
    %c0_120 = arith.constant 0 : index
    %118 = vector.load %arg10[%c0_118, %c0_119, %c0_120] : memref<10x16x128xbf16, #tpu.memory_space<vmem>>, vector<8x16x128xbf16>
    %119 = vector.shape_cast %118 : vector<8x16x128xbf16> to vector<128x128xbf16>
    %c0_121 = arith.constant 0 : index
    %c0_122 = arith.constant 0 : index
    %c0_123 = arith.constant 0 : index
    %c0_124 = arith.constant 0 : index
    %120 = vector.load %arg3[%c0_121, %c0_122, %c0_123, %c0_124] : memref<3x3x128x128xbf16, #tpu.memory_space<vmem>>, vector<1x1x128x128xbf16>
    %121 = vector.shape_cast %120 : vector<1x1x128x128xbf16> to vector<128x128xbf16>
    %cst_125 = arith.constant dense<0.000000e+00> : vector<128x128xf32>
    %122 = tpu.matmul %119, %121, %cst_125 {dimension_numbers = #tpu.dot_dimension_numbers<[1], [0], [0], [1], [0, 0, 1, 1], [], []>} : vector<128x128xbf16>, vector<128x128xbf16>, vector<128x128xf32> -> vector<128x128xf32>
    %123 = arith.addf %117, %122 : vector<128x128xf32>
    %c1_126 = arith.constant 1 : index
    %c0_127 = arith.constant 0 : index
    %c0_128 = arith.constant 0 : index
    %124 = vector.load %arg10[%c1_126, %c0_127, %c0_128] : memref<10x16x128xbf16, #tpu.memory_space<vmem>>, vector<8x16x128xbf16>
    %125 = vector.shape_cast %124 : vector<8x16x128xbf16> to vector<128x128xbf16>
    %c1_129 = arith.constant 1 : index
    %c0_130 = arith.constant 0 : index
    %c0_131 = arith.constant 0 : index
    %c0_132 = arith.constant 0 : index
    %126 = vector.load %arg3[%c1_129, %c0_130, %c0_131, %c0_132] : memref<3x3x128x128xbf16, #tpu.memory_space<vmem>>, vector<1x1x128x128xbf16>
    %127 = vector.shape_cast %126 : vector<1x1x128x128xbf16> to vector<128x128xbf16>
    %cst_133 = arith.constant dense<0.000000e+00> : vector<128x128xf32>
    %128 = tpu.matmul %125, %127, %cst_133 {dimension_numbers = #tpu.dot_dimension_numbers<[1], [0], [0], [1], [0, 0, 1, 1], [], []>} : vector<128x128xbf16>, vector<128x128xbf16>, vector<128x128xf32> -> vector<128x128xf32>
    %129 = arith.addf %123, %128 : vector<128x128xf32>
    %c2_134 = arith.constant 2 : index
    %c0_135 = arith.constant 0 : index
    %c0_136 = arith.constant 0 : index
    %130 = vector.load %arg10[%c2_134, %c0_135, %c0_136] : memref<10x16x128xbf16, #tpu.memory_space<vmem>>, vector<8x16x128xbf16>
    %131 = vector.shape_cast %130 : vector<8x16x128xbf16> to vector<128x128xbf16>
    %c2_137 = arith.constant 2 : index
    %c0_138 = arith.constant 0 : index
    %c0_139 = arith.constant 0 : index
    %c0_140 = arith.constant 0 : index
    %132 = vector.load %arg3[%c2_137, %c0_138, %c0_139, %c0_140] : memref<3x3x128x128xbf16, #tpu.memory_space<vmem>>, vector<1x1x128x128xbf16>
    %133 = vector.shape_cast %132 : vector<1x1x128x128xbf16> to vector<128x128xbf16>
    %cst_141 = arith.constant dense<0.000000e+00> : vector<128x128xf32>
    %134 = tpu.matmul %131, %133, %cst_141 {dimension_numbers = #tpu.dot_dimension_numbers<[1], [0], [0], [1], [0, 0, 1, 1], [], []>} : vector<128x128xbf16>, vector<128x128xbf16>, vector<128x128xf32> -> vector<128x128xf32>
    %135 = arith.addf %129, %134 : vector<128x128xf32>
    %c1_i32_142 = arith.constant 1 : i32
    %136 = tpu.dynamic_rotate %135 by %c1_i32_142 dim 0 : vector<128x128xf32>, i32 -> vector<128x128xf32>
    %137 = arith.addf %116, %136 : vector<128x128xf32>
    %cst_143 = arith.constant 0.000000e+00 : f32
    %138 = vector.broadcast %cst_143 : f32 to vector<128x128xf32>
    %c0_144 = arith.constant 0 : index
    %c0_145 = arith.constant 0 : index
    %c0_146 = arith.constant 0 : index
    %139 = vector.load %arg10[%c0_144, %c0_145, %c0_146] : memref<10x16x128xbf16, #tpu.memory_space<vmem>>, vector<8x16x128xbf16>
    %140 = vector.shape_cast %139 : vector<8x16x128xbf16> to vector<128x128xbf16>
    %c0_147 = arith.constant 0 : index
    %c1_148 = arith.constant 1 : index
    %c0_149 = arith.constant 0 : index
    %c0_150 = arith.constant 0 : index
    %141 = vector.load %arg3[%c0_147, %c1_148, %c0_149, %c0_150] : memref<3x3x128x128xbf16, #tpu.memory_space<vmem>>, vector<1x1x128x128xbf16>
    %142 = vector.shape_cast %141 : vector<1x1x128x128xbf16> to vector<128x128xbf16>
    %cst_151 = arith.constant dense<0.000000e+00> : vector<128x128xf32>
    %143 = tpu.matmul %140, %142, %cst_151 {dimension_numbers = #tpu.dot_dimension_numbers<[1], [0], [0], [1], [0, 0, 1, 1], [], []>} : vector<128x128xbf16>, vector<128x128xbf16>, vector<128x128xf32> -> vector<128x128xf32>
    %144 = arith.addf %138, %143 : vector<128x128xf32>
    %c1_152 = arith.constant 1 : index
    %c0_153 = arith.constant 0 : index
    %c0_154 = arith.constant 0 : index
    %145 = vector.load %arg10[%c1_152, %c0_153, %c0_154] : memref<10x16x128xbf16, #tpu.memory_space<vmem>>, vector<8x16x128xbf16>
    %146 = vector.shape_cast %145 : vector<8x16x128xbf16> to vector<128x128xbf16>
    %c1_155 = arith.constant 1 : index
    %c1_156 = arith.constant 1 : index
    %c0_157 = arith.constant 0 : index
    %c0_158 = arith.constant 0 : index
    %147 = vector.load %arg3[%c1_155, %c1_156, %c0_157, %c0_158] : memref<3x3x128x128xbf16, #tpu.memory_space<vmem>>, vector<1x1x128x128xbf16>
    %148 = vector.shape_cast %147 : vector<1x1x128x128xbf16> to vector<128x128xbf16>
    %cst_159 = arith.constant dense<0.000000e+00> : vector<128x128xf32>
    %149 = tpu.matmul %146, %148, %cst_159 {dimension_numbers = #tpu.dot_dimension_numbers<[1], [0], [0], [1], [0, 0, 1, 1], [], []>} : vector<128x128xbf16>, vector<128x128xbf16>, vector<128x128xf32> -> vector<128x128xf32>
    %150 = arith.addf %144, %149 : vector<128x128xf32>
    %c2_160 = arith.constant 2 : index
    %c0_161 = arith.constant 0 : index
    %c0_162 = arith.constant 0 : index
    %151 = vector.load %arg10[%c2_160, %c0_161, %c0_162] : memref<10x16x128xbf16, #tpu.memory_space<vmem>>, vector<8x16x128xbf16>
    %152 = vector.shape_cast %151 : vector<8x16x128xbf16> to vector<128x128xbf16>
    %c2_163 = arith.constant 2 : index
    %c1_164 = arith.constant 1 : index
    %c0_165 = arith.constant 0 : index
    %c0_166 = arith.constant 0 : index
    %153 = vector.load %arg3[%c2_163, %c1_164, %c0_165, %c0_166] : memref<3x3x128x128xbf16, #tpu.memory_space<vmem>>, vector<1x1x128x128xbf16>
    %154 = vector.shape_cast %153 : vector<1x1x128x128xbf16> to vector<128x128xbf16>
    %cst_167 = arith.constant dense<0.000000e+00> : vector<128x128xf32>
    %155 = tpu.matmul %152, %154, %cst_167 {dimension_numbers = #tpu.dot_dimension_numbers<[1], [0], [0], [1], [0, 0, 1, 1], [], []>} : vector<128x128xbf16>, vector<128x128xbf16>, vector<128x128xf32> -> vector<128x128xf32>
    %156 = arith.addf %150, %155 : vector<128x128xf32>
    %157 = arith.addf %137, %156 : vector<128x128xf32>
    %cst_168 = arith.constant 0.000000e+00 : f32
    %158 = vector.broadcast %cst_168 : f32 to vector<128x128xf32>
    %c0_169 = arith.constant 0 : index
    %c0_170 = arith.constant 0 : index
    %c0_171 = arith.constant 0 : index
    %159 = vector.load %arg10[%c0_169, %c0_170, %c0_171] : memref<10x16x128xbf16, #tpu.memory_space<vmem>>, vector<8x16x128xbf16>
    %160 = vector.shape_cast %159 : vector<8x16x128xbf16> to vector<128x128xbf16>
    %c0_172 = arith.constant 0 : index
    %c2_173 = arith.constant 2 : index
    %c0_174 = arith.constant 0 : index
    %c0_175 = arith.constant 0 : index
    %161 = vector.load %arg3[%c0_172, %c2_173, %c0_174, %c0_175] : memref<3x3x128x128xbf16, #tpu.memory_space<vmem>>, vector<1x1x128x128xbf16>
    %162 = vector.shape_cast %161 : vector<1x1x128x128xbf16> to vector<128x128xbf16>
    %cst_176 = arith.constant dense<0.000000e+00> : vector<128x128xf32>
    %163 = tpu.matmul %160, %162, %cst_176 {dimension_numbers = #tpu.dot_dimension_numbers<[1], [0], [0], [1], [0, 0, 1, 1], [], []>} : vector<128x128xbf16>, vector<128x128xbf16>, vector<128x128xf32> -> vector<128x128xf32>
    %164 = arith.addf %158, %163 : vector<128x128xf32>
    %c1_177 = arith.constant 1 : index
    %c0_178 = arith.constant 0 : index
    %c0_179 = arith.constant 0 : index
    %165 = vector.load %arg10[%c1_177, %c0_178, %c0_179] : memref<10x16x128xbf16, #tpu.memory_space<vmem>>, vector<8x16x128xbf16>
    %166 = vector.shape_cast %165 : vector<8x16x128xbf16> to vector<128x128xbf16>
    %c1_180 = arith.constant 1 : index
    %c2_181 = arith.constant 2 : index
    %c0_182 = arith.constant 0 : index
    %c0_183 = arith.constant 0 : index
    %167 = vector.load %arg3[%c1_180, %c2_181, %c0_182, %c0_183] : memref<3x3x128x128xbf16, #tpu.memory_space<vmem>>, vector<1x1x128x128xbf16>
    %168 = vector.shape_cast %167 : vector<1x1x128x128xbf16> to vector<128x128xbf16>
    %cst_184 = arith.constant dense<0.000000e+00> : vector<128x128xf32>
    %169 = tpu.matmul %166, %168, %cst_184 {dimension_numbers = #tpu.dot_dimension_numbers<[1], [0], [0], [1], [0, 0, 1, 1], [], []>} : vector<128x128xbf16>, vector<128x128xbf16>, vector<128x128xf32> -> vector<128x128xf32>
    %170 = arith.addf %164, %169 : vector<128x128xf32>
    %c2_185 = arith.constant 2 : index
    %c0_186 = arith.constant 0 : index
    %c0_187 = arith.constant 0 : index
    %171 = vector.load %arg10[%c2_185, %c0_186, %c0_187] : memref<10x16x128xbf16, #tpu.memory_space<vmem>>, vector<8x16x128xbf16>
    %172 = vector.shape_cast %171 : vector<8x16x128xbf16> to vector<128x128xbf16>
    %c2_188 = arith.constant 2 : index
    %c2_189 = arith.constant 2 : index
    %c0_190 = arith.constant 0 : index
    %c0_191 = arith.constant 0 : index
    %173 = vector.load %arg3[%c2_188, %c2_189, %c0_190, %c0_191] : memref<3x3x128x128xbf16, #tpu.memory_space<vmem>>, vector<1x1x128x128xbf16>
    %174 = vector.shape_cast %173 : vector<1x1x128x128xbf16> to vector<128x128xbf16>
    %cst_192 = arith.constant dense<0.000000e+00> : vector<128x128xf32>
    %175 = tpu.matmul %172, %174, %cst_192 {dimension_numbers = #tpu.dot_dimension_numbers<[1], [0], [0], [1], [0, 0, 1, 1], [], []>} : vector<128x128xbf16>, vector<128x128xbf16>, vector<128x128xf32> -> vector<128x128xf32>
    %176 = arith.addf %170, %175 : vector<128x128xf32>
    %c127_i32_193 = arith.constant 127 : i32
    %177 = tpu.dynamic_rotate %176 by %c127_i32_193 dim 0 : vector<128x128xf32>, i32 -> vector<128x128xf32>
    %178 = arith.addf %157, %177 : vector<128x128xf32>
    %179 = vector.shape_cast %178 : vector<128x128xf32> to vector<8x16x128xf32>
    %180 = vector.extract_strided_slice %179 {offsets = [0, 0, 0], sizes = [8, 8, 128], strides = [1, 1, 1]} : vector<8x16x128xf32> to vector<8x8x128xf32>
    %181 = vector.shape_cast %180 : vector<8x8x128xf32> to vector<64x128xf32>
    %c0_194 = arith.constant 0 : index
    %c0_195 = arith.constant 0 : index
    %182 = vector.load %arg5[%c0_194, %c0_195] : memref<3x128xf32, #tpu.memory_space<vmem>>, vector<3x128xf32>
    %183 = vector.extract_strided_slice %182 {offsets = [0, 0], sizes = [1, 128], strides = [1, 1]} : vector<3x128xf32> to vector<1x128xf32>
    %184 = vector.broadcast %183 : vector<1x128xf32> to vector<64x128xf32>
    %185 = arith.addf %181, %184 : vector<64x128xf32>
    %cst_196 = arith.constant dense<0.000000e+00> : vector<128xf32>
    %186 = vector.multi_reduction <add>, %185, %cst_196 [0] : vector<64x128xf32> to vector<128xf32>
    %187 = vector.shape_cast %186 : vector<128xf32> to vector<1x128xf32>
    %188 = arith.mulf %185, %185 : vector<64x128xf32>
    %cst_197 = arith.constant dense<0.000000e+00> : vector<128xf32>
    %189 = vector.multi_reduction <add>, %188, %cst_197 [0] : vector<64x128xf32> to vector<128xf32>
    %190 = vector.shape_cast %189 : vector<128xf32> to vector<1x128xf32>
    %191 = tpu.concatenate %187, %190 in 0 : vector<1x128xf32>, vector<1x128xf32> -> vector<2x128xf32>
    %c0_198 = arith.constant 0 : index
    %c0_199 = arith.constant 0 : index
    %192 = vector.load %arg6[%c0_198, %c0_199] : memref<128x8xf32, #tpu.memory_space<vmem>>, vector<128x8xf32>
    %cst_200 = arith.constant dense<0.000000e+00> : vector<2x8xf32>
    %193 = tpu.matmul %191, %192, %cst_200 {dimension_numbers = #tpu.dot_dimension_numbers<[1], [0], [0], [1], [0, 0, 1, 1], [], []>} : vector<2x128xf32>, vector<128x8xf32>, vector<2x8xf32> -> vector<2x8xf32>
    %c0_201 = arith.constant 0 : index
    %c0_202 = arith.constant 0 : index
    %194 = vector.load %arg7[%c0_201, %c0_202] : memref<8x128xf32, #tpu.memory_space<vmem>>, vector<8x128xf32>
    %cst_203 = arith.constant dense<0.000000e+00> : vector<2x128xf32>
    %195 = tpu.matmul %193, %194, %cst_203 {dimension_numbers = #tpu.dot_dimension_numbers<[1], [0], [0], [1], [0, 0, 1, 1], [], []>} : vector<2x8xf32>, vector<8x128xf32>, vector<2x128xf32> -> vector<2x128xf32>
    %196 = vector.extract_strided_slice %195 {offsets = [0, 0], sizes = [1, 128], strides = [1, 1]} : vector<2x128xf32> to vector<1x128xf32>
    %197 = vector.extract_strided_slice %195 {offsets = [1, 0], sizes = [1, 128], strides = [1, 1]} : vector<2x128xf32> to vector<1x128xf32>
    %198 = arith.mulf %196, %196 : vector<1x128xf32>
    %199 = arith.subf %197, %198 : vector<1x128xf32>
    %cst_204 = arith.constant 9.99999974E-6 : f32
    %200 = vector.broadcast %cst_204 : f32 to vector<1x128xf32>
    %201 = arith.addf %199, %200 : vector<1x128xf32>
    %202 = math.rsqrt %201 : vector<1x128xf32>
    %203 = vector.extract_strided_slice %182 {offsets = [1, 0], sizes = [1, 128], strides = [1, 1]} : vector<3x128xf32> to vector<1x128xf32>
    %204 = arith.mulf %202, %203 : vector<1x128xf32>
    %205 = vector.broadcast %204 : vector<1x128xf32> to vector<64x128xf32>
    %206 = arith.mulf %185, %205 : vector<64x128xf32>
    %207 = vector.extract_strided_slice %182 {offsets = [2, 0], sizes = [1, 128], strides = [1, 1]} : vector<3x128xf32> to vector<1x128xf32>
    %208 = arith.mulf %196, %204 : vector<1x128xf32>
    %209 = arith.subf %207, %208 : vector<1x128xf32>
    %210 = vector.broadcast %209 : vector<1x128xf32> to vector<64x128xf32>
    %211 = arith.addf %206, %210 : vector<64x128xf32>
    %cst_205 = arith.constant 0.000000e+00 : f32
    %212 = vector.broadcast %cst_205 : f32 to vector<64x128xf32>
    %213 = arith.maximumf %211, %212 : vector<64x128xf32>
    %214 = vector.shape_cast %213 : vector<64x128xf32> to vector<8x8x128xf32>
    %c0_206 = arith.constant 0 : index
    %c0_207 = arith.constant 0 : index
    %c0_208 = arith.constant 0 : index
    %c0_209 = arith.constant 0 : index
    %215 = vector.load %arg8[%c0_206, %c0_207, %c0_208, %c0_209] : memref<1x8x8x128xf32, #tpu.memory_space<vmem>>, vector<1x8x8x128xf32>
    %216 = vector.shape_cast %215 : vector<1x8x8x128xf32> to vector<8x8x128xf32>
    %217 = vector.shape_cast %214 : vector<8x8x128xf32> to vector<1x8x8x128xf32>
    tpu.vector_store %arg8[%c0_206, %c0_207, %c0_208, %c0_209], %217 {strides = array<i32>} : memref<1x8x8x128xf32, #tpu.memory_space<vmem>>, vector<1x8x8x128xf32>,
    return
  }
  func.func @transform_0(%arg0: i32) -> (i32, i32, i32, i32) {
    %c0_i32 = arith.constant 0 : i32
    %c0_i32_0 = arith.constant 0 : i32
    %c0_i32_1 = arith.constant 0 : i32
    %c0_i32_2 = arith.constant 0 : i32
    return %arg0, %c0_i32, %c0_i32_0, %c0_i32_1 : i32, i32, i32, i32
  }
  func.func @transform_1(%arg0: i32) -> (i32, i32, i32, i32) {
    %c0_i32 = arith.constant 0 : i32
    %c0_i32_0 = arith.constant 0 : i32
    %c0_i32_1 = arith.constant 0 : i32
    %c0_i32_2 = arith.constant 0 : i32
    %c0_i32_3 = arith.constant 0 : i32
    return %c0_i32, %c0_i32_0, %c0_i32_1, %c0_i32_2 : i32, i32, i32, i32
  }
  func.func @transform_2(%arg0: i32) -> (i32, i32, i32, i32) {
    %c0_i32 = arith.constant 0 : i32
    %c0_i32_0 = arith.constant 0 : i32
    %c0_i32_1 = arith.constant 0 : i32
    %c0_i32_2 = arith.constant 0 : i32
    %c0_i32_3 = arith.constant 0 : i32
    return %c0_i32, %c0_i32_0, %c0_i32_1, %c0_i32_2 : i32, i32, i32, i32
  }
  func.func @transform_3(%arg0: i32) -> (i32, i32) {
    %c0_i32 = arith.constant 0 : i32
    %c0_i32_0 = arith.constant 0 : i32
    %c0_i32_1 = arith.constant 0 : i32
    return %c0_i32, %c0_i32_0 : i32, i32
  }
  func.func @transform_4(%arg0: i32) -> (i32, i32) {
    %c0_i32 = arith.constant 0 : i32
    %c0_i32_0 = arith.constant 0 : i32
    %c0_i32_1 = arith.constant 0 : i32
    return %c0_i32, %c0_i32_0 : i32, i32
  }
  func.func @transform_5(%arg0: i32) -> (i32, i32) {
    %c0_i32 = arith.constant 0 : i32
    %c0_i32_0 = arith.constant 0 : i32
    %c0_i32_1 = arith.constant 0 : i32
    return %c0_i32, %c0_i32_0 : i32, i32
  }
  func.func @transform_6(%arg0: i32) -> (i32, i32) {
    %c0_i32 = arith.constant 0 : i32
    %c0_i32_0 = arith.constant 0 : i32
    %c0_i32_1 = arith.constant 0 : i32
    return %c0_i32, %c0_i32_0 : i32, i32
  }
  func.func @transform_7(%arg0: i32) -> (i32, i32, i32, i32) {
    %c0_i32 = arith.constant 0 : i32
    %c0_i32_0 = arith.constant 0 : i32
    %c0_i32_1 = arith.constant 0 : i32
    %c0_i32_2 = arith.constant 0 : i32
    return %arg0, %c0_i32, %c0_i32_0, %c0_i32_1 : i32, i32, i32, i32
  }
}

</mosaic_0001>

<llo_original>
// kernel: tile.42
$region0: #{tile.42}
  %s0 = inlined_call_operand.vmem [shape: f32[8,16], index: 0, kind: input, shape index: {}]
  %s1 = inlined_call_operand.vmem [shape: f32[1,128], index: 1, kind: output, shape index: {}]
  $region1: #{tile.42} parent=0
    #allocation0 [shape = 'u8[4096]{0}', space=vmem, size = 0x1000, scoped, tag = 'scoped mem for output reshape']
    %v2 = vld [vmem:[%s0] sm:$0x1]
    %vm3 = vcmask 130048
    %4 = vst.msk [vmem:[#allocation0] sm:$0x1] %vm3, %v2
    %s5 = scalar_lea.vmem %s0, 7
    %v6 = vld [vmem:[%s5] sm:$0x1]
    %7 = vrot.lane.b32.xlu0 %v6, 112
    %v8 = vpop.permute.xlu0 %7
    %vm9 = vcmask 1048448
    %10 = vst.msk [vmem:[#allocation0] sm:$0x1] %vm9, %v8
    %s11 = scalar_lea.vmem %s0, 6
    %v12 = vld [vmem:[%s11] sm:$0x1]
    %13 = vrot.lane.b32.xlu0 %v12, 96
    %v14 = vpop.permute.xlu0 %13
    %vm15 = vcmask 917248
    %16 = vst.msk [vmem:[#allocation0] sm:$0x1] %vm15, %v14
    %s17 = scalar_lea.vmem %s0, 5
    %v18 = vld [vmem:[%s17] sm:$0x1]
    %19 = vrot.lane.b32.xlu0 %v18, 80
    %v20 = vpop.permute.xlu0 %19
    %vm21 = vcmask 786048
    %22 = vst.msk [vmem:[#allocation0] sm:$0x1] %vm21, %v20
    %s23 = scalar_lea.vmem %s0, 4
    %v24 = vld [vmem:[%s23] sm:$0x1]
    %25 = vrot.lane.b32.xlu0 %v24, 64
    %v26 = vpop.permute.xlu0 %25
    %vm27 = vcmask 654848
    %28 = vst.msk [vmem:[#allocation0] sm:$0x1] %vm27, %v26
    %s29 = scalar_lea.vmem %s0, 3
    %v30 = vld [vmem:[%s29] sm:$0x1]
    %31 = vrot.lane.b32.xlu0 %v30, 48
    %v32 = vpop.permute.xlu0 %31
    %vm33 = vcmask 523648
    %34 = vst.msk [vmem:[#allocation0] sm:$0x1] %vm33, %v32
    %s35 = scalar_lea.vmem %s0, 2
    %v36 = vld [vmem:[%s35] sm:$0x1]
    %37 = vrot.lane.b32.xlu0 %v36, 32
    %v38 = vpop.permute.xlu0 %37
    %vm39 = vcmask 392448
    %40 = vst.msk [vmem:[#allocation0] sm:$0x1] %vm39, %v38
    %s41 = scalar_lea.vmem %s0, 1
    %v42 = vld [vmem:[%s41] sm:$0x1]
    %43 = vrot.lane.b32.xlu0 %v42, 16
    %v44 = vpop.permute.xlu0 %43
    %vm45 = vcmask 261248
    %46 = vst.msk [vmem:[#allocation0] sm:$0x1] %vm45, %v44
    %s48 = sshllo.u32 0, 1
    %v50 = vld [vmem:[#allocation0] sm:%s48]
    %s51 = sshllo.u32 0, 1
    %52 = vst [vmem:[%s1] sm:%s51] %v50

// kernel: tile.33
$region0: #{tile.33}
  #allocation2 [shape = 's32[1]{0}', space=sflag, size = 0x4, scoped, tag = 'scoped memory for tile.33']
  %s0 = inlined_call_operand.hbm [shape: f32[16], index: 0, kind: input, shape index: {}]
  %s1 = inlined_call_operand.vmem [shape: f32[8,16], index: 1, kind: output, shape index: {}]
  $region1: #{tile.33} parent=0
    #allocation0 [shape = 'u8[512]{0}', space=vmem, size = 0x400, scoped, tag = 'operand span for operand 0']
    #allocation1 [shape = 's32[1]{0}', space=sflag, size = 0x4, scoped, tag = 'scoped memory for tile.33']
    %2 = vsyncpa [#allocation1], 0
    // Predicated region
    $region2: #{tile.33} parent=1 // pred_check
      _
    $region3: #{tile.33} parent=1 // pred_check_branch
      %4 = sbr.rel (0) target = $region5
    $region4: #{tile.33} parent=1 // pred_region
      %s6 = ssub.s32 16, 16
      %7 = vsyncadd [#allocation1], %s6
      %s9 = sshll.u32 [#allocation0], 4
      %s10 = int_to_ptr.vmem [resolvable:$true] %s9
      %12 = dma.hbm_to_vmem [thread:$0]  %s0, 16, %s10, [#allocation1]
    $region5: #{tile.33} parent=1 // pred_fallthru
      _
    // Predicated region
    $region6: #{tile.33} parent=1 // pred_check
      _
    $region7: #{tile.33} parent=1 // pred_check_branch
      %14 = sbr.rel (0) target = $region9
    $region8: #{tile.33} parent=1 // pred_region
      %15 = dma.done [#allocation1], 16
    $region9: #{tile.33} parent=1 // pred_fallthru
      _
    %v16 = vld [vmem:[#allocation0] ss:$0 sm:$0xff]
    %17 = vst [vmem:[%s1] sm:$0xff] %v16
    %18 = vsyncpa [#allocation1], 1

// kernel: up_forward.1
$region0: #{up_forward.1}
  #allocation0 [shape = 'u32[]', space=smem, size = 0x4, offset = 0x4, fixed_abs, tag = 'smem constant byte address 0x4 - core index']
  #allocation1 [shape = 'u32[144,128]{1,0:T(1,128)}', space=vmem, size = 0x12000, scoped, tag = 'internal scratch']
  #allocation2 [shape = 'bf16[10,16,256]{2,1,0:T(16,128)(2,1)}', space=vmem, size = 0x14000, scoped, tag = 'scratch operand']
  #allocation3 [shape = 'bf16[10,16,128]{2,1,0:T(16,128)(2,1)}', space=vmem, size = 0xa000, scoped, tag = 'scratch operand']
  %s0 = inlined_call_operand.vmem [shape: bf16[2,8,8,256], index: 0, kind: input, shape index: {}]
  %s1 = inlined_call_operand.vmem [shape: bf16[3,3,256,128], index: 1, kind: input, shape index: {}]
  %s2 = inlined_call_operand.vmem [shape: bf16[3,3,128,128], index: 2, kind: input, shape index: {}]
  %s3 = inlined_call_operand.vmem [shape: f32[3,128], index: 3, kind: input, shape index: {}]
  %s4 = inlined_call_operand.vmem [shape: f32[3,128], index: 4, kind: input, shape index: {}]
  %s5 = inlined_call_operand.vmem [shape: f32[128,8], index: 5, kind: input, shape index: {}]
  %s6 = inlined_call_operand.vmem [shape: f32[8,128], index: 6, kind: input, shape index: {}]
  %s7 = inlined_call_operand.vmem [shape: f32[2,8,8,128], index: 7, kind: output, shape index: {}]
  %s8 = sld [smem:[#allocation0]]
  $region61: #{up_forward.1} parent=0
    _
  %s10 = ssub.s32 1, %s8
  %s11 = scalar_select 0, %s10, %s8
  loop: start=0, step=1, limit=4
  $region2: #{up_forward.1} parent=0 // loop_pre_header
    _
  $region3: #{up_forward.1} parent=0 // loop_header
    %s13 = sphi 0, %s17
    %p14 = scmp.ge.s32.totalorder %s13, 4
    %s23 = sphi 0, %s25
    %s26 = sphi 0, %s23
    %s27 = sphi 0, %s26
    %s43 = sphi 0, %s27
    %s47 = sphi 0, %s47
    %s49 = sphi 0, %s47
    %s50 = sphi 0, %s49
    %s64 = sphi 0, %s50
    %s68 = sphi 0, %s68
    %s70 = sphi 0, %s68
    %s71 = sphi 0, %s70
    %s85 = sphi 0, %s71
    %s89 = sphi 0, %s89
    %s91 = sphi 0, %s89
    %s92 = sphi 0, %s91
    %s106 = sphi 0, %s92
    %s110 = sphi 0, %s110
    %s112 = sphi 0, %s110
    %s113 = sphi 0, %s112
    %s127 = sphi 0, %s113
    %s131 = sphi 0, %s131
    %s133 = sphi 0, %s131
    %s134 = sphi 0, %s133
    %s148 = sphi 0, %s134
    %s152 = sphi 0, %s152
    %s154 = sphi 0, %s152
    %s155 = sphi 0, %s154
    %s169 = sphi 0, %s155
    %s175 = sphi 0, %s177
    %s178 = sphi 0, %s175
    %s179 = sphi 0, %s178
    %s195 = sphi 0, %s179
  $region4: #{up_forward.1} parent=0 // loop_header_branch
    %16 = sbr.rel (%p14) target = $region8
  $region5: #{up_forward.1} parent=0 // loop_body
    %s18 = ssub.s32 %s13, 1
    %s19 = ssub.s32 %s13, 2
    %s20 = sadd.s32 %s13, 1
    %s21 = ssub.s32 %s13, %s20
    %p22 = scmp.eq.s32.totalorder %s21, 0
    %s24 = sadd.s32 %s23, 1
    %s25 = scalar_select %p22, %s23, %s24
    %p28 = pneg %p22
    %p29 = scmp.eq.s32.totalorder %s13, 1
    %p30 = por %p28, %p29
    %p31 = scmp.ne.s32.totalorder %s23, %s26
    %p32 = scmp.eq.s32.totalorder %s13, 0
    %p33 = por %p31, %p32
    %p34 = scmp.ne.s32.totalorder %s23, %s26
    %p35 = scmp.eq.s32.totalorder %s18, 1
    %p36 = por %p34, %p35
    %p37 = scmp.ne.s32.totalorder %s26, %s27
    %p38 = scmp.eq.s32.totalorder %s18, 0
    %p39 = por %p37, %p38
    %p40 = scmp.ne.s32.totalorder %s26, %s27
    %p41 = scmp.eq.s32.totalorder %s19, 1
    %p42 = por %p40, %p41
    %p44 = scmp.ne.s32.totalorder %s27, %s43
    %p45 = scmp.eq.s32.totalorder %s19, 0
    %p46 = por %p44, %p45
    %s48 = sadd.s32 %s47, 1
    %p51 = scmp.eq.s32.totalorder %s13, 1
    %p52 = scmp.ne.s32.totalorder %s47, %s49
    %p53 = scmp.eq.s32.totalorder %s13, 0
    %p54 = por %p52, %p53
    %p55 = scmp.ne.s32.totalorder %s47, %s49
    %p56 = scmp.eq.s32.totalorder %s18, 1
    %p57 = por %p55, %p56
    %p58 = scmp.ne.s32.totalorder %s49, %s50
    %p59 = scmp.eq.s32.totalorder %s18, 0
    %p60 = por %p58, %p59
    %p61 = scmp.ne.s32.totalorder %s49, %s50
    %p62 = scmp.eq.s32.totalorder %s19, 1
    %p63 = por %p61, %p62
    %p65 = scmp.ne.s32.totalorder %s50, %s64
    %p66 = scmp.eq.s32.totalorder %s19, 0
    %p67 = por %p65, %p66
    %s69 = sadd.s32 %s68, 1
    %p72 = scmp.eq.s32.totalorder %s13, 1
    %p73 = scmp.ne.s32.totalorder %s68, %s70
    %p74 = scmp.eq.s32.totalorder %s13, 0
    %p75 = por %p73, %p74
    %p76 = scmp.ne.s32.totalorder %s68, %s70
    %p77 = scmp.eq.s32.totalorder %s18, 1
    %p78 = por %p76, %p77
    %p79 = scmp.ne.s32.totalorder %s70, %s71
    %p80 = scmp.eq.s32.totalorder %s18, 0
    %p81 = por %p79, %p80
    %p82 = scmp.ne.s32.totalorder %s70, %s71
    %p83 = scmp.eq.s32.totalorder %s19, 1
    %p84 = por %p82, %p83
    %p86 = scmp.ne.s32.totalorder %s71, %s85
    %p87 = scmp.eq.s32.totalorder %s19, 0
    %p88 = por %p86, %p87
    %s90 = sadd.s32 %s89, 1
    %p93 = scmp.eq.s32.totalorder %s13, 1
    %p94 = scmp.ne.s32.totalorder %s89, %s91
    %p95 = scmp.eq.s32.totalorder %s13, 0
    %p96 = por %p94, %p95
    %p97 = scmp.ne.s32.totalorder %s89, %s91
    %p98 = scmp.eq.s32.totalorder %s18, 1
    %p99 = por %p97, %p98
    %p100 = scmp.ne.s32.totalorder %s91, %s92
    %p101 = scmp.eq.s32.totalorder %s18, 0
    %p102 = por %p100, %p101
    %p103 = scmp.ne.s32.totalorder %s91, %s92
    %p104 = scmp.eq.s32.totalorder %s19, 1
    %p105 = por %p103, %p104
    %p107 = scmp.ne.s32.totalorder %s92, %s106
    %p108 = scmp.eq.s32.totalorder %s19, 0
    %p109 = por %p107, %p108
    %s111 = sadd.s32 %s110, 1
    %p114 = scmp.eq.s32.totalorder %s13, 1
    %p115 = scmp.ne.s32.totalorder %s110, %s112
    %p116 = scmp.eq.s32.totalorder %s13, 0
    %p117 = por %p115, %p116
    %p118 = scmp.ne.s32.totalorder %s110, %s112
    %p119 = scmp.eq.s32.totalorder %s18, 1
    %p120 = por %p118, %p119
    %p121 = scmp.ne.s32.totalorder %s112, %s113
    %p122 = scmp.eq.s32.totalorder %s18, 0
    %p123 = por %p121, %p122
    %p124 = scmp.ne.s32.totalorder %s112, %s113
    %p125 = scmp.eq.s32.totalorder %s19, 1
    %p126 = por %p124, %p125
    %p128 = scmp.ne.s32.totalorder %s113, %s127
    %p129 = scmp.eq.s32.totalorder %s19, 0
    %p130 = por %p128, %p129
    %s132 = sadd.s32 %s131, 1
    %p135 = scmp.eq.s32.totalorder %s13, 1
    %p136 = scmp.ne.s32.totalorder %s131, %s133
    %p137 = scmp.eq.s32.totalorder %s13, 0
    %p138 = por %p136, %p137
    %p139 = scmp.ne.s32.totalorder %s131, %s133
    %p140 = scmp.eq.s32.totalorder %s18, 1
    %p141 = por %p139, %p140
    %p142 = scmp.ne.s32.totalorder %s133, %s134
    %p143 = scmp.eq.s32.totalorder %s18, 0
    %p144 = por %p142, %p143
    %p145 = scmp.ne.s32.totalorder %s133, %s134
    %p146 = scmp.eq.s32.totalorder %s19, 1
    %p147 = por %p145, %p146
    %p149 = scmp.ne.s32.totalorder %s134, %s148
    %p150 = scmp.eq.s32.totalorder %s19, 0
    %p151 = por %p149, %p150
    %s153 = sadd.s32 %s152, 1
    %p156 = scmp.eq.s32.totalorder %s13, 1
    %p157 = scmp.ne.s32.totalorder %s152, %s154
    %p158 = scmp.eq.s32.totalorder %s13, 0
    %p159 = por %p157, %p158
    %p160 = scmp.ne.s32.totalorder %s152, %s154
    %p161 = scmp.eq.s32.totalorder %s18, 1
    %p162 = por %p160, %p161
    %p163 = scmp.ne.s32.totalorder %s154, %s155
    %p164 = scmp.eq.s32.totalorder %s18, 0
    %p165 = por %p163, %p164
    %p166 = scmp.ne.s32.totalorder %s154, %s155
    %p167 = scmp.eq.s32.totalorder %s19, 1
    %p168 = por %p166, %p167
    %p170 = scmp.ne.s32.totalorder %s155, %s169
    %p171 = scmp.eq.s32.totalorder %s19, 0
    %p172 = por %p170, %p171
    %s173 = ssub.s32 %s13, %s20
    %p174 = scmp.eq.s32.totalorder %s173, 0
    %s176 = sadd.s32 %s175, 1
    %s177 = scalar_select %p174, %s175, %s176
    %p180 = pneg %p174
    %p181 = scmp.eq.s32.totalorder %s13, 1
    %p182 = por %p180, %p181
    %p183 = scmp.ne.s32.totalorder %s175, %s178
    %p184 = scmp.eq.s32.totalorder %s13, 0
    %p185 = por %p183, %p184
    %p186 = scmp.ne.s32.totalorder %s175, %s178
    %p187 = scmp.eq.s32.totalorder %s18, 1
    %p188 = por %p186, %p187
    %p189 = scmp.ne.s32.totalorder %s178, %s179
    %p190 = scmp.eq.s32.totalorder %s18, 0
    %p191 = por %p189, %p190
    %p192 = scmp.ne.s32.totalorder %s178, %s179
    %p193 = scmp.eq.s32.totalorder %s19, 1
    %p194 = por %p192, %p193
    %p196 = scmp.ne.s32.totalorder %s179, %s195
    %p197 = scmp.eq.s32.totalorder %s19, 0
    %p198 = por %p196, %p197
    %p199 = scmp.le.s32.totalorder 1, %s13
    %p200 = scmp.lt.s32.totalorder %s13, 3
    %p201 = pnand %p199, %p200
    %p202 = pneg %p201
    // Predicated region
    $region9: #{up_forward.1} parent=5 // pred_check
      _
    $region10: #{up_forward.1} parent=5 // pred_check_branch
      %204 = sbr.rel (%p201) target = $region12
    $region11: #{up_forward.1} parent=5 // pred_region
      %s205 = ssub.s32 %s13, 1
      // Predicated region
      $region13: #{up_forward.1} parent=11 // pred_check
        %p206 = pneg %p60
      $region14: #{up_forward.1} parent=11 // pred_check_branch
        %208 = sbr.rel (%p206) target = $region16
      $region15: #{up_forward.1} parent=11 // pred_region
        _
      $region16: #{up_forward.1} parent=11 // pred_fallthru
        _
      // Predicated region
      $region17: #{up_forward.1} parent=11 // pred_check
        %p209 = pneg %p81
      $region18: #{up_forward.1} parent=11 // pred_check_branch
        %211 = sbr.rel (%p209) target = $region20
      $region19: #{up_forward.1} parent=11 // pred_region
        _
      $region20: #{up_forward.1} parent=11 // pred_fallthru
        _
      // Predicated region
      $region21: #{up_forward.1} parent=11 // pred_check
        %p212 = pneg %p102
      $region22: #{up_forward.1} parent=11 // pred_check_branch
        %214 = sbr.rel (%p212) target = $region24
      $region23: #{up_forward.1} parent=11 // pred_region
        _
      $region24: #{up_forward.1} parent=11 // pred_fallthru
        _
      // Predicated region
      $region25: #{up_forward.1} parent=11 // pred_check
        %p215 = pneg %p123
      $region26: #{up_forward.1} parent=11 // pred_check_branch
        %217 = sbr.rel (%p215) target = $region28
      $region27: #{up_forward.1} parent=11 // pred_region
        _
      $region28: #{up_forward.1} parent=11 // pred_fallthru
        _
      // Predicated region
      $region29: #{up_forward.1} parent=11 // pred_check
        %p218 = pneg %p144
      $region30: #{up_forward.1} parent=11 // pred_check_branch
        %220 = sbr.rel (%p218) target = $region32
      $region31: #{up_forward.1} parent=11 // pred_region
        _
      $region32: #{up_forward.1} parent=11 // pred_fallthru
        _
      // Predicated region
      $region33: #{up_forward.1} parent=11 // pred_check
        %p221 = pneg %p165
      $region34: #{up_forward.1} parent=11 // pred_check_branch
        %223 = sbr.rel (%p221) target = $region36
      $region35: #{up_forward.1} parent=11 // pred_region
        _
      $region36: #{up_forward.1} parent=11 // pred_fallthru
        _
    $region12: #{up_forward.1} parent=5 // pred_fallthru
      _
    %p224 = scmp.lt.s32.totalorder %s13, 2
    // Predicated region
    $region37: #{up_forward.1} parent=5 // pred_check
      %p225 = pneg %p224
    $region38: #{up_forward.1} parent=5 // pred_check_branch
      %227 = sbr.rel (%p225) target = $region40
    $region39: #{up_forward.1} parent=5 // pred_region
      // Predicated region
      $region41: #{up_forward.1} parent=39 // pred_check
        %p228 = pneg %p33
      $region42: #{up_forward.1} parent=39 // pred_check_branch
        %230 = sbr.rel (%p228) target = $region44
      $region43: #{up_forward.1} parent=39 // pred_region
        %p231 = scmp.lt.s32.totalorder %s13, 1
        %s232 = scalar_select %p231, %s13, 1
        %s233 = smul.addr %s232, 16
        %s234 = smul.addr %s233, 4
        %s235 = scalar_lea.vmem %s0, %s234
      $region44: #{up_forward.1} parent=39 // pred_fallthru
        _
    $region40: #{up_forward.1} parent=5 // pred_fallthru
      _
    %p236 = scmp.le.s32.totalorder 1, %s13
    %p237 = scmp.lt.s32.totalorder %s13, 3
    %p238 = pnand %p236, %p237
    %p239 = pneg %p238
    // Predicated region
    $region45: #{up_forward.1} parent=5 // pred_check
      _
    $region46: #{up_forward.1} parent=5 // pred_check_branch
      %241 = sbr.rel (%p238) target = $region48
    $region47: #{up_forward.1} parent=5 // pred_region
      %s242 = ssub.s32 %s13, 1
      %p243 = scmp.lt.s32.totalorder %s18, 1
      %s244 = scalar_select %p243, %s18, 1
      %s245 = smul.addr %s244, 16
      %s246 = smul.addr %s245, 4
      %s247 = scalar_lea.vmem %s0, %s246
      %p248 = pneg %p39
      %p249 = pneg %p36
      %p250 = pneg %p60
      %p251 = pneg %p57
      %p252 = pneg %p81
      %p253 = pneg %p78
      %p254 = pneg %p102
      %p255 = pneg %p99
      %p256 = pneg %p123
      %p257 = pneg %p120
      %p258 = pneg %p144
      %p259 = pneg %p141
      %p260 = pneg %p165
      %p261 = pneg %p162
      %p262 = pneg %p191
      %p263 = pneg %p188
      %p264 = scmp.lt.s32.totalorder %s18, 1
      %s265 = scalar_select %p264, %s18, 1
      %s266 = smul.addr %s265, 8
      %s267 = smul.addr %s266, 8
      %s268 = scalar_lea.vmem %s7, %s267
      %p269 = scmp.lt.s32.totalorder %s18, 1
      %s270 = scalar_select %p269, %s18, 1
      %s271 = smul.addr %s270, 16
      %s272 = smul.addr %s271, 4
      %s273 = scalar_lea.vmem %s0, %s272
      %p274 = scmp.lt.s32.totalorder %s18, 1
      %s275 = scalar_select %p274, %s18, 1
      %s276 = smul.addr %s275, 8
      %s277 = smul.addr %s276, 8
      %s278 = scalar_lea.vmem %s7, %s277
      %280 = vst [vmem:[#allocation2] sm:$0xff] 0
      %281 = vst [vmem:[#allocation2 + $0x8] sm:$0xff] 0
      %s282 = scalar_lea.vmem [#allocation2], 144
      %283 = vst [vmem:[%s282] sm:$0xff] 0
      %284 = vst [vmem:[%s282 + $0x8] sm:$0xff] 0
      %s285 = scalar_lea.vmem [#allocation2], 16
      %286 = vst [vmem:[%s285] sm:$0xf0] 0
      %287 = vst [vmem:[%s285 + $0x8] sm:$0xf0] 0
      %288 = vst [vmem:[%s285 + $0x10] sm:$0xf0] 0
      %289 = vst [vmem:[%s285 + $0x18] sm:$0xf0] 0
      %290 = vst [vmem:[%s285 + $0x20] sm:$0xf0] 0
      %291 = vst [vmem:[%s285 + $0x28] sm:$0xf0] 0
      %292 = vst [vmem:[%s285 + $0x30] sm:$0xf0] 0
      %293 = vst [vmem:[%s285 + $0x38] sm:$0xf0] 0
      %294 = vst [vmem:[%s285 + $0x40] sm:$0xf0] 0
      %295 = vst [vmem:[%s285 + $0x48] sm:$0xf0] 0
      %296 = vst [vmem:[%s285 + $0x50] sm:$0xf0] 0
      %297 = vst [vmem:[%s285 + $0x58] sm:$0xf0] 0
      %298 = vst [vmem:[%s285 + $0x60] sm:$0xf0] 0
      %299 = vst [vmem:[%s285 + $0x68] sm:$0xf0] 0
      %300 = vst [vmem:[%s285 + $0x70] sm:$0xf0] 0
      %301 = vst [vmem:[%s285 + $0x78] sm:$0xf0] 0
      %302 = vst [vmem:[#allocation3] sm:$0xff] 0
      %s303 = scalar_lea.vmem [#allocation3], 72
      %304 = vst [vmem:[%s303] sm:$0xff] 0
      %s305 = scalar_lea.vmem [#allocation3], 8
      %306 = vst [vmem:[%s305] sm:$0xf0] 0
      %307 = vst [vmem:[%s305 + $0x8] sm:$0xf0] 0
      %308 = vst [vmem:[%s305 + $0x10] sm:$0xf0] 0
      %309 = vst [vmem:[%s305 + $0x18] sm:$0xf0] 0
      %310 = vst [vmem:[%s305 + $0x20] sm:$0xf0] 0
      %311 = vst [vmem:[%s305 + $0x28] sm:$0xf0] 0
      %312 = vst [vmem:[%s305 + $0x30] sm:$0xf0] 0
      %313 = vst [vmem:[%s305 + $0x38] sm:$0xf0] 0
      %v314 = vld [vmem:[%s273] sm:$0xff]
      %v315 = vld [vmem:[%s273 + $0x8] sm:$0xff]
      %v316 = vld [vmem:[%s273 + $0x10] sm:$0xff]
      %v317 = vld [vmem:[%s273 + $0x18] sm:$0xff]
      %v318 = vld [vmem:[%s273 + $0x20] sm:$0xff]
      %v319 = vld [vmem:[%s273 + $0x28] sm:$0xff]
      %v320 = vld [vmem:[%s273 + $0x30] sm:$0xff]
      %v321 = vld [vmem:[%s273 + $0x38] sm:$0xff]
      %v330 = vunpack.c.l.b16 %v314
      %v331 = vunpack.c.h.b16 %v314
      %v332 = vunpack.c.l.b16 %v315
      %v333 = vunpack.c.h.b16 %v315
      %v334 = vunpack.c.l.b16 %v316
      %v335 = vunpack.c.h.b16 %v316
      %v336 = vunpack.c.l.b16 %v317
      %v337 = vunpack.c.h.b16 %v317
      %v338 = vunpack.c.l.b16 %v318
      %v339 = vunpack.c.h.b16 %v318
      %v340 = vunpack.c.l.b16 %v319
      %v341 = vunpack.c.h.b16 %v319
      %v342 = vunpack.c.l.b16 %v320
      %v343 = vunpack.c.h.b16 %v320
      %v344 = vunpack.c.l.b16 %v321
      %v345 = vunpack.c.h.b16 %v321
      %v346 = vpack.c.b16 %v330, %v330
      %v347 = vpack.c.b16 %v331, %v331
      %v348 = vpack.c.b16 %v332, %v332
      %v349 = vpack.c.b16 %v333, %v333
      %v350 = vpack.c.b16 %v334, %v334
      %v351 = vpack.c.b16 %v335, %v335
      %v352 = vpack.c.b16 %v336, %v336
      %v353 = vpack.c.b16 %v337, %v337
      %v354 = vpack.c.b16 %v338, %v338
      %v355 = vpack.c.b16 %v339, %v339
      %v356 = vpack.c.b16 %v340, %v340
      %v357 = vpack.c.b16 %v341, %v341
      %v358 = vpack.c.b16 %v342, %v342
      %v359 = vpack.c.b16 %v343, %v343
      %v360 = vpack.c.b16 %v344, %v344
      %v361 = vpack.c.b16 %v345, %v345
      %378 = vst [vmem:[%s285] sm:$0xf] %v346
      %379 = vst [vmem:[%s285 + $0x8] sm:$0xf] %v347
      %380 = vst [vmem:[%s285 + $0x10] sm:$0xf] %v348
      %381 = vst [vmem:[%s285 + $0x18] sm:$0xf] %v349
      %382 = vst [vmem:[%s285 + $0x20] sm:$0xf] %v350
      %383 = vst [vmem:[%s285 + $0x28] sm:$0xf] %v351
      %384 = vst [vmem:[%s285 + $0x30] sm:$0xf] %v352
      %385 = vst [vmem:[%s285 + $0x38] sm:$0xf] %v353
      %386 = vst [vmem:[%s285 + $0x40] sm:$0xf] %v354
      %387 = vst [vmem:[%s285 + $0x48] sm:$0xf] %v355
      %388 = vst [vmem:[%s285 + $0x50] sm:$0xf] %v356
      %389 = vst [vmem:[%s285 + $0x58] sm:$0xf] %v357
      %390 = vst [vmem:[%s285 + $0x60] sm:$0xf] %v358
      %391 = vst [vmem:[%s285 + $0x68] sm:$0xf] %v359
      %392 = vst [vmem:[%s285 + $0x70] sm:$0xf] %v360
      %393 = vst [vmem:[%s285 + $0x78] sm:$0xf] %v361
      %v394 = vld [vmem:[#allocation2] sm:$0xff]
      %v395 = vld [vmem:[#allocation2 + $0x8] sm:$0xff]
      %v396 = vld [vmem:[#allocation2 + $0x10] sm:$0xff]
      %v397 = vld [vmem:[#allocation2 + $0x18] sm:$0xff]
      %v398 = vld [vmem:[#allocation2 + $0x20] sm:$0xff]
      %v399 = vld [vmem:[#allocation2 + $0x28] sm:$0xff]
      %v400 = vld [vmem:[#allocation2 + $0x30] sm:$0xff]
      %v401 = vld [vmem:[#allocation2 + $0x38] sm:$0xff]
      %v402 = vld [vmem:[#allocation2 + $0x40] sm:$0xff]
      %v403 = vld [vmem:[#allocation2 + $0x48] sm:$0xff]
      %v404 = vld [vmem:[#allocation2 + $0x50] sm:$0xff]
      %v405 = vld [vmem:[#allocation2 + $0x58] sm:$0xff]
      %v406 = vld [vmem:[#allocation2 + $0x60] sm:$0xff]
      %v407 = vld [vmem:[#allocation2 + $0x68] sm:$0xff]
      %v408 = vld [vmem:[#allocation2 + $0x70] sm:$0xff]
      %v409 = vld [vmem:[#allocation2 + $0x78] sm:$0xff]
      %v410 = vld [vmem:[%s1] sm:$0xf]
      %v411 = vld [vmem:[%s1 + $0x4] sm:$0xf]
      %v412 = vld [vmem:[%s1 + $0x8] sm:$0xf]
      %v413 = vld [vmem:[%s1 + $0xc] sm:$0xf]
      %v414 = vld [vmem:[%s1 + $0x10] sm:$0xf]
      %v415 = vld [vmem:[%s1 + $0x14] sm:$0xf]
      %v416 = vld [vmem:[%s1 + $0x18] sm:$0xf]
      %v417 = vld [vmem:[%s1 + $0x1c] sm:$0xf]
      %v418 = vld [vmem:[%s1 + $0x20] sm:$0xf]
      %v419 = vld [vmem:[%s1 + $0x24] sm:$0xf]
      %v420 = vld [vmem:[%s1 + $0x28] sm:$0xf]
      %v421 = vld [vmem:[%s1 + $0x2c] sm:$0xf]
      %v422 = vld [vmem:[%s1 + $0x30] sm:$0xf]
      %v423 = vld [vmem:[%s1 + $0x34] sm:$0xf]
      %v424 = vld [vmem:[%s1 + $0x38] sm:$0xf]
      %v425 = vld [vmem:[%s1 + $0x3c] sm:$0xf]
      %v426 = vld [vmem:[%s1 + $0x40] sm:$0xf]
      %v427 = vld [vmem:[%s1 + $0x44] sm:$0xf]
      %v428 = vld [vmem:[%s1 + $0x48] sm:$0xf]
      %v429 = vld [vmem:[%s1 + $0x4c] sm:$0xf]
      %v430 = vld [vmem:[%s1 + $0x50] sm:$0xf]
      %v431 = vld [vmem:[%s1 + $0x54] sm:$0xf]
      %v432 = vld [vmem:[%s1 + $0x58] sm:$0xf]
      %v433 = vld [vmem:[%s1 + $0x5c] sm:$0xf]
      %v434 = vld [vmem:[%s1 + $0x60] sm:$0xf]
      %v435 = vld [vmem:[%s1 + $0x64] sm:$0xf]
      %v436 = vld [vmem:[%s1 + $0x68] sm:$0xf]
      %v437 = vld [vmem:[%s1 + $0x6c] sm:$0xf]
      %v438 = vld [vmem:[%s1 + $0x70] sm:$0xf]
      %v439 = vld [vmem:[%s1 + $0x74] sm:$0xf]
      %v440 = vld [vmem:[%s1 + $0x78] sm:$0xf]
      %v441 = vld [vmem:[%s1 + $0x7c] sm:$0xf]
      %v442 = vld [vmem:[%s285] sm:$0xff]
      %v443 = vld [vmem:[%s285 + $0x8] sm:$0xff]
      %v444 = vld [vmem:[%s285 + $0x10] sm:$0xff]
      %v445 = vld [vmem:[%s285 + $0x18] sm:$0xff]
      %v446 = vld [vmem:[%s285 + $0x20] sm:$0xff]
      %v447 = vld [vmem:[%s285 + $0x28] sm:$0xff]
      %v448 = vld [vmem:[%s285 + $0x30] sm:$0xff]
      %v449 = vld [vmem:[%s285 + $0x38] sm:$0xff]
      %v450 = vld [vmem:[%s285 + $0x40] sm:$0xff]
      %v451 = vld [vmem:[%s285 + $0x48] sm:$0xff]
      %v452 = vld [vmem:[%s285 + $0x50] sm:$0xff]
      %v453 = vld [vmem:[%s285 + $0x58] sm:$0xff]
      %v454 = vld [vmem:[%s285 + $0x60] sm:$0xff]
      %v455 = vld [vmem:[%s285 + $0x68] sm:$0xff]
      %v456 = vld [vmem:[%s285 + $0x70] sm:$0xff]
      %v457 = vld [vmem:[%s285 + $0x78] sm:$0xff]
      %s458 = scalar_lea.vmem %s1, 384
      %v459 = vld [vmem:[%s458] sm:$0xf]
      %v460 = vld [vmem:[%s458 + $0x4] sm:$0xf]
      %v461 = vld [vmem:[%s458 + $0x8] sm:$0xf]
      %v462 = vld [vmem:[%s458 + $0xc] sm:$0xf]
      %v463 = vld [vmem:[%s458 + $0x10] sm:$0xf]
      %v464 = vld [vmem:[%s458 + $0x14] sm:$0xf]
      %v465 = vld [vmem:[%s458 + $0x18] sm:$0xf]
      %v466 = vld [vmem:[%s458 + $0x1c] sm:$0xf]
      %v467 = vld [vmem:[%s458 + $0x20] sm:$0xf]
      %v468 = vld [vmem:[%s458 + $0x24] sm:$0xf]
      %v469 = vld [vmem:[%s458 + $0x28] sm:$0xf]
      %v470 = vld [vmem:[%s458 + $0x2c] sm:$0xf]
      %v471 = vld [vmem:[%s458 + $0x30] sm:$0xf]
      %v472 = vld [vmem:[%s458 + $0x34] sm:$0xf]
      %v473 = vld [vmem:[%s458 + $0x38] sm:$0xf]
      %v474 = vld [vmem:[%s458 + $0x3c] sm:$0xf]
      %v475 = vld [vmem:[%s458 + $0x40] sm:$0xf]
      %v476 = vld [vmem:[%s458 + $0x44] sm:$0xf]
      %v477 = vld [vmem:[%s458 + $0x48] sm:$0xf]
      %v478 = vld [vmem:[%s458 + $0x4c] sm:$0xf]
      %v479 = vld [vmem:[%s458 + $0x50] sm:$0xf]
      %v480 = vld [vmem:[%s458 + $0x54] sm:$0xf]
      %v481 = vld [vmem:[%s458 + $0x58] sm:$0xf]
      %v482 = vld [vmem:[%s458 + $0x5c] sm:$0xf]
      %v483 = vld [vmem:[%s458 + $0x60] sm:$0xf]
      %v484 = vld [vmem:[%s458 + $0x64] sm:$0xf]
      %v485 = vld [vmem:[%s458 + $0x68] sm:$0xf]
      %v486 = vld [vmem:[%s458 + $0x6c] sm:$0xf]
      %v487 = vld [vmem:[%s458 + $0x70] sm:$0xf]
      %v488 = vld [vmem:[%s458 + $0x74] sm:$0xf]
      %v489 = vld [vmem:[%s458 + $0x78] sm:$0xf]
      %v490 = vld [vmem:[%s458 + $0x7c] sm:$0xf]
      %v523 = vunpack.c.l.b16 %v459
      %v524 = vunpack.c.l.b16 %v460
      %v525 = vunpack.c.l.b16 %v461
      %v526 = vunpack.c.l.b16 %v462
      %v527 = vunpack.c.l.b16 %v463
      %v528 = vunpack.c.l.b16 %v464
      %v529 = vunpack.c.l.b16 %v465
      %v530 = vunpack.c.l.b16 %v466
      %v531 = vunpack.c.l.b16 %v467
      %v532 = vunpack.c.l.b16 %v468
      %v533 = vunpack.c.l.b16 %v469
      %v534 = vunpack.c.l.b16 %v470
      %v535 = vunpack.c.l.b16 %v471
      %v536 = vunpack.c.l.b16 %v472
      %v537 = vunpack.c.l.b16 %v473
      %v538 = vunpack.c.l.b16 %v474
      %v539 = vunpack.c.l.b16 %v475
      %v540 = vunpack.c.l.b16 %v476
      %v541 = vunpack.c.l.b16 %v477
      %v542 = vunpack.c.l.b16 %v478
      %v543 = vunpack.c.l.b16 %v479
      %v544 = vunpack.c.l.b16 %v480
      %v545 = vunpack.c.l.b16 %v481
      %v546 = vunpack.c.l.b16 %v482
      %v547 = vunpack.c.l.b16 %v483
      %v548 = vunpack.c.l.b16 %v484
      %v549 = vunpack.c.l.b16 %v485
      %v550 = vunpack.c.l.b16 %v486
      %v551 = vunpack.c.l.b16 %v487
      %v552 = vunpack.c.l.b16 %v488
      %v553 = vunpack.c.l.b16 %v489
      %v554 = vunpack.c.l.b16 %v490
      %v555 = vpack.c.b16 %v524, %v523
      %v556 = vpack.c.b16 %v526, %v525
      %v557 = vpack.c.b16 %v528, %v527
      %v558 = vpack.c.b16 %v530, %v529
      %v559 = vpack.c.b16 %v532, %v531
      %v560 = vpack.c.b16 %v534, %v533
      %v561 = vpack.c.b16 %v536, %v535
      %v562 = vpack.c.b16 %v538, %v537
      %v563 = vpack.c.b16 %v540, %v539
      %v564 = vpack.c.b16 %v542, %v541
      %v565 = vpack.c.b16 %v544, %v543
      %v566 = vpack.c.b16 %v546, %v545
      %v567 = vpack.c.b16 %v548, %v547
      %v568 = vpack.c.b16 %v550, %v549
      %v569 = vpack.c.b16 %v552, %v551
      %v570 = vpack.c.b16 %v554, %v553
      %587 = vmatprep.subr.bf16.mxu0 0
      %588 = vmatpush1.bf16.msra.mxu0 %v555
      %589 = vmatprep.subr.bf16.mxu0 0
      %590 = vmatpush1.bf16.msra.mxu0 %v556
      %591 = vmatprep.subr.bf16.mxu0 0
      %592 = vmatpush1.bf16.msra.mxu0 %v557
      %593 = vmatprep.subr.bf16.mxu0 0
      %594 = vmatpush1.bf16.msra.mxu0 %v558
      %595 = vmatprep.subr.bf16.mxu0 0
      %596 = vmatpush1.bf16.msra.mxu0 %v559
      %597 = vmatprep.subr.bf16.mxu0 0
      %598 = vmatpush1.bf16.msra.mxu0 %v560
      %599 = vmatprep.subr.bf16.mxu0 0
      %600 = vmatpush1.bf16.msra.mxu0 %v561
      %601 = vmatprep.subr.bf16.mxu0 0
      %602 = vmatpush1.bf16.msra.mxu0 %v562
      %603 = vmatprep.subr.bf16.mxu0 0
      %604 = vmatpush1.bf16.msra.mxu0 %v563
      %605 = vmatprep.subr.bf16.mxu0 0
      %606 = vmatpush1.bf16.msra.mxu0 %v564
      %607 = vmatprep.subr.bf16.mxu0 0
      %608 = vmatpush1.bf16.msra.mxu0 %v565
      %609 = vmatprep.subr.bf16.mxu0 0
      %610 = vmatpush1.bf16.msra.mxu0 %v566
      %611 = vmatprep.subr.bf16.mxu0 0
      %612 = vmatpush1.bf16.msra.mxu0 %v567
      %613 = vmatprep.subr.bf16.mxu0 0
      %614 = vmatpush1.bf16.msra.mxu0 %v568
      %615 = vmatprep.subr.bf16.mxu0 0
      %616 = vmatpush1.bf16.msra.mxu0 %v569
      %617 = vmatprep.subr.bf16.mxu0 0
      %618 = vmatpush1.bf16.msra.mxu0 %v570
      %619 = vmatprep.mubr.bf16.mxu0 %v443
      %620 = vmatmul.mubr.bf16.gmra.mrb[0].mxu0 %v442
      %v621 = vpop.f32.mrb[0].mxu0
      %v622 = vadd.f32 0.0, %v621
      %v623 = vpop.f32.mrb[0].mxu0
      %v624 = vpop.f32.mrb[0].mxu0
      %v625 = vadd.f32 0.0, %v624
      %v626 = vpop.f32.mrb[0].mxu0
      %627 = vmatprep.mubr.bf16.mxu0 %v445
      %628 = vmatmul.mubr.bf16.gmra.mrb[0].mxu0 %v444
      %v629 = vpop.f32.mrb[0].mxu0
      %v630 = vadd.f32 0.0, %v629
      %v631 = vpop.f32.mrb[0].mxu0
      %v632 = vpop.f32.mrb[0].mxu0
      %v633 = vadd.f32 0.0, %v632
      %v634 = vpop.f32.mrb[0].mxu0
      %635 = vmatprep.mubr.bf16.mxu0 %v447
      %636 = vmatmul.mubr.bf16.gmra.mrb[0].mxu0 %v446
      %v637 = vpop.f32.mrb[0].mxu0
      %v638 = vadd.f32 0.0, %v637
      %v639 = vpop.f32.mrb[0].mxu0
      %v640 = vpop.f32.mrb[0].mxu0
      %v641 = vadd.f32 0.0, %v640
      %v642 = vpop.f32.mrb[0].mxu0
      %643 = vmatprep.mubr.bf16.mxu0 %v449
      %644 = vmatmul.mubr.bf16.gmra.mrb[0].mxu0 %v448
      %v645 = vpop.f32.mrb[0].mxu0
      %v646 = vadd.f32 0.0, %v645
      %v647 = vpop.f32.mrb[0].mxu0
      %v648 = vpop.f32.mrb[0].mxu0
      %v649 = vadd.f32 0.0, %v648
      %v650 = vpop.f32.mrb[0].mxu0
      %651 = vmatprep.mubr.bf16.mxu0 %v451
      %652 = vmatmul.mubr.bf16.gmra.mrb[0].mxu0 %v450
      %v653 = vpop.f32.mrb[0].mxu0
      %v654 = vadd.f32 0.0, %v653
      %v655 = vpop.f32.mrb[0].mxu0
      %v656 = vpop.f32.mrb[0].mxu0
      %v657 = vadd.f32 0.0, %v656
      %v658 = vpop.f32.mrb[0].mxu0
      %659 = vmatprep.mubr.bf16.mxu0 %v453
      %660 = vmatmul.mubr.bf16.gmra.mrb[0].mxu0 %v452
      %v661 = vpop.f32.mrb[0].mxu0
      %v662 = vadd.f32 0.0, %v661
      %v663 = vpop.f32.mrb[0].mxu0
      %v664 = vpop.f32.mrb[0].mxu0
      %v665 = vadd.f32 0.0, %v664
      %v666 = vpop.f32.mrb[0].mxu0
      %667 = vmatprep.mubr.bf16.mxu0 %v455
      %668 = vmatmul.mubr.bf16.gmra.mrb[0].mxu0 %v454
      %v669 = vpop.f32.mrb[0].mxu0
      %v670 = vadd.f32 0.0, %v669
      %v671 = vpop.f32.mrb[0].mxu0
      %v672 = vpop.f32.mrb[0].mxu0
      %v673 = vadd.f32 0.0, %v672
      %v674 = vpop.f32.mrb[0].mxu0
      %675 = vmatprep.mubr.bf16.mxu0 %v457
      %676 = vmatmul.mubr.bf16.gmra.mrb[0].mxu0 %v456
      %v677 = vpop.f32.mrb[0].mxu0
      %v678 = vadd.f32 0.0, %v677
      %v679 = vpop.f32.mrb[0].mxu0
      %v680 = vpop.f32.mrb[0].mxu0
      %v681 = vadd.f32 0.0, %v680
      %v682 = vpop.f32.mrb[0].mxu0
      %683 = vdwg.mxu0
      %v716 = vunpack.c.l.b16 %v410
      %v717 = vunpack.c.l.b16 %v411
      %v718 = vunpack.c.l.b16 %v412
      %v719 = vunpack.c.l.b16 %v413
      %v720 = vunpack.c.l.b16 %v414
      %v721 = vunpack.c.l.b16 %v415
      %v722 = vunpack.c.l.b16 %v416
      %v723 = vunpack.c.l.b16 %v417
      %v724 = vunpack.c.l.b16 %v418
      %v725 = vunpack.c.l.b16 %v419
      %v726 = vunpack.c.l.b16 %v420
      %v727 = vunpack.c.l.b16 %v421
      %v728 = vunpack.c.l.b16 %v422
      %v729 = vunpack.c.l.b16 %v423
      %v730 = vunpack.c.l.b16 %v424
      %v731 = vunpack.c.l.b16 %v425
      %v732 = vunpack.c.l.b16 %v426
      %v733 = vunpack.c.l.b16 %v427
      %v734 = vunpack.c.l.b16 %v428
      %v735 = vunpack.c.l.b16 %v429
      %v736 = vunpack.c.l.b16 %v430
      %v737 = vunpack.c.l.b16 %v431
      %v738 = vunpack.c.l.b16 %v432
      %v739 = vunpack.c.l.b16 %v433
      %v740 = vunpack.c.l.b16 %v434
      %v741 = vunpack.c.l.b16 %v435
      %v742 = vunpack.c.l.b16 %v436
      %v743 = vunpack.c.l.b16 %v437
      %v744 = vunpack.c.l.b16 %v438
      %v745 = vunpack.c.l.b16 %v439
      %v746 = vunpack.c.l.b16 %v440
      %v747 = vunpack.c.l.b16 %v441
      %v748 = vpack.c.b16 %v717, %v716
      %v749 = vpack.c.b16 %v719, %v718
      %v750 = vpack.c.b16 %v721, %v720
      %v751 = vpack.c.b16 %v723, %v722
      %v752 = vpack.c.b16 %v725, %v724
      %v753 = vpack.c.b16 %v727, %v726
      %v754 = vpack.c.b16 %v729, %v728
      %v755 = vpack.c.b16 %v731, %v730
      %v756 = vpack.c.b16 %v733, %v732
      %v757 = vpack.c.b16 %v735, %v734
      %v758 = vpack.c.b16 %v737, %v736
      %v759 = vpack.c.b16 %v739, %v738
      %v760 = vpack.c.b16 %v741, %v740
      %v761 = vpack.c.b16 %v743, %v742
      %v762 = vpack.c.b16 %v745, %v744
      %v763 = vpack.c.b16 %v747, %v746
      %780 = vmatprep.subr.bf16.mxu0 0
      %781 = vmatpush1.bf16.msra.mxu0 %v748
      %782 = vmatprep.subr.bf16.mxu0 0
      %783 = vmatpush1.bf16.msra.mxu0 %v749
      %784 = vmatprep.subr.bf16.mxu0 0
      %785 = vmatpush1.bf16.msra.mxu0 %v750
      %786 = vmatprep.subr.bf16.mxu0 0
      %787 = vmatpush1.bf16.msra.mxu0 %v751
      %788 = vmatprep.subr.bf16.mxu0 0
      %789 = vmatpush1.bf16.msra.mxu0 %v752
      %790 = vmatprep.subr.bf16.mxu0 0
      %791 = vmatpush1.bf16.msra.mxu0 %v753
      %792 = vmatprep.subr.bf16.mxu0 0
      %793 = vmatpush1.bf16.msra.mxu0 %v754
      %794 = vmatprep.subr.bf16.mxu0 0
      %795 = vmatpush1.bf16.msra.mxu0 %v755
      %796 = vmatprep.subr.bf16.mxu0 0
      %797 = vmatpush1.bf16.msra.mxu0 %v756
      %798 = vmatprep.subr.bf16.mxu0 0
      %799 = vmatpush1.bf16.msra.mxu0 %v757
      %800 = vmatprep.subr.bf16.mxu0 0
      %801 = vmatpush1.bf16.msra.mxu0 %v758
      %802 = vmatprep.subr.bf16.mxu0 0
      %803 = vmatpush1.bf16.msra.mxu0 %v759
      %804 = vmatprep.subr.bf16.mxu0 0
      %805 = vmatpush1.bf16.msra.mxu0 %v760
      %806 = vmatprep.subr.bf16.mxu0 0
      %807 = vmatpush1.bf16.msra.mxu0 %v761
      %808 = vmatprep.subr.bf16.mxu0 0
      %809 = vmatpush1.bf16.msra.mxu0 %v762
      %810 = vmatprep.subr.bf16.mxu0 0
      %811 = vmatpush1.bf16.msra.mxu0 %v763
      %812 = vmatprep.mubr.bf16.mxu0 %v395
      %813 = vmatmul.mubr.bf16.gmra.mrb[0].mxu0 %v394
      %v814 = vpop.f32.mrb[0].mxu0
      %v815 = vadd.f32 %v622, %v814
      %v816 = vpop.f32.mrb[0].mxu0
      %v817 = vpop.f32.mrb[0].mxu0
      %v818 = vadd.f32 %v625, %v817
      %v819 = vpop.f32.mrb[0].mxu0
      %820 = vmatprep.mubr.bf16.mxu0 %v397
      %821 = vmatmul.mubr.bf16.gmra.mrb[0].mxu0 %v396
      %v822 = vpop.f32.mrb[0].mxu0
      %v823 = vadd.f32 %v630, %v822
      %v824 = vpop.f32.mrb[0].mxu0
      %v825 = vpop.f32.mrb[0].mxu0
      %v826 = vadd.f32 %v633, %v825
      %v827 = vpop.f32.mrb[0].mxu0
      %828 = vmatprep.mubr.bf16.mxu0 %v399
      %829 = vmatmul.mubr.bf16.gmra.mrb[0].mxu0 %v398
      %v830 = vpop.f32.mrb[0].mxu0
      %v831 = vadd.f32 %v638, %v830
      %v832 = vpop.f32.mrb[0].mxu0
      %v833 = vpop.f32.mrb[0].mxu0
      %v834 = vadd.f32 %v641, %v833
      %v835 = vpop.f32.mrb[0].mxu0
      %836 = vmatprep.mubr.bf16.mxu0 %v401
      %837 = vmatmul.mubr.bf16.gmra.mrb[0].mxu0 %v400
      %v838 = vpop.f32.mrb[0].mxu0
      %v839 = vadd.f32 %v646, %v838
      %v840 = vpop.f32.mrb[0].mxu0
      %v841 = vpop.f32.mrb[0].mxu0
      %v842 = vadd.f32 %v649, %v841
      %v843 = vpop.f32.mrb[0].mxu0
      %844 = vmatprep.mubr.bf16.mxu0 %v403
      %845 = vmatmul.mubr.bf16.gmra.mrb[0].mxu0 %v402
      %v846 = vpop.f32.mrb[0].mxu0
      %v847 = vadd.f32 %v654, %v846
      %v848 = vpop.f32.mrb[0].mxu0
      %v849 = vpop.f32.mrb[0].mxu0
      %v850 = vadd.f32 %v657, %v849
      %v851 = vpop.f32.mrb[0].mxu0
      %852 = vmatprep.mubr.bf16.mxu0 %v405
      %853 = vmatmul.mubr.bf16.gmra.mrb[0].mxu0 %v404
      %v854 = vpop.f32.mrb[0].mxu0
      %v855 = vadd.f32 %v662, %v854
      %v856 = vpop.f32.mrb[0].mxu0
      %v857 = vpop.f32.mrb[0].mxu0
      %v858 = vadd.f32 %v665, %v857
      %v859 = vpop.f32.mrb[0].mxu0
      %860 = vmatprep.mubr.bf16.mxu0 %v407
      %861 = vmatmul.mubr.bf16.gmra.mrb[0].mxu0 %v406
      %v862 = vpop.f32.mrb[0].mxu0
      %v863 = vadd.f32 %v670, %v862
      %v864 = vpop.f32.mrb[0].mxu0
      %v865 = vpop.f32.mrb[0].mxu0
      %v866 = vadd.f32 %v673, %v865
      %v867 = vpop.f32.mrb[0].mxu0
      %868 = vmatprep.mubr.bf16.mxu0 %v409
      %869 = vmatmul.mubr.bf16.gmra.mrb[0].mxu0 %v408
      %v870 = vpop.f32.mrb[0].mxu0
      %v871 = vadd.f32 %v678, %v870
      %v872 = vpop.f32.mrb[0].mxu0
      %v873 = vpop.f32.mrb[0].mxu0
      %v874 = vadd.f32 %v681, %v873
      %v875 = vpop.f32.mrb[0].mxu0
      %876 = vdwg.mxu0
      %s877 = scalar_lea.vmem [#allocation2], 32
      %v878 = vld [vmem:[%s877] sm:$0xff]
      %v879 = vld [vmem:[%s877 + $0x8] sm:$0xff]
      %v880 = vld [vmem:[%s877 + $0x10] sm:$0xff]
      %v881 = vld [vmem:[%s877 + $0x18] sm:$0xff]
      %v882 = vld [vmem:[%s877 + $0x20] sm:$0xff]
      %v883 = vld [vmem:[%s877 + $0x28] sm:$0xff]
      %v884 = vld [vmem:[%s877 + $0x30] sm:$0xff]
      %v885 = vld [vmem:[%s877 + $0x38] sm:$0xff]
      %v886 = vld [vmem:[%s877 + $0x40] sm:$0xff]
      %v887 = vld [vmem:[%s877 + $0x48] sm:$0xff]
      %v888 = vld [vmem:[%s877 + $0x50] sm:$0xff]
      %v889 = vld [vmem:[%s877 + $0x58] sm:$0xff]
      %v890 = vld [vmem:[%s877 + $0x60] sm:$0xff]
      %v891 = vld [vmem:[%s877 + $0x68] sm:$0xff]
      %v892 = vld [vmem:[%s877 + $0x70] sm:$0xff]
      %v893 = vld [vmem:[%s877 + $0x78] sm:$0xff]
      %s894 = scalar_lea.vmem %s1, 768
      %v895 = vld [vmem:[%s894] sm:$0xf]
      %v896 = vld [vmem:[%s894 + $0x4] sm:$0xf]
      %v897 = vld [vmem:[%s894 + $0x8] sm:$0xf]
      %v898 = vld [vmem:[%s894 + $0xc] sm:$0xf]
      %v899 = vld [vmem:[%s894 + $0x10] sm:$0xf]
      %v900 = vld [vmem:[%s894 + $0x14] sm:$0xf]
      %v901 = vld [vmem:[%s894 + $0x18] sm:$0xf]
      %v902 = vld [vmem:[%s894 + $0x1c] sm:$0xf]
      %v903 = vld [vmem:[%s894 + $0x20] sm:$0xf]
      %v904 = vld [vmem:[%s894 + $0x24] sm:$0xf]
      %v905 = vld [vmem:[%s894 + $0x28] sm:$0xf]
      %v906 = vld [vmem:[%s894 + $0x2c] sm:$0xf]
      %v907 = vld [vmem:[%s894 + $0x30] sm:$0xf]
      %v908 = vld [vmem:[%s894 + $0x34] sm:$0xf]
      %v909 = vld [vmem:[%s894 + $0x38] sm:$0xf]
      %v910 = vld [vmem:[%s894 + $0x3c] sm:$0xf]
      %v911 = vld [vmem:[%s894 + $0x40] sm:$0xf]
      %v912 = vld [vmem:[%s894 + $0x44] sm:$0xf]
      %v913 = vld [vmem:[%s894 + $0x48] sm:$0xf]
      %v914 = vld [vmem:[%s894 + $0x4c] sm:$0xf]
      %v915 = vld [vmem:[%s894 + $0x50] sm:$0xf]
      %v916 = vld [vmem:[%s894 + $0x54] sm:$0xf]
      %v917 = vld [vmem:[%s894 + $0x58] sm:$0xf]
      %v918 = vld [vmem:[%s894 + $0x5c] sm:$0xf]
      %v919 = vld [vmem:[%s894 + $0x60] sm:$0xf]
      %v920 = vld [vmem:[%s894 + $0x64] sm:$0xf]
      %v921 = vld [vmem:[%s894 + $0x68] sm:$0xf]
      %v922 = vld [vmem:[%s894 + $0x6c] sm:$0xf]
      %v923 = vld [vmem:[%s894 + $0x70] sm:$0xf]
      %v924 = vld [vmem:[%s894 + $0x74] sm:$0xf]
      %v925 = vld [vmem:[%s894 + $0x78] sm:$0xf]
      %v926 = vld [vmem:[%s894 + $0x7c] sm:$0xf]
      %v959 = vunpack.c.l.b16 %v895
      %v960 = vunpack.c.l.b16 %v896
      %v961 = vunpack.c.l.b16 %v897
      %v962 = vunpack.c.l.b16 %v898
      %v963 = vunpack.c.l.b16 %v899
      %v964 = vunpack.c.l.b16 %v900
      %v965 = vunpack.c.l.b16 %v901
      %v966 = vunpack.c.l.b16 %v902
      %v967 = vunpack.c.l.b16 %v903
      %v968 = vunpack.c.l.b16 %v904
      %v969 = vunpack.c.l.b16 %v905
      %v970 = vunpack.c.l.b16 %v906
      %v971 = vunpack.c.l.b16 %v907
      %v972 = vunpack.c.l.b16 %v908
      %v973 = vunpack.c.l.b16 %v909
      %v974 = vunpack.c.l.b16 %v910
      %v975 = vunpack.c.l.b16 %v911
      %v976 = vunpack.c.l.b16 %v912
      %v977 = vunpack.c.l.b16 %v913
      %v978 = vunpack.c.l.b16 %v914
      %v979 = vunpack.c.l.b16 %v915
      %v980 = vunpack.c.l.b16 %v916
      %v981 = vunpack.c.l.b16 %v917
      %v982 = vunpack.c.l.b16 %v918
      %v983 = vunpack.c.l.b16 %v919
      %v984 = vunpack.c.l.b16 %v920
      %v985 = vunpack.c.l.b16 %v921
      %v986 = vunpack.c.l.b16 %v922
      %v987 = vunpack.c.l.b16 %v923
      %v988 = vunpack.c.l.b16 %v924
      %v989 = vunpack.c.l.b16 %v925
      %v990 = vunpack.c.l.b16 %v926
      %v991 = vpack.c.b16 %v960, %v959
      %v992 = vpack.c.b16 %v962, %v961
      %v993 = vpack.c.b16 %v964, %v963
      %v994 = vpack.c.b16 %v966, %v965
      %v995 = vpack.c.b16 %v968, %v967
      %v996 = vpack.c.b16 %v970, %v969
      %v997 = vpack.c.b16 %v972, %v971
      %v998 = vpack.c.b16 %v974, %v973
      %v999 = vpack.c.b16 %v976, %v975
      %v1000 = vpack.c.b16 %v978, %v977
      %v1001 = vpack.c.b16 %v980, %v979
      %v1002 = vpack.c.b16 %v982, %v981
      %v1003 = vpack.c.b16 %v984, %v983
      %v1004 = vpack.c.b16 %v986, %v985
      %v1005 = vpack.c.b16 %v988, %v987
      %v1006 = vpack.c.b16 %v990, %v989
      %1023 = vmatprep.subr.bf16.mxu0 0
      %1024 = vmatpush1.bf16.msra.mxu0 %v991
      %1025 = vmatprep.subr.bf16.mxu0 0
      %1026 = vmatpush1.bf16.msra.mxu0 %v992
      %1027 = vmatprep.subr.bf16.mxu0 0
      %1028 = vmatpush1.bf16.msra.mxu0 %v993
      %1029 = vmatprep.subr.bf16.mxu0 0
      %1030 = vmatpush1.bf16.msra.mxu0 %v994
      %1031 = vmatprep.subr.bf16.mxu0 0
      %1032 = vmatpush1.bf16.msra.mxu0 %v995
      %1033 = vmatprep.subr.bf16.mxu0 0
      %1034 = vmatpush1.bf16.msra.mxu0 %v996
      %1035 = vmatprep.subr.bf16.mxu0 0
      %1036 = vmatpush1.bf16.msra.mxu0 %v997
      %1037 = vmatprep.subr.bf16.mxu0 0
      %1038 = vmatpush1.bf16.msra.mxu0 %v998
      %1039 = vmatprep.subr.bf16.mxu0 0
      %1040 = vmatpush1.bf16.msra.mxu0 %v999
      %1041 = vmatprep.subr.bf16.mxu0 0
      %1042 = vmatpush1.bf16.msra.mxu0 %v1000
      %1043 = vmatprep.subr.bf16.mxu0 0
      %1044 = vmatpush1.bf16.msra.mxu0 %v1001
      %1045 = vmatprep.subr.bf16.mxu0 0
      %1046 = vmatpush1.bf16.msra.mxu0 %v1002
      %1047 = vmatprep.subr.bf16.mxu0 0
      %1048 = vmatpush1.bf16.msra.mxu0 %v1003
      %1049 = vmatprep.subr.bf16.mxu0 0
      %1050 = vmatpush1.bf16.msra.mxu0 %v1004
      %1051 = vmatprep.subr.bf16.mxu0 0
      %1052 = vmatpush1.bf16.msra.mxu0 %v1005
      %1053 = vmatprep.subr.bf16.mxu0 0
      %1054 = vmatpush1.bf16.msra.mxu0 %v1006
      %1055 = vmatprep.mubr.bf16.mxu0 %v879
      %1056 = vmatmul.mubr.bf16.gmra.mrb[0].mxu0 %v878
      %v1057 = vpop.f32.mrb[0].mxu0
      %v1058 = vadd.f32 0.0, %v1057
      %v1059 = vpop.f32.mrb[0].mxu0
      %v1060 = vpop.f32.mrb[0].mxu0
      %v1061 = vadd.f32 0.0, %v1060
      %v1062 = vpop.f32.mrb[0].mxu0
      %1063 = vmatprep.mubr.bf16.mxu0 %v881
      %1064 = vmatmul.mubr.bf16.gmra.mrb[0].mxu0 %v880
      %v1065 = vpop.f32.mrb[0].mxu0
      %v1066 = vadd.f32 0.0, %v1065
      %v1067 = vpop.f32.mrb[0].mxu0
      %v1068 = vpop.f32.mrb[0].mxu0
      %v1069 = vadd.f32 0.0, %v1068
      %v1070 = vpop.f32.mrb[0].mxu0
      %1071 = vmatprep.mubr.bf16.mxu0 %v883
      %1072 = vmatmul.mubr.bf16.gmra.mrb[0].mxu0 %v882
      %v1073 = vpop.f32.mrb[0].mxu0
      %v1074 = vadd.f32 0.0, %v1073
      %v1075 = vpop.f32.mrb[0].mxu0
      %v1076 = vpop.f32.mrb[0].mxu0
      %v1077 = vadd.f32 0.0, %v1076
      %v1078 = vpop.f32.mrb[0].mxu0
      %1079 = vmatprep.mubr.bf16.mxu0 %v885
      %1080 = vmatmul.mubr.bf16.gmra.mrb[0].mxu0 %v884
      %v1081 = vpop.f32.mrb[0].mxu0
      %v1082 = vadd.f32 0.0, %v1081
      %v1083 = vpop.f32.mrb[0].mxu0
      %v1084 = vpop.f32.mrb[0].mxu0
      %v1085 = vadd.f32 0.0, %v1084
      %v1086 = vpop.f32.mrb[0].mxu0
      %1087 = vmatprep.mubr.bf16.mxu0 %v887
      %1088 = vmatmul.mubr.bf16.gmra.mrb[0].mxu0 %v886
      %v1089 = vpop.f32.mrb[0].mxu0
      %v1090 = vadd.f32 0.0, %v1089
      %v1091 = vpop.f32.mrb[0].mxu0
      %v1092 = vpop.f32.mrb[0].mxu0
      %v1093 = vadd.f32 0.0, %v1092
      %v1094 = vpop.f32.mrb[0].mxu0
      %1095 = vmatprep.mubr.bf16.mxu0 %v889
      %1096 = vmatmul.mubr.bf16.gmra.mrb[0].mxu0 %v888
      %v1097 = vpop.f32.mrb[0].mxu0
      %v1098 = vadd.f32 0.0, %v1097
      %v1099 = vpop.f32.mrb[0].mxu0
      %v1100 = vpop.f32.mrb[0].mxu0
      %v1101 = vadd.f32 0.0, %v1100
      %v1102 = vpop.f32.mrb[0].mxu0
      %1103 = vmatprep.mubr.bf16.mxu0 %v891
      %1104 = vmatmul.mubr.bf16.gmra.mrb[0].mxu0 %v890
      %v1105 = vpop.f32.mrb[0].mxu0
      %v1106 = vadd.f32 0.0, %v1105
      %v1107 = vpop.f32.mrb[0].mxu0
      %v1108 = vpop.f32.mrb[0].mxu0
      %v1109 = vadd.f32 0.0, %v1108
      %v1110 = vpop.f32.mrb[0].mxu0
      %1111 = vmatprep.mubr.bf16.mxu0 %v893
      %1112 = vmatmul.mubr.bf16.gmra.mrb[0].mxu0 %v892
      %v1113 = vpop.f32.mrb[0].mxu0
      %v1114 = vadd.f32 0.0, %v1113
      %v1115 = vpop.f32.mrb[0].mxu0
      %v1116 = vpop.f32.mrb[0].mxu0
      %v1117 = vadd.f32 0.0, %v1116
      %v1118 = vpop.f32.mrb[0].mxu0
      %1119 = vdwg.mxu0
      %v1120 = vadd.f32 %v815, %v1058
      %v1121 = vadd.f32 %v818, %v1061
      %v1122 = vadd.f32 %v823, %v1066
      %v1123 = vadd.f32 %v826, %v1069
      %v1124 = vadd.f32 %v831, %v1074
      %v1125 = vadd.f32 %v834, %v1077
      %v1126 = vadd.f32 %v839, %v1082
      %v1127 = vadd.f32 %v842, %v1085
      %v1128 = vadd.f32 %v847, %v1090
      %v1129 = vadd.f32 %v850, %v1093
      %v1130 = vadd.f32 %v855, %v1098
      %v1131 = vadd.f32 %v858, %v1101
      %v1132 = vadd.f32 %v863, %v1106
      %v1133 = vadd.f32 %v866, %v1109
      %v1134 = vadd.f32 %v871, %v1114
      %v1135 = vadd.f32 %v874, %v1117
      %v1136 = vrot.slane %v1120, 7
      %v1137 = vrot.slane %v1121, 7
      %v1138 = vrot.slane %v1122, 7
      %v1139 = vrot.slane %v1123, 7
      %v1140 = vrot.slane %v1124, 7
      %v1141 = vrot.slane %v1125, 7
      %v1142 = vrot.slane %v1126, 7
      %v1143 = vrot.slane %v1127, 7
      %v1144 = vrot.slane %v1128, 7
      %v1145 = vrot.slane %v1129, 7
      %v1146 = vrot.slane %v1130, 7
      %v1147 = vrot.slane %v1131, 7
      %v1148 = vrot.slane %v1132, 7
      %v1149 = vrot.slane %v1133, 7
      %v1150 = vrot.slane %v1134, 7
      %v1151 = vrot.slane %v1135, 7
      %v1152 = vlaneseq
      %v1153 = vshrl.u32 %v1152, 7
      %vm1154 = vcmp.lt.s32.totalorder %v1153, 1
      %v1155 = vsel %vm1154, %v1149, %v1150
      %v1156 = vsel %vm1154, %v1147, %v1148
      %v1157 = vsel %vm1154, %v1145, %v1146
      %v1158 = vsel %vm1154, %v1143, %v1144
      %v1159 = vsel %vm1154, %v1141, %v1142
      %v1160 = vsel %vm1154, %v1139, %v1140
      %v1161 = vsel %vm1154, %v1137, %v1138
      %v1162 = vsel %vm1154, %v1151, %v1136
      %v1163 = vadd.f32 %v1162, 0.0
      %v1164 = vadd.f32 %v1161, 0.0
      %v1165 = vadd.f32 %v1160, 0.0
      %v1166 = vadd.f32 %v1159, 0.0
      %v1167 = vadd.f32 %v1158, 0.0
      %v1168 = vadd.f32 %v1157, 0.0
      %v1169 = vadd.f32 %v1156, 0.0
      %v1170 = vadd.f32 %v1155, 0.0
      %s1171 = scalar_lea.vmem %s1, 128
      %v1172 = vld [vmem:[%s1171] sm:$0xf]
      %v1173 = vld [vmem:[%s1171 + $0x4] sm:$0xf]
      %v1174 = vld [vmem:[%s1171 + $0x8] sm:$0xf]
      %v1175 = vld [vmem:[%s1171 + $0xc] sm:$0xf]
      %v1176 = vld [vmem:[%s1171 + $0x10] sm:$0xf]
      %v1177 = vld [vmem:[%s1171 + $0x14] sm:$0xf]
      %v1178 = vld [vmem:[%s1171 + $0x18] sm:$0xf]
      %v1179 = vld [vmem:[%s1171 + $0x1c] sm:$0xf]
      %v1180 = vld [vmem:[%s1171 + $0x20] sm:$0xf]
      %v1181 = vld [vmem:[%s1171 + $0x24] sm:$0xf]
      %v1182 = vld [vmem:[%s1171 + $0x28] sm:$0xf]
      %v1183 = vld [vmem:[%s1171 + $0x2c] sm:$0xf]
      %v1184 = vld [vmem:[%s1171 + $0x30] sm:$0xf]
      %v1185 = vld [vmem:[%s1171 + $0x34] sm:$0xf]
      %v1186 = vld [vmem:[%s1171 + $0x38] sm:$0xf]
      %v1187 = vld [vmem:[%s1171 + $0x3c] sm:$0xf]
      %v1188 = vld [vmem:[%s1171 + $0x40] sm:$0xf]
      %v1189 = vld [vmem:[%s1171 + $0x44] sm:$0xf]
      %v1190 = vld [vmem:[%s1171 + $0x48] sm:$0xf]
      %v1191 = vld [vmem:[%s1171 + $0x4c] sm:$0xf]
      %v1192 = vld [vmem:[%s1171 + $0x50] sm:$0xf]
      %v1193 = vld [vmem:[%s1171 + $0x54] sm:$0xf]
      %v1194 = vld [vmem:[%s1171 + $0x58] sm:$0xf]
      %v1195 = vld [vmem:[%s1171 + $0x5c] sm:$0xf]
      %v1196 = vld [vmem:[%s1171 + $0x60] sm:$0xf]
      %v1197 = vld [vmem:[%s1171 + $0x64] sm:$0xf]
      %v1198 = vld [vmem:[%s1171 + $0x68] sm:$0xf]
      %v1199 = vld [vmem:[%s1171 + $0x6c] sm:$0xf]
      %v1200 = vld [vmem:[%s1171 + $0x70] sm:$0xf]
      %v1201 = vld [vmem:[%s1171 + $0x74] sm:$0xf]
      %v1202 = vld [vmem:[%s1171 + $0x78] sm:$0xf]
      %v1203 = vld [vmem:[%s1171 + $0x7c] sm:$0xf]
      %s1204 = scalar_lea.vmem %s1, 512
      %v1205 = vld [vmem:[%s1204] sm:$0xf]
      %v1206 = vld [vmem:[%s1204 + $0x4] sm:$0xf]
      %v1207 = vld [vmem:[%s1204 + $0x8] sm:$0xf]
      %v1208 = vld [vmem:[%s1204 + $0xc] sm:$0xf]
      %v1209 = vld [vmem:[%s1204 + $0x10] sm:$0xf]
      %v1210 = vld [vmem:[%s1204 + $0x14] sm:$0xf]
      %v1211 = vld [vmem:[%s1204 + $0x18] sm:$0xf]
      %v1212 = vld [vmem:[%s1204 + $0x1c] sm:$0xf]
      %v1213 = vld [vmem:[%s1204 + $0x20] sm:$0xf]
      %v1214 = vld [vmem:[%s1204 + $0x24] sm:$0xf]
      %v1215 = vld [vmem:[%s1204 + $0x28] sm:$0xf]
      %v1216 = vld [vmem:[%s1204 + $0x2c] sm:$0xf]
      %v1217 = vld [vmem:[%s1204 + $0x30] sm:$0xf]
      %v1218 = vld [vmem:[%s1204 + $0x34] sm:$0xf]
      %v1219 = vld [vmem:[%s1204 + $0x38] sm:$0xf]
      %v1220 = vld [vmem:[%s1204 + $0x3c] sm:$0xf]
      %v1221 = vld [vmem:[%s1204 + $0x40] sm:$0xf]
      %v1222 = vld [vmem:[%s1204 + $0x44] sm:$0xf]
      %v1223 = vld [vmem:[%s1204 + $0x48] sm:$0xf]
      %v1224 = vld [vmem:[%s1204 + $0x4c] sm:$0xf]
      %v1225 = vld [vmem:[%s1204 + $0x50] sm:$0xf]
      %v1226 = vld [vmem:[%s1204 + $0x54] sm:$0xf]
      %v1227 = vld [vmem:[%s1204 + $0x58] sm:$0xf]
      %v1228 = vld [vmem:[%s1204 + $0x5c] sm:$0xf]
      %v1229 = vld [vmem:[%s1204 + $0x60] sm:$0xf]
      %v1230 = vld [vmem:[%s1204 + $0x64] sm:$0xf]
      %v1231 = vld [vmem:[%s1204 + $0x68] sm:$0xf]
      %v1232 = vld [vmem:[%s1204 + $0x6c] sm:$0xf]
      %v1233 = vld [vmem:[%s1204 + $0x70] sm:$0xf]
      %v1234 = vld [vmem:[%s1204 + $0x74] sm:$0xf]
      %v1235 = vld [vmem:[%s1204 + $0x78] sm:$0xf]
      %v1236 = vld [vmem:[%s1204 + $0x7c] sm:$0xf]
      %v1269 = vunpack.c.l.b16 %v1205
      %v1270 = vunpack.c.l.b16 %v1206
      %v1271 = vunpack.c.l.b16 %v1207
      %v1272 = vunpack.c.l.b16 %v1208
      %v1273 = vunpack.c.l.b16 %v1209
      %v1274 = vunpack.c.l.b16 %v1210
      %v1275 = vunpack.c.l.b16 %v1211
      %v1276 = vunpack.c.l.b16 %v1212
      %v1277 = vunpack.c.l.b16 %v1213
      %v1278 = vunpack.c.l.b16 %v1214
      %v1279 = vunpack.c.l.b16 %v1215
      %v1280 = vunpack.c.l.b16 %v1216
      %v1281 = vunpack.c.l.b16 %v1217
      %v1282 = vunpack.c.l.b16 %v1218
      %v1283 = vunpack.c.l.b16 %v1219
      %v1284 = vunpack.c.l.b16 %v1220
      %v1285 = vunpack.c.l.b16 %v1221
      %v1286 = vunpack.c.l.b16 %v1222
      %v1287 = vunpack.c.l.b16 %v1223
      %v1288 = vunpack.c.l.b16 %v1224
      %v1289 = vunpack.c.l.b16 %v1225
      %v1290 = vunpack.c.l.b16 %v1226
      %v1291 = vunpack.c.l.b16 %v1227
      %v1292 = vunpack.c.l.b16 %v1228
      %v1293 = vunpack.c.l.b16 %v1229
      %v1294 = vunpack.c.l.b16 %v1230
      %v1295 = vunpack.c.l.b16 %v1231
      %v1296 = vunpack.c.l.b16 %v1232
      %v1297 = vunpack.c.l.b16 %v1233
      %v1298 = vunpack.c.l.b16 %v1234
      %v1299 = vunpack.c.l.b16 %v1235
      %v1300 = vunpack.c.l.b16 %v1236
      %v1301 = vpack.c.b16 %v1270, %v1269
      %v1302 = vpack.c.b16 %v1272, %v1271
      %v1303 = vpack.c.b16 %v1274, %v1273
      %v1304 = vpack.c.b16 %v1276, %v1275
      %v1305 = vpack.c.b16 %v1278, %v1277
      %v1306 = vpack.c.b16 %v1280, %v1279
      %v1307 = vpack.c.b16 %v1282, %v1281
      %v1308 = vpack.c.b16 %v1284, %v1283
      %v1309 = vpack.c.b16 %v1286, %v1285
      %v1310 = vpack.c.b16 %v1288, %v1287
      %v1311 = vpack.c.b16 %v1290, %v1289
      %v1312 = vpack.c.b16 %v1292, %v1291
      %v1313 = vpack.c.b16 %v1294, %v1293
      %v1314 = vpack.c.b16 %v1296, %v1295
      %v1315 = vpack.c.b16 %v1298, %v1297
      %v1316 = vpack.c.b16 %v1300, %v1299
      %1333 = vmatprep.subr.bf16.mxu0 0
      %1334 = vmatpush1.bf16.msra.mxu0 %v1301
      %1335 = vmatprep.subr.bf16.mxu0 0
      %1336 = vmatpush1.bf16.msra.mxu0 %v1302
      %1337 = vmatprep.subr.bf16.mxu0 0
      %1338 = vmatpush1.bf16.msra.mxu0 %v1303
      %1339 = vmatprep.subr.bf16.mxu0 0
      %1340 = vmatpush1.bf16.msra.mxu0 %v1304
      %1341 = vmatprep.subr.bf16.mxu0 0
      %1342 = vmatpush1.bf16.msra.mxu0 %v1305
      %1343 = vmatprep.subr.bf16.mxu0 0
      %1344 = vmatpush1.bf16.msra.mxu0 %v1306
      %1345 = vmatprep.subr.bf16.mxu0 0
      %1346 = vmatpush1.bf16.msra.mxu0 %v1307
      %1347 = vmatprep.subr.bf16.mxu0 0
      %1348 = vmatpush1.bf16.msra.mxu0 %v1308
      %1349 = vmatprep.subr.bf16.mxu0 0
      %1350 = vmatpush1.bf16.msra.mxu0 %v1309
      %1351 = vmatprep.subr.bf16.mxu0 0
      %1352 = vmatpush1.bf16.msra.mxu0 %v1310
      %1353 = vmatprep.subr.bf16.mxu0 0
      %1354 = vmatpush1.bf16.msra.mxu0 %v1311
      %1355 = vmatprep.subr.bf16.mxu0 0
      %1356 = vmatpush1.bf16.msra.mxu0 %v1312
      %1357 = vmatprep.subr.bf16.mxu0 0
      %1358 = vmatpush1.bf16.msra.mxu0 %v1313
      %1359 = vmatprep.subr.bf16.mxu0 0
      %1360 = vmatpush1.bf16.msra.mxu0 %v1314
      %1361 = vmatprep.subr.bf16.mxu0 0
      %1362 = vmatpush1.bf16.msra.mxu0 %v1315
      %1363 = vmatprep.subr.bf16.mxu0 0
      %1364 = vmatpush1.bf16.msra.mxu0 %v1316
      %1365 = vmatprep.mubr.bf16.mxu0 %v443
      %1366 = vmatmul.mubr.bf16.gmra.mrb[0].mxu0 %v442
      %v1367 = vpop.f32.mrb[0].mxu0
      %v1368 = vadd.f32 0.0, %v1367
      %v1369 = vpop.f32.mrb[0].mxu0
      %v1370 = vpop.f32.mrb[0].mxu0
      %v1371 = vpop.f32.mrb[0].mxu0
      %1372 = vmatprep.mubr.bf16.mxu0 %v445
      %1373 = vmatmul.mubr.bf16.gmra.mrb[0].mxu0 %v444
      %v1374 = vpop.f32.mrb[0].mxu0
      %v1375 = vadd.f32 0.0, %v1374
      %v1376 = vpop.f32.mrb[0].mxu0
      %v1377 = vpop.f32.mrb[0].mxu0
      %v1378 = vpop.f32.mrb[0].mxu0
      %1379 = vmatprep.mubr.bf16.mxu0 %v447
      %1380 = vmatmul.mubr.bf16.gmra.mrb[0].mxu0 %v446
      %v1381 = vpop.f32.mrb[0].mxu0
      %v1382 = vadd.f32 0.0, %v1381
      %v1383 = vpop.f32.mrb[0].mxu0
      %v1384 = vpop.f32.mrb[0].mxu0
      %v1385 = vpop.f32.mrb[0].mxu0
      %1386 = vmatprep.mubr.bf16.mxu0 %v449
      %1387 = vmatmul.mubr.bf16.gmra.mrb[0].mxu0 %v448
      %v1388 = vpop.f32.mrb[0].mxu0
      %v1389 = vadd.f32 0.0, %v1388
      %v1390 = vpop.f32.mrb[0].mxu0
      %v1391 = vpop.f32.mrb[0].mxu0
      %v1392 = vpop.f32.mrb[0].mxu0
      %1393 = vmatprep.mubr.bf16.mxu0 %v451
      %1394 = vmatmul.mubr.bf16.gmra.mrb[0].mxu0 %v450
      %v1395 = vpop.f32.mrb[0].mxu0
      %v1396 = vadd.f32 0.0, %v1395
      %v1397 = vpop.f32.mrb[0].mxu0
      %v1398 = vpop.f32.mrb[0].mxu0
      %v1399 = vpop.f32.mrb[0].mxu0
      %1400 = vmatprep.mubr.bf16.mxu0 %v453
      %1401 = vmatmul.mubr.bf16.gmra.mrb[0].mxu0 %v452
      %v1402 = vpop.f32.mrb[0].mxu0
      %v1403 = vadd.f32 0.0, %v1402
      %v1404 = vpop.f32.mrb[0].mxu0
      %v1405 = vpop.f32.mrb[0].mxu0
      %v1406 = vpop.f32.mrb[0].mxu0
      %1407 = vmatprep.mubr.bf16.mxu0 %v455
      %1408 = vmatmul.mubr.bf16.gmra.mrb[0].mxu0 %v454
      %v1409 = vpop.f32.mrb[0].mxu0
      %v1410 = vadd.f32 0.0, %v1409
      %v1411 = vpop.f32.mrb[0].mxu0
      %v1412 = vpop.f32.mrb[0].mxu0
      %v1413 = vpop.f32.mrb[0].mxu0
      %1414 = vmatprep.mubr.bf16.mxu0 %v457
      %1415 = vmatmul.mubr.bf16.gmra.mrb[0].mxu0 %v456
      %v1416 = vpop.f32.mrb[0].mxu0
      %v1417 = vadd.f32 0.0, %v1416
      %v1418 = vpop.f32.mrb[0].mxu0
      %v1419 = vpop.f32.mrb[0].mxu0
      %v1420 = vpop.f32.mrb[0].mxu0
      %1421 = vdwg.mxu0
      %v1454 = vunpack.c.l.b16 %v1172
      %v1455 = vunpack.c.l.b16 %v1173
      %v1456 = vunpack.c.l.b16 %v1174
      %v1457 = vunpack.c.l.b16 %v1175
      %v1458 = vunpack.c.l.b16 %v1176
      %v1459 = vunpack.c.l.b16 %v1177
      %v1460 = vunpack.c.l.b16 %v1178
      %v1461 = vunpack.c.l.b16 %v1179
      %v1462 = vunpack.c.l.b16 %v1180
      %v1463 = vunpack.c.l.b16 %v1181
      %v1464 = vunpack.c.l.b16 %v1182
      %v1465 = vunpack.c.l.b16 %v1183
      %v1466 = vunpack.c.l.b16 %v1184
      %v1467 = vunpack.c.l.b16 %v1185
      %v1468 = vunpack.c.l.b16 %v1186
      %v1469 = vunpack.c.l.b16 %v1187
      %v1470 = vunpack.c.l.b16 %v1188
      %v1471 = vunpack.c.l.b16 %v1189
      %v1472 = vunpack.c.l.b16 %v1190
      %v1473 = vunpack.c.l.b16 %v1191
      %v1474 = vunpack.c.l.b16 %v1192
      %v1475 = vunpack.c.l.b16 %v1193
      %v1476 = vunpack.c.l.b16 %v1194
      %v1477 = vunpack.c.l.b16 %v1195
      %v1478 = vunpack.c.l.b16 %v1196
      %v1479 = vunpack.c.l.b16 %v1197
      %v1480 = vunpack.c.l.b16 %v1198
      %v1481 = vunpack.c.l.b16 %v1199
      %v1482 = vunpack.c.l.b16 %v1200
      %v1483 = vunpack.c.l.b16 %v1201
      %v1484 = vunpack.c.l.b16 %v1202
      %v1485 = vunpack.c.l.b16 %v1203
      %v1486 = vpack.c.b16 %v1455, %v1454
      %v1487 = vpack.c.b16 %v1457, %v1456
      %v1488 = vpack.c.b16 %v1459, %v1458
      %v1489 = vpack.c.b16 %v1461, %v1460
      %v1490 = vpack.c.b16 %v1463, %v1462
      %v1491 = vpack.c.b16 %v1465, %v1464
      %v1492 = vpack.c.b16 %v1467, %v1466
      %v1493 = vpack.c.b16 %v1469, %v1468
      %v1494 = vpack.c.b16 %v1471, %v1470
      %v1495 = vpack.c.b16 %v1473, %v1472
      %v1496 = vpack.c.b16 %v1475, %v1474
      %v1497 = vpack.c.b16 %v1477, %v1476
      %v1498 = vpack.c.b16 %v1479, %v1478
      %v1499 = vpack.c.b16 %v1481, %v1480
      %v1500 = vpack.c.b16 %v1483, %v1482
      %v1501 = vpack.c.b16 %v1485, %v1484
      %1518 = vmatprep.subr.bf16.mxu0 0
      %1519 = vmatpush1.bf16.msra.mxu0 %v1486
      %1520 = vmatprep.subr.bf16.mxu0 0
      %1521 = vmatpush1.bf16.msra.mxu0 %v1487
      %1522 = vmatprep.subr.bf16.mxu0 0
      %1523 = vmatpush1.bf16.msra.mxu0 %v1488
      %1524 = vmatprep.subr.bf16.mxu0 0
      %1525 = vmatpush1.bf16.msra.mxu0 %v1489
      %1526 = vmatprep.subr.bf16.mxu0 0
      %1527 = vmatpush1.bf16.msra.mxu0 %v1490
      %1528 = vmatprep.subr.bf16.mxu0 0
      %1529 = vmatpush1.bf16.msra.mxu0 %v1491
      %1530 = vmatprep.subr.bf16.mxu0 0
      %1531 = vmatpush1.bf16.msra.mxu0 %v1492
      %1532 = vmatprep.subr.bf16.mxu0 0
      %1533 = vmatpush1.bf16.msra.mxu0 %v1493
      %1534 = vmatprep.subr.bf16.mxu0 0
      %1535 = vmatpush1.bf16.msra.mxu0 %v1494
      %1536 = vmatprep.subr.bf16.mxu0 0
      %1537 = vmatpush1.bf16.msra.mxu0 %v1495
      %1538 = vmatprep.subr.bf16.mxu0 0
      %1539 = vmatpush1.bf16.msra.mxu0 %v1496
      %1540 = vmatprep.subr.bf16.mxu0 0
      %1541 = vmatpush1.bf16.msra.mxu0 %v1497
      %1542 = vmatprep.subr.bf16.mxu0 0
      %1543 = vmatpush1.bf16.msra.mxu0 %v1498
      %1544 = vmatprep.subr.bf16.mxu0 0
      %1545 = vmatpush1.bf16.msra.mxu0 %v1499
      %1546 = vmatprep.subr.bf16.mxu0 0
      %1547 = vmatpush1.bf16.msra.mxu0 %v1500
      %1548 = vmatprep.subr.bf16.mxu0 0
      %1549 = vmatpush1.bf16.msra.mxu0 %v1501
      %1550 = vmatprep.mubr.bf16.mxu0 %v395
      %1551 = vmatmul.mubr.bf16.gmra.mrb[0].mxu0 %v394
      %v1552 = vpop.f32.mrb[0].mxu0
      %v1553 = vadd.f32 %v1368, %v1552
      %v1554 = vpop.f32.mrb[0].mxu0
      %v1555 = vpop.f32.mrb[0].mxu0
      %v1556 = vpop.f32.mrb[0].mxu0
      %1557 = vmatprep.mubr.bf16.mxu0 %v397
      %1558 = vmatmul.mubr.bf16.gmra.mrb[0].mxu0 %v396
      %v1559 = vpop.f32.mrb[0].mxu0
      %v1560 = vadd.f32 %v1375, %v1559
      %v1561 = vpop.f32.mrb[0].mxu0
      %v1562 = vpop.f32.mrb[0].mxu0
      %v1563 = vpop.f32.mrb[0].mxu0
      %1564 = vmatprep.mubr.bf16.mxu0 %v399
      %1565 = vmatmul.mubr.bf16.gmra.mrb[0].mxu0 %v398
      %v1566 = vpop.f32.mrb[0].mxu0
      %v1567 = vadd.f32 %v1382, %v1566
      %v1568 = vpop.f32.mrb[0].mxu0
      %v1569 = vpop.f32.mrb[0].mxu0
      %v1570 = vpop.f32.mrb[0].mxu0
      %1571 = vmatprep.mubr.bf16.mxu0 %v401
      %1572 = vmatmul.mubr.bf16.gmra.mrb[0].mxu0 %v400
      %v1573 = vpop.f32.mrb[0].mxu0
      %v1574 = vadd.f32 %v1389, %v1573
      %v1575 = vpop.f32.mrb[0].mxu0
      %v1576 = vpop.f32.mrb[0].mxu0
      %v1577 = vpop.f32.mrb[0].mxu0
      %1578 = vmatprep.mubr.bf16.mxu0 %v403
      %1579 = vmatmul.mubr.bf16.gmra.mrb[0].mxu0 %v402
      %v1580 = vpop.f32.mrb[0].mxu0
      %v1581 = vadd.f32 %v1396, %v1580
      %v1582 = vpop.f32.mrb[0].mxu0
      %v1583 = vpop.f32.mrb[0].mxu0
      %v1584 = vpop.f32.mrb[0].mxu0
      %1585 = vmatprep.mubr.bf16.mxu0 %v405
      %1586 = vmatmul.mubr.bf16.gmra.mrb[0].mxu0 %v404
      %v1587 = vpop.f32.mrb[0].mxu0
      %v1588 = vadd.f32 %v1403, %v1587
      %v1589 = vpop.f32.mrb[0].mxu0
      %v1590 = vpop.f32.mrb[0].mxu0
      %v1591 = vpop.f32.mrb[0].mxu0
      %1592 = vmatprep.mubr.bf16.mxu0 %v407
      %1593 = vmatmul.mubr.bf16.gmra.mrb[0].mxu0 %v406
      %v1594 = vpop.f32.mrb[0].mxu0
      %v1595 = vadd.f32 %v1410, %v1594
      %v1596 = vpop.f32.mrb[0].mxu0
      %v1597 = vpop.f32.mrb[0].mxu0
      %v1598 = vpop.f32.mrb[0].mxu0
      %1599 = vmatprep.mubr.bf16.mxu0 %v409
      %1600 = vmatmul.mubr.bf16.gmra.mrb[0].mxu0 %v408
      %v1601 = vpop.f32.mrb[0].mxu0
      %v1602 = vadd.f32 %v1417, %v1601
      %v1603 = vpop.f32.mrb[0].mxu0
      %v1604 = vpop.f32.mrb[0].mxu0
      %v1605 = vpop.f32.mrb[0].mxu0
      %1606 = vdwg.mxu0
      %s1607 = scalar_lea.vmem %s1, 896
      %v1608 = vld [vmem:[%s1607] sm:$0xf]
      %v1609 = vld [vmem:[%s1607 + $0x4] sm:$0xf]
      %v1610 = vld [vmem:[%s1607 + $0x8] sm:$0xf]
      %v1611 = vld [vmem:[%s1607 + $0xc] sm:$0xf]
      %v1612 = vld [vmem:[%s1607 + $0x10] sm:$0xf]
      %v1613 = vld [vmem:[%s1607 + $0x14] sm:$0xf]
      %v1614 = vld [vmem:[%s1607 + $0x18] sm:$0xf]
      %v1615 = vld [vmem:[%s1607 + $0x1c] sm:$0xf]
      %v1616 = vld [vmem:[%s1607 + $0x20] sm:$0xf]
      %v1617 = vld [vmem:[%s1607 + $0x24] sm:$0xf]
      %v1618 = vld [vmem:[%s1607 + $0x28] sm:$0xf]
      %v1619 = vld [vmem:[%s1607 + $0x2c] sm:$0xf]
      %v1620 = vld [vmem:[%s1607 + $0x30] sm:$0xf]
      %v1621 = vld [vmem:[%s1607 + $0x34] sm:$0xf]
      %v1622 = vld [vmem:[%s1607 + $0x38] sm:$0xf]
      %v1623 = vld [vmem:[%s1607 + $0x3c] sm:$0xf]
      %v1624 = vld [vmem:[%s1607 + $0x40] sm:$0xf]
      %v1625 = vld [vmem:[%s1607 + $0x44] sm:$0xf]
      %v1626 = vld [vmem:[%s1607 + $0x48] sm:$0xf]
      %v1627 = vld [vmem:[%s1607 + $0x4c] sm:$0xf]
      %v1628 = vld [vmem:[%s1607 + $0x50] sm:$0xf]
      %v1629 = vld [vmem:[%s1607 + $0x54] sm:$0xf]
      %v1630 = vld [vmem:[%s1607 + $0x58] sm:$0xf]
      %v1631 = vld [vmem:[%s1607 + $0x5c] sm:$0xf]
      %v1632 = vld [vmem:[%s1607 + $0x60] sm:$0xf]
      %v1633 = vld [vmem:[%s1607 + $0x64] sm:$0xf]
      %v1634 = vld [vmem:[%s1607 + $0x68] sm:$0xf]
      %v1635 = vld [vmem:[%s1607 + $0x6c] sm:$0xf]
      %v1636 = vld [vmem:[%s1607 + $0x70] sm:$0xf]
      %v1637 = vld [vmem:[%s1607 + $0x74] sm:$0xf]
      %v1638 = vld [vmem:[%s1607 + $0x78] sm:$0xf]
      %v1639 = vld [vmem:[%s1607 + $0x7c] sm:$0xf]
      %v1672 = vunpack.c.l.b16 %v1608
      %v1673 = vunpack.c.l.b16 %v1609
      %v1674 = vunpack.c.l.b16 %v1610
      %v1675 = vunpack.c.l.b16 %v1611
      %v1676 = vunpack.c.l.b16 %v1612
      %v1677 = vunpack.c.l.b16 %v1613
      %v1678 = vunpack.c.l.b16 %v1614
      %v1679 = vunpack.c.l.b16 %v1615
      %v1680 = vunpack.c.l.b16 %v1616
      %v1681 = vunpack.c.l.b16 %v1617
      %v1682 = vunpack.c.l.b16 %v1618
      %v1683 = vunpack.c.l.b16 %v1619
      %v1684 = vunpack.c.l.b16 %v1620
      %v1685 = vunpack.c.l.b16 %v1621
      %v1686 = vunpack.c.l.b16 %v1622
      %v1687 = vunpack.c.l.b16 %v1623
      %v1688 = vunpack.c.l.b16 %v1624
      %v1689 = vunpack.c.l.b16 %v1625
      %v1690 = vunpack.c.l.b16 %v1626
      %v1691 = vunpack.c.l.b16 %v1627
      %v1692 = vunpack.c.l.b16 %v1628
      %v1693 = vunpack.c.l.b16 %v1629
      %v1694 = vunpack.c.l.b16 %v1630
      %v1695 = vunpack.c.l.b16 %v1631
      %v1696 = vunpack.c.l.b16 %v1632
      %v1697 = vunpack.c.l.b16 %v1633
      %v1698 = vunpack.c.l.b16 %v1634
      %v1699 = vunpack.c.l.b16 %v1635
      %v1700 = vunpack.c.l.b16 %v1636
      %v1701 = vunpack.c.l.b16 %v1637
      %v1702 = vunpack.c.l.b16 %v1638
      %v1703 = vunpack.c.l.b16 %v1639
      %v1704 = vpack.c.b16 %v1673, %v1672
      %v1705 = vpack.c.b16 %v1675, %v1674
      %v1706 = vpack.c.b16 %v1677, %v1676
      %v1707 = vpack.c.b16 %v1679, %v1678
      %v1708 = vpack.c.b16 %v1681, %v1680
      %v1709 = vpack.c.b16 %v1683, %v1682
      %v1710 = vpack.c.b16 %v1685, %v1684
      %v1711 = vpack.c.b16 %v1687, %v1686
      %v1712 = vpack.c.b16 %v1689, %v1688
      %v1713 = vpack.c.b16 %v1691, %v1690
      %v1714 = vpack.c.b16 %v1693, %v1692
      %v1715 = vpack.c.b16 %v1695, %v1694
      %v1716 = vpack.c.b16 %v1697, %v1696
      %v1717 = vpack.c.b16 %v1699, %v1698
      %v1718 = vpack.c.b16 %v1701, %v1700
      %v1719 = vpack.c.b16 %v1703, %v1702
      %1736 = vmatprep.subr.bf16.mxu0 0
      %1737 = vmatpush1.bf16.msra.mxu0 %v1704
      %1738 = vmatprep.subr.bf16.mxu0 0
      %1739 = vmatpush1.bf16.msra.mxu0 %v1705
      %1740 = vmatprep.subr.bf16.mxu0 0
      %1741 = vmatpush1.bf16.msra.mxu0 %v1706
      %1742 = vmatprep.subr.bf16.mxu0 0
      %1743 = vmatpush1.bf16.msra.mxu0 %v1707
      %1744 = vmatprep.subr.bf16.mxu0 0
      %1745 = vmatpush1.bf16.msra.mxu0 %v1708
      %1746 = vmatprep.subr.bf16.mxu0 0
      %1747 = vmatpush1.bf16.msra.mxu0 %v1709
      %1748 = vmatprep.subr.bf16.mxu0 0
      %1749 = vmatpush1.bf16.msra.mxu0 %v1710
      %1750 = vmatprep.subr.bf16.mxu0 0
      %1751 = vmatpush1.bf16.msra.mxu0 %v1711
      %1752 = vmatprep.subr.bf16.mxu0 0
      %1753 = vmatpush1.bf16.msra.mxu0 %v1712
      %1754 = vmatprep.subr.bf16.mxu0 0
      %1755 = vmatpush1.bf16.msra.mxu0 %v1713
      %1756 = vmatprep.subr.bf16.mxu0 0
      %1757 = vmatpush1.bf16.msra.mxu0 %v1714
      %1758 = vmatprep.subr.bf16.mxu0 0
      %1759 = vmatpush1.bf16.msra.mxu0 %v1715
      %1760 = vmatprep.subr.bf16.mxu0 0
      %1761 = vmatpush1.bf16.msra.mxu0 %v1716
      %1762 = vmatprep.subr.bf16.mxu0 0
      %1763 = vmatpush1.bf16.msra.mxu0 %v1717
      %1764 = vmatprep.subr.bf16.mxu0 0
      %1765 = vmatpush1.bf16.msra.mxu0 %v1718
      %1766 = vmatprep.subr.bf16.mxu0 0
      %1767 = vmatpush1.bf16.msra.mxu0 %v1719
      %1768 = vmatprep.mubr.bf16.mxu0 %v879
      %1769 = vmatmul.mubr.bf16.gmra.mrb[0].mxu0 %v878
      %v1770 = vpop.f32.mrb[0].mxu0
      %v1771 = vadd.f32 0.0, %v1770
      %v1772 = vpop.f32.mrb[0].mxu0
      %v1773 = vpop.f32.mrb[0].mxu0
      %v1774 = vpop.f32.mrb[0].mxu0
      %1775 = vmatprep.mubr.bf16.mxu0 %v881
      %1776 = vmatmul.mubr.bf16.gmra.mrb[0].mxu0 %v880
      %v1777 = vpop.f32.mrb[0].mxu0
      %v1778 = vadd.f32 0.0, %v1777
      %v1779 = vpop.f32.mrb[0].mxu0
      %v1780 = vpop.f32.mrb[0].mxu0
      %v1781 = vpop.f32.mrb[0].mxu0
      %1782 = vmatprep.mubr.bf16.mxu0 %v883
      %1783 = vmatmul.mubr.bf16.gmra.mrb[0].mxu0 %v882
      %v1784 = vpop.f32.mrb[0].mxu0
      %v1785 = vadd.f32 0.0, %v1784
      %v1786 = vpop.f32.mrb[0].mxu0
      %v1787 = vpop.f32.mrb[0].mxu0
      %v1788 = vpop.f32.mrb[0].mxu0
      %1789 = vmatprep.mubr.bf16.mxu0 %v885
      %1790 = vmatmul.mubr.bf16.gmra.mrb[0].mxu0 %v884
      %v1791 = vpop.f32.mrb[0].mxu0
      %v1792 = vadd.f32 0.0, %v1791
      %v1793 = vpop.f32.mrb[0].mxu0
      %v1794 = vpop.f32.mrb[0].mxu0
      %v1795 = vpop.f32.mrb[0].mxu0
      %1796 = vmatprep.mubr.bf16.mxu0 %v887
      %1797 = vmatmul.mubr.bf16.gmra.mrb[0].mxu0 %v886
      %v1798 = vpop.f32.mrb[0].mxu0
      %v1799 = vadd.f32 0.0, %v1798
      %v1800 = vpop.f32.mrb[0].mxu0
      %v1801 = vpop.f32.mrb[0].mxu0
      %v1802 = vpop.f32.mrb[0].mxu0
      %1803 = vmatprep.mubr.bf16.mxu0 %v889
      %1804 = vmatmul.mubr.bf16.gmra.mrb[0].mxu0 %v888
      %v1805 = vpop.f32.mrb[0].mxu0
      %v1806 = vadd.f32 0.0, %v1805
      %v1807 = vpop.f32.mrb[0].mxu0
      %v1808 = vpop.f32.mrb[0].mxu0
      %v1809 = vpop.f32.mrb[0].mxu0
      %1810 = vmatprep.mubr.bf16.mxu0 %v891
      %1811 = vmatmul.mubr.bf16.gmra.mrb[0].mxu0 %v890
      %v1812 = vpop.f32.mrb[0].mxu0
      %v1813 = vadd.f32 0.0, %v1812
      %v1814 = vpop.f32.mrb[0].mxu0
      %v1815 = vpop.f32.mrb[0].mxu0
      %v1816 = vpop.f32.mrb[0].mxu0
      %1817 = vmatprep.mubr.bf16.mxu0 %v893
      %1818 = vmatmul.mubr.bf16.gmra.mrb[0].mxu0 %v892
      %v1819 = vpop.f32.mrb[0].mxu0
      %v1820 = vadd.f32 0.0, %v1819
      %v1821 = vpop.f32.mrb[0].mxu0
      %v1822 = vpop.f32.mrb[0].mxu0
      %v1823 = vpop.f32.mrb[0].mxu0
      %1824 = vdwg.mxu0
      %v1825 = vadd.f32 %v1553, %v1771
      %v1826 = vadd.f32 %v1560, %v1778
      %v1827 = vadd.f32 %v1567, %v1785
      %v1828 = vadd.f32 %v1574, %v1792
      %v1829 = vadd.f32 %v1581, %v1799
      %v1830 = vadd.f32 %v1588, %v1806
      %v1831 = vadd.f32 %v1595, %v1813
      %v1832 = vadd.f32 %v1602, %v1820
      %v1833 = vadd.f32 %v1163, %v1825
      %v1834 = vadd.f32 %v1164, %v1826
      %v1835 = vadd.f32 %v1165, %v1827
      %v1836 = vadd.f32 %v1166, %v1828
      %v1837 = vadd.f32 %v1167, %v1829
      %v1838 = vadd.f32 %v1168, %v1830
      %v1839 = vadd.f32 %v1169, %v1831
      %v1840 = vadd.f32 %v1170, %v1832
      %s1841 = scalar_lea.vmem %s1, 256
      %v1842 = vld [vmem:[%s1841] sm:$0xf]
      %v1843 = vld [vmem:[%s1841 + $0x4] sm:$0xf]
      %v1844 = vld [vmem:[%s1841 + $0x8] sm:$0xf]
      %v1845 = vld [vmem:[%s1841 + $0xc] sm:$0xf]
      %v1846 = vld [vmem:[%s1841 + $0x10] sm:$0xf]
      %v1847 = vld [vmem:[%s1841 + $0x14] sm:$0xf]
      %v1848 = vld [vmem:[%s1841 + $0x18] sm:$0xf]
      %v1849 = vld [vmem:[%s1841 + $0x1c] sm:$0xf]
      %v1850 = vld [vmem:[%s1841 + $0x20] sm:$0xf]
      %v1851 = vld [vmem:[%s1841 + $0x24] sm:$0xf]
      %v1852 = vld [vmem:[%s1841 + $0x28] sm:$0xf]
      %v1853 = vld [vmem:[%s1841 + $0x2c] sm:$0xf]
      %v1854 = vld [vmem:[%s1841 + $0x30] sm:$0xf]
      %v1855 = vld [vmem:[%s1841 + $0x34] sm:$0xf]
      %v1856 = vld [vmem:[%s1841 + $0x38] sm:$0xf]
      %v1857 = vld [vmem:[%s1841 + $0x3c] sm:$0xf]
      %v1858 = vld [vmem:[%s1841 + $0x40] sm:$0xf]
      %v1859 = vld [vmem:[%s1841 + $0x44] sm:$0xf]
      %v1860 = vld [vmem:[%s1841 + $0x48] sm:$0xf]
      %v1861 = vld [vmem:[%s1841 + $0x4c] sm:$0xf]
      %v1862 = vld [vmem:[%s1841 + $0x50] sm:$0xf]
      %v1863 = vld [vmem:[%s1841 + $0x54] sm:$0xf]
      %v1864 = vld [vmem:[%s1841 + $0x58] sm:$0xf]
      %v1865 = vld [vmem:[%s1841 + $0x5c] sm:$0xf]
      %v1866 = vld [vmem:[%s1841 + $0x60] sm:$0xf]
      %v1867 = vld [vmem:[%s1841 + $0x64] sm:$0xf]
      %v1868 = vld [vmem:[%s1841 + $0x68] sm:$0xf]
      %v1869 = vld [vmem:[%s1841 + $0x6c] sm:$0xf]
      %v1870 = vld [vmem:[%s1841 + $0x70] sm:$0xf]
      %v1871 = vld [vmem:[%s1841 + $0x74] sm:$0xf]
      %v1872 = vld [vmem:[%s1841 + $0x78] sm:$0xf]
      %v1873 = vld [vmem:[%s1841 + $0x7c] sm:$0xf]
      %s1874 = scalar_lea.vmem %s1, 640
      %v1875 = vld [vmem:[%s1874] sm:$0xf]
      %v1876 = vld [vmem:[%s1874 + $0x4] sm:$0xf]
      %v1877 = vld [vmem:[%s1874 + $0x8] sm:$0xf]
      %v1878 = vld [vmem:[%s1874 + $0xc] sm:$0xf]
      %v1879 = vld [vmem:[%s1874 + $0x10] sm:$0xf]
      %v1880 = vld [vmem:[%s1874 + $0x14] sm:$0xf]
      %v1881 = vld [vmem:[%s1874 + $0x18] sm:$0xf]
      %v1882 = vld [vmem:[%s1874 + $0x1c] sm:$0xf]
      %v1883 = vld [vmem:[%s1874 + $0x20] sm:$0xf]
      %v1884 = vld [vmem:[%s1874 + $0x24] sm:$0xf]
      %v1885 = vld [vmem:[%s1874 + $0x28] sm:$0xf]
      %v1886 = vld [vmem:[%s1874 + $0x2c] sm:$0xf]
      %v1887 = vld [vmem:[%s1874 + $0x30] sm:$0xf]
      %v1888 = vld [vmem:[%s1874 + $0x34] sm:$0xf]
      %v1889 = vld [vmem:[%s1874 + $0x38] sm:$0xf]
      %v1890 = vld [vmem:[%s1874 + $0x3c] sm:$0xf]
      %v1891 = vld [vmem:[%s1874 + $0x40] sm:$0xf]
      %v1892 = vld [vmem:[%s1874 + $0x44] sm:$0xf]
      %v1893 = vld [vmem:[%s1874 + $0x48] sm:$0xf]
      %v1894 = vld [vmem:[%s1874 + $0x4c] sm:$0xf]
      %v1895 = vld [vmem:[%s1874 + $0x50] sm:$0xf]
      %v1896 = vld [vmem:[%s1874 + $0x54] sm:$0xf]
      %v1897 = vld [vmem:[%s1874 + $0x58] sm:$0xf]
      %v1898 = vld [vmem:[%s1874 + $0x5c] sm:$0xf]
      %v1899 = vld [vmem:[%s1874 + $0x60] sm:$0xf]
      %v1900 = vld [vmem:[%s1874 + $0x64] sm:$0xf]
      %v1901 = vld [vmem:[%s1874 + $0x68] sm:$0xf]
      %v1902 = vld [vmem:[%s1874 + $0x6c] sm:$0xf]
      %v1903 = vld [vmem:[%s1874 + $0x70] sm:$0xf]
      %v1904 = vld [vmem:[%s1874 + $0x74] sm:$0xf]
      %v1905 = vld [vmem:[%s1874 + $0x78] sm:$0xf]
      %v1906 = vld [vmem:[%s1874 + $0x7c] sm:$0xf]
      %v1939 = vunpack.c.l.b16 %v1875
      %v1940 = vunpack.c.l.b16 %v1876
      %v1941 = vunpack.c.l.b16 %v1877
      %v1942 = vunpack.c.l.b16 %v1878
      %v1943 = vunpack.c.l.b16 %v1879
      %v1944 = vunpack.c.l.b16 %v1880
      %v1945 = vunpack.c.l.b16 %v1881
      %v1946 = vunpack.c.l.b16 %v1882
      %v1947 = vunpack.c.l.b16 %v1883
      %v1948 = vunpack.c.l.b16 %v1884
      %v1949 = vunpack.c.l.b16 %v1885
      %v1950 = vunpack.c.l.b16 %v1886
      %v1951 = vunpack.c.l.b16 %v1887
      %v1952 = vunpack.c.l.b16 %v1888
      %v1953 = vunpack.c.l.b16 %v1889
      %v1954 = vunpack.c.l.b16 %v1890
      %v1955 = vunpack.c.l.b16 %v1891
      %v1956 = vunpack.c.l.b16 %v1892
      %v1957 = vunpack.c.l.b16 %v1893
      %v1958 = vunpack.c.l.b16 %v1894
      %v1959 = vunpack.c.l.b16 %v1895
      %v1960 = vunpack.c.l.b16 %v1896
      %v1961 = vunpack.c.l.b16 %v1897
      %v1962 = vunpack.c.l.b16 %v1898
      %v1963 = vunpack.c.l.b16 %v1899
      %v1964 = vunpack.c.l.b16 %v1900
      %v1965 = vunpack.c.l.b16 %v1901
      %v1966 = vunpack.c.l.b16 %v1902
      %v1967 = vunpack.c.l.b16 %v1903
      %v1968 = vunpack.c.l.b16 %v1904
      %v1969 = vunpack.c.l.b16 %v1905
      %v1970 = vunpack.c.l.b16 %v1906
      %v1971 = vpack.c.b16 %v1940, %v1939
      %v1972 = vpack.c.b16 %v1942, %v1941
      %v1973 = vpack.c.b16 %v1944, %v1943
      %v1974 = vpack.c.b16 %v1946, %v1945
      %v1975 = vpack.c.b16 %v1948, %v1947
      %v1976 = vpack.c.b16 %v1950, %v1949
      %v1977 = vpack.c.b16 %v1952, %v1951
      %v1978 = vpack.c.b16 %v1954, %v1953
      %v1979 = vpack.c.b16 %v1956, %v1955
      %v1980 = vpack.c.b16 %v1958, %v1957
      %v1981 = vpack.c.b16 %v1960, %v1959
      %v1982 = vpack.c.b16 %v1962, %v1961
      %v1983 = vpack.c.b16 %v1964, %v1963
      %v1984 = vpack.c.b16 %v1966, %v1965
      %v1985 = vpack.c.b16 %v1968, %v1967
      %v1986 = vpack.c.b16 %v1970, %v1969
      %2003 = vmatprep.subr.bf16.mxu0 0
      %2004 = vmatpush1.bf16.msra.mxu0 %v1971
      %2005 = vmatprep.subr.bf16.mxu0 0
      %2006 = vmatpush1.bf16.msra.mxu0 %v1972
      %2007 = vmatprep.subr.bf16.mxu0 0
      %2008 = vmatpush1.bf16.msra.mxu0 %v1973
      %2009 = vmatprep.subr.bf16.mxu0 0
      %2010 = vmatpush1.bf16.msra.mxu0 %v1974
      %2011 = vmatprep.subr.bf16.mxu0 0
      %2012 = vmatpush1.bf16.msra.mxu0 %v1975
      %2013 = vmatprep.subr.bf16.mxu0 0
      %2014 = vmatpush1.bf16.msra.mxu0 %v1976
      %2015 = vmatprep.subr.bf16.mxu0 0
      %2016 = vmatpush1.bf16.msra.mxu0 %v1977
      %2017 = vmatprep.subr.bf16.mxu0 0
      %2018 = vmatpush1.bf16.msra.mxu0 %v1978
      %2019 = vmatprep.subr.bf16.mxu0 0
      %2020 = vmatpush1.bf16.msra.mxu0 %v1979
      %2021 = vmatprep.subr.bf16.mxu0 0
      %2022 = vmatpush1.bf16.msra.mxu0 %v1980
      %2023 = vmatprep.subr.bf16.mxu0 0
      %2024 = vmatpush1.bf16.msra.mxu0 %v1981
      %2025 = vmatprep.subr.bf16.mxu0 0
      %2026 = vmatpush1.bf16.msra.mxu0 %v1982
      %2027 = vmatprep.subr.bf16.mxu0 0
      %2028 = vmatpush1.bf16.msra.mxu0 %v1983
      %2029 = vmatprep.subr.bf16.mxu0 0
      %2030 = vmatpush1.bf16.msra.mxu0 %v1984
      %2031 = vmatprep.subr.bf16.mxu0 0
      %2032 = vmatpush1.bf16.msra.mxu0 %v1985
      %2033 = vmatprep.subr.bf16.mxu0 0
      %2034 = vmatpush1.bf16.msra.mxu0 %v1986
      %2035 = vmatprep.mubr.bf16.mxu0 %v443
      %2036 = vmatmul.mubr.bf16.gmra.mrb[0].mxu0 %v442
      %v2037 = vpop.f32.mrb[0].mxu0
      %v2038 = vadd.f32 0.0, %v2037
      %v2039 = vpop.f32.mrb[0].mxu0
      %v2040 = vpop.f32.mrb[0].mxu0
      %v2041 = vadd.f32 0.0, %v2040
      %v2042 = vpop.f32.mrb[0].mxu0
      %2043 = vmatprep.mubr.bf16.mxu0 %v445
      %2044 = vmatmul.mubr.bf16.gmra.mrb[0].mxu0 %v444
      %v2045 = vpop.f32.mrb[0].mxu0
      %v2046 = vadd.f32 0.0, %v2045
      %v2047 = vpop.f32.mrb[0].mxu0
      %v2048 = vpop.f32.mrb[0].mxu0
      %v2049 = vadd.f32 0.0, %v2048
      %v2050 = vpop.f32.mrb[0].mxu0
      %2051 = vmatprep.mubr.bf16.mxu0 %v447
      %2052 = vmatmul.mubr.bf16.gmra.mrb[0].mxu0 %v446
      %v2053 = vpop.f32.mrb[0].mxu0
      %v2054 = vadd.f32 0.0, %v2053
      %v2055 = vpop.f32.mrb[0].mxu0
      %v2056 = vpop.f32.mrb[0].mxu0
      %v2057 = vadd.f32 0.0, %v2056
      %v2058 = vpop.f32.mrb[0].mxu0
      %2059 = vmatprep.mubr.bf16.mxu0 %v449
      %2060 = vmatmul.mubr.bf16.gmra.mrb[0].mxu0 %v448
      %v2061 = vpop.f32.mrb[0].mxu0
      %v2062 = vadd.f32 0.0, %v2061
      %v2063 = vpop.f32.mrb[0].mxu0
      %v2064 = vpop.f32.mrb[0].mxu0
      %v2065 = vadd.f32 0.0, %v2064
      %v2066 = vpop.f32.mrb[0].mxu0
      %2067 = vmatprep.mubr.bf16.mxu0 %v451
      %2068 = vmatmul.mubr.bf16.gmra.mrb[0].mxu0 %v450
      %v2069 = vpop.f32.mrb[0].mxu0
      %v2070 = vadd.f32 0.0, %v2069
      %v2071 = vpop.f32.mrb[0].mxu0
      %v2072 = vpop.f32.mrb[0].mxu0
      %v2073 = vadd.f32 0.0, %v2072
      %v2074 = vpop.f32.mrb[0].mxu0
      %2075 = vmatprep.mubr.bf16.mxu0 %v453
      %2076 = vmatmul.mubr.bf16.gmra.mrb[0].mxu0 %v452
      %v2077 = vpop.f32.mrb[0].mxu0
      %v2078 = vadd.f32 0.0, %v2077
      %v2079 = vpop.f32.mrb[0].mxu0
      %v2080 = vpop.f32.mrb[0].mxu0
      %v2081 = vadd.f32 0.0, %v2080
      %v2082 = vpop.f32.mrb[0].mxu0
      %2083 = vmatprep.mubr.bf16.mxu0 %v455
      %2084 = vmatmul.mubr.bf16.gmra.mrb[0].mxu0 %v454
      %v2085 = vpop.f32.mrb[0].mxu0
      %v2086 = vadd.f32 0.0, %v2085
      %v2087 = vpop.f32.mrb[0].mxu0
      %v2088 = vpop.f32.mrb[0].mxu0
      %v2089 = vadd.f32 0.0, %v2088
      %v2090 = vpop.f32.mrb[0].mxu0
      %2091 = vmatprep.mubr.bf16.mxu0 %v457
      %2092 = vmatmul.mubr.bf16.gmra.mrb[0].mxu0 %v456
      %v2093 = vpop.f32.mrb[0].mxu0
      %v2094 = vadd.f32 0.0, %v2093
      %v2095 = vpop.f32.mrb[0].mxu0
      %v2096 = vpop.f32.mrb[0].mxu0
      %v2097 = vadd.f32 0.0, %v2096
      %v2098 = vpop.f32.mrb[0].mxu0
      %2099 = vdwg.mxu0
      %v2132 = vunpack.c.l.b16 %v1842
      %v2133 = vunpack.c.l.b16 %v1843
      %v2134 = vunpack.c.l.b16 %v1844
      %v2135 = vunpack.c.l.b16 %v1845
      %v2136 = vunpack.c.l.b16 %v1846
      %v2137 = vunpack.c.l.b16 %v1847
      %v2138 = vunpack.c.l.b16 %v1848
      %v2139 = vunpack.c.l.b16 %v1849
      %v2140 = vunpack.c.l.b16 %v1850
      %v2141 = vunpack.c.l.b16 %v1851
      %v2142 = vunpack.c.l.b16 %v1852
      %v2143 = vunpack.c.l.b16 %v1853
      %v2144 = vunpack.c.l.b16 %v1854
      %v2145 = vunpack.c.l.b16 %v1855
      %v2146 = vunpack.c.l.b16 %v1856
      %v2147 = vunpack.c.l.b16 %v1857
      %v2148 = vunpack.c.l.b16 %v1858
      %v2149 = vunpack.c.l.b16 %v1859
      %v2150 = vunpack.c.l.b16 %v1860
      %v2151 = vunpack.c.l.b16 %v1861
      %v2152 = vunpack.c.l.b16 %v1862
      %v2153 = vunpack.c.l.b16 %v1863
      %v2154 = vunpack.c.l.b16 %v1864
      %v2155 = vunpack.c.l.b16 %v1865
      %v2156 = vunpack.c.l.b16 %v1866
      %v2157 = vunpack.c.l.b16 %v1867
      %v2158 = vunpack.c.l.b16 %v1868
      %v2159 = vunpack.c.l.b16 %v1869
      %v2160 = vunpack.c.l.b16 %v1870
      %v2161 = vunpack.c.l.b16 %v1871
      %v2162 = vunpack.c.l.b16 %v1872
      %v2163 = vunpack.c.l.b16 %v1873
      %v2164 = vpack.c.b16 %v2133, %v2132
      %v2165 = vpack.c.b16 %v2135, %v2134
      %v2166 = vpack.c.b16 %v2137, %v2136
      %v2167 = vpack.c.b16 %v2139, %v2138
      %v2168 = vpack.c.b16 %v2141, %v2140
      %v2169 = vpack.c.b16 %v2143, %v2142
      %v2170 = vpack.c.b16 %v2145, %v2144
      %v2171 = vpack.c.b16 %v2147, %v2146
      %v2172 = vpack.c.b16 %v2149, %v2148
      %v2173 = vpack.c.b16 %v2151, %v2150
      %v2174 = vpack.c.b16 %v2153, %v2152
      %v2175 = vpack.c.b16 %v2155, %v2154
      %v2176 = vpack.c.b16 %v2157, %v2156
      %v2177 = vpack.c.b16 %v2159, %v2158
      %v2178 = vpack.c.b16 %v2161, %v2160
      %v2179 = vpack.c.b16 %v2163, %v2162
      %2196 = vmatprep.subr.bf16.mxu0 0
      %2197 = vmatpush1.bf16.msra.mxu0 %v2164
      %2198 = vmatprep.subr.bf16.mxu0 0
      %2199 = vmatpush1.bf16.msra.mxu0 %v2165
      %2200 = vmatprep.subr.bf16.mxu0 0
      %2201 = vmatpush1.bf16.msra.mxu0 %v2166
      %2202 = vmatprep.subr.bf16.mxu0 0
      %2203 = vmatpush1.bf16.msra.mxu0 %v2167
      %2204 = vmatprep.subr.bf16.mxu0 0
      %2205 = vmatpush1.bf16.msra.mxu0 %v2168
      %2206 = vmatprep.subr.bf16.mxu0 0
      %2207 = vmatpush1.bf16.msra.mxu0 %v2169
      %2208 = vmatprep.subr.bf16.mxu0 0
      %2209 = vmatpush1.bf16.msra.mxu0 %v2170
      %2210 = vmatprep.subr.bf16.mxu0 0
      %2211 = vmatpush1.bf16.msra.mxu0 %v2171
      %2212 = vmatprep.subr.bf16.mxu0 0
      %2213 = vmatpush1.bf16.msra.mxu0 %v2172
      %2214 = vmatprep.subr.bf16.mxu0 0
      %2215 = vmatpush1.bf16.msra.mxu0 %v2173
      %2216 = vmatprep.subr.bf16.mxu0 0
      %2217 = vmatpush1.bf16.msra.mxu0 %v2174
      %2218 = vmatprep.subr.bf16.mxu0 0
      %2219 = vmatpush1.bf16.msra.mxu0 %v2175
      %2220 = vmatprep.subr.bf16.mxu0 0
      %2221 = vmatpush1.bf16.msra.mxu0 %v2176
      %2222 = vmatprep.subr.bf16.mxu0 0
      %2223 = vmatpush1.bf16.msra.mxu0 %v2177
      %2224 = vmatprep.subr.bf16.mxu0 0
      %2225 = vmatpush1.bf16.msra.mxu0 %v2178
      %2226 = vmatprep.subr.bf16.mxu0 0
      %2227 = vmatpush1.bf16.msra.mxu0 %v2179
      %2228 = vmatprep.mubr.bf16.mxu0 %v395
      %2229 = vmatmul.mubr.bf16.gmra.mrb[0].mxu0 %v394
      %v2230 = vpop.f32.mrb[0].mxu0
      %v2231 = vadd.f32 %v2038, %v2230
      %v2232 = vpop.f32.mrb[0].mxu0
      %v2233 = vpop.f32.mrb[0].mxu0
      %v2234 = vadd.f32 %v2041, %v2233
      %v2235 = vpop.f32.mrb[0].mxu0
      %2236 = vmatprep.mubr.bf16.mxu0 %v397
      %2237 = vmatmul.mubr.bf16.gmra.mrb[0].mxu0 %v396
      %v2238 = vpop.f32.mrb[0].mxu0
      %v2239 = vadd.f32 %v2046, %v2238
      %v2240 = vpop.f32.mrb[0].mxu0
      %v2241 = vpop.f32.mrb[0].mxu0
      %v2242 = vadd.f32 %v2049, %v2241
      %v2243 = vpop.f32.mrb[0].mxu0
      %2244 = vmatprep.mubr.bf16.mxu0 %v399
      %2245 = vmatmul.mubr.bf16.gmra.mrb[0].mxu0 %v398
      %v2246 = vpop.f32.mrb[0].mxu0
      %v2247 = vadd.f32 %v2054, %v2246
      %v2248 = vpop.f32.mrb[0].mxu0
      %v2249 = vpop.f32.mrb[0].mxu0
      %v2250 = vadd.f32 %v2057, %v2249
      %v2251 = vpop.f32.mrb[0].mxu0
      %2252 = vmatprep.mubr.bf16.mxu0 %v401
      %2253 = vmatmul.mubr.bf16.gmra.mrb[0].mxu0 %v400
      %v2254 = vpop.f32.mrb[0].mxu0
      %v2255 = vadd.f32 %v2062, %v2254
      %v2256 = vpop.f32.mrb[0].mxu0
      %v2257 = vpop.f32.mrb[0].mxu0
      %v2258 = vadd.f32 %v2065, %v2257
      %v2259 = vpop.f32.mrb[0].mxu0
      %2260 = vmatprep.mubr.bf16.mxu0 %v403
      %2261 = vmatmul.mubr.bf16.gmra.mrb[0].mxu0 %v402
      %v2262 = vpop.f32.mrb[0].mxu0
      %v2263 = vadd.f32 %v2070, %v2262
      %v2264 = vpop.f32.mrb[0].mxu0
      %v2265 = vpop.f32.mrb[0].mxu0
      %v2266 = vadd.f32 %v2073, %v2265
      %v2267 = vpop.f32.mrb[0].mxu0
      %2268 = vmatprep.mubr.bf16.mxu0 %v405
      %2269 = vmatmul.mubr.bf16.gmra.mrb[0].mxu0 %v404
      %v2270 = vpop.f32.mrb[0].mxu0
      %v2271 = vadd.f32 %v2078, %v2270
      %v2272 = vpop.f32.mrb[0].mxu0
      %v2273 = vpop.f32.mrb[0].mxu0
      %v2274 = vadd.f32 %v2081, %v2273
      %v2275 = vpop.f32.mrb[0].mxu0
      %2276 = vmatprep.mubr.bf16.mxu0 %v407
      %2277 = vmatmul.mubr.bf16.gmra.mrb[0].mxu0 %v406
      %v2278 = vpop.f32.mrb[0].mxu0
      %v2279 = vadd.f32 %v2086, %v2278
      %v2280 = vpop.f32.mrb[0].mxu0
      %v2281 = vpop.f32.mrb[0].mxu0
      %v2282 = vadd.f32 %v2089, %v2281
      %v2283 = vpop.f32.mrb[0].mxu0
      %2284 = vmatprep.mubr.bf16.mxu0 %v409
      %2285 = vmatmul.mubr.bf16.gmra.mrb[0].mxu0 %v408
      %v2286 = vpop.f32.mrb[0].mxu0
      %v2287 = vadd.f32 %v2094, %v2286
      %v2288 = vpop.f32.mrb[0].mxu0
      %v2289 = vpop.f32.mrb[0].mxu0
      %v2290 = vadd.f32 %v2097, %v2289
      %v2291 = vpop.f32.mrb[0].mxu0
      %2292 = vdwg.mxu0
      %s2293 = scalar_lea.vmem %s1, 1024
      %v2294 = vld [vmem:[%s2293] sm:$0xf]
      %v2295 = vld [vmem:[%s2293 + $0x4] sm:$0xf]
      %v2296 = vld [vmem:[%s2293 + $0x8] sm:$0xf]
      %v2297 = vld [vmem:[%s2293 + $0xc] sm:$0xf]
      %v2298 = vld [vmem:[%s2293 + $0x10] sm:$0xf]
      %v2299 = vld [vmem:[%s2293 + $0x14] sm:$0xf]
      %v2300 = vld [vmem:[%s2293 + $0x18] sm:$0xf]
      %v2301 = vld [vmem:[%s2293 + $0x1c] sm:$0xf]
      %v2302 = vld [vmem:[%s2293 + $0x20] sm:$0xf]
      %v2303 = vld [vmem:[%s2293 + $0x24] sm:$0xf]
      %v2304 = vld [vmem:[%s2293 + $0x28] sm:$0xf]
      %v2305 = vld [vmem:[%s2293 + $0x2c] sm:$0xf]
      %v2306 = vld [vmem:[%s2293 + $0x30] sm:$0xf]
      %v2307 = vld [vmem:[%s2293 + $0x34] sm:$0xf]
      %v2308 = vld [vmem:[%s2293 + $0x38] sm:$0xf]
      %v2309 = vld [vmem:[%s2293 + $0x3c] sm:$0xf]
      %v2310 = vld [vmem:[%s2293 + $0x40] sm:$0xf]
      %v2311 = vld [vmem:[%s2293 + $0x44] sm:$0xf]
      %v2312 = vld [vmem:[%s2293 + $0x48] sm:$0xf]
      %v2313 = vld [vmem:[%s2293 + $0x4c] sm:$0xf]
      %v2314 = vld [vmem:[%s2293 + $0x50] sm:$0xf]
      %v2315 = vld [vmem:[%s2293 + $0x54] sm:$0xf]
      %v2316 = vld [vmem:[%s2293 + $0x58] sm:$0xf]
      %v2317 = vld [vmem:[%s2293 + $0x5c] sm:$0xf]
      %v2318 = vld [vmem:[%s2293 + $0x60] sm:$0xf]
      %v2319 = vld [vmem:[%s2293 + $0x64] sm:$0xf]
      %v2320 = vld [vmem:[%s2293 + $0x68] sm:$0xf]
      %v2321 = vld [vmem:[%s2293 + $0x6c] sm:$0xf]
      %v2322 = vld [vmem:[%s2293 + $0x70] sm:$0xf]
      %v2323 = vld [vmem:[%s2293 + $0x74] sm:$0xf]
      %v2324 = vld [vmem:[%s2293 + $0x78] sm:$0xf]
      %v2325 = vld [vmem:[%s2293 + $0x7c] sm:$0xf]
      %v2358 = vunpack.c.l.b16 %v2294
      %v2359 = vunpack.c.l.b16 %v2295
      %v2360 = vunpack.c.l.b16 %v2296
      %v2361 = vunpack.c.l.b16 %v2297
      %v2362 = vunpack.c.l.b16 %v2298
      %v2363 = vunpack.c.l.b16 %v2299
      %v2364 = vunpack.c.l.b16 %v2300
      %v2365 = vunpack.c.l.b16 %v2301
      %v2366 = vunpack.c.l.b16 %v2302
      %v2367 = vunpack.c.l.b16 %v2303
      %v2368 = vunpack.c.l.b16 %v2304
      %v2369 = vunpack.c.l.b16 %v2305
      %v2370 = vunpack.c.l.b16 %v2306
      %v2371 = vunpack.c.l.b16 %v2307
      %v2372 = vunpack.c.l.b16 %v2308
      %v2373 = vunpack.c.l.b16 %v2309
      %v2374 = vunpack.c.l.b16 %v2310
      %v2375 = vunpack.c.l.b16 %v2311
      %v2376 = vunpack.c.l.b16 %v2312
      %v2377 = vunpack.c.l.b16 %v2313
      %v2378 = vunpack.c.l.b16 %v2314
      %v2379 = vunpack.c.l.b16 %v2315
      %v2380 = vunpack.c.l.b16 %v2316
      %v2381 = vunpack.c.l.b16 %v2317
      %v2382 = vunpack.c.l.b16 %v2318
      %v2383 = vunpack.c.l.b16 %v2319
      %v2384 = vunpack.c.l.b16 %v2320
      %v2385 = vunpack.c.l.b16 %v2321
      %v2386 = vunpack.c.l.b16 %v2322
      %v2387 = vunpack.c.l.b16 %v2323
      %v2388 = vunpack.c.l.b16 %v2324
      %v2389 = vunpack.c.l.b16 %v2325
      %v2390 = vpack.c.b16 %v2359, %v2358
      %v2391 = vpack.c.b16 %v2361, %v2360
      %v2392 = vpack.c.b16 %v2363, %v2362
      %v2393 = vpack.c.b16 %v2365, %v2364
      %v2394 = vpack.c.b16 %v2367, %v2366
      %v2395 = vpack.c.b16 %v2369, %v2368
      %v2396 = vpack.c.b16 %v2371, %v2370
      %v2397 = vpack.c.b16 %v2373, %v2372
      %v2398 = vpack.c.b16 %v2375, %v2374
      %v2399 = vpack.c.b16 %v2377, %v2376
      %v2400 = vpack.c.b16 %v2379, %v2378
      %v2401 = vpack.c.b16 %v2381, %v2380
      %v2402 = vpack.c.b16 %v2383, %v2382
      %v2403 = vpack.c.b16 %v2385, %v2384
      %v2404 = vpack.c.b16 %v2387, %v2386
      %v2405 = vpack.c.b16 %v2389, %v2388
      %2422 = vmatprep.subr.bf16.mxu0 0
      %2423 = vmatpush1.bf16.msra.mxu0 %v2390
      %2424 = vmatprep.subr.bf16.mxu0 0
      %2425 = vmatpush1.bf16.msra.mxu0 %v2391
      %2426 = vmatprep.subr.bf16.mxu0 0
      %2427 = vmatpush1.bf16.msra.mxu0 %v2392
      %2428 = vmatprep.subr.bf16.mxu0 0
      %2429 = vmatpush1.bf16.msra.mxu0 %v2393
      %2430 = vmatprep.subr.bf16.mxu0 0
      %2431 = vmatpush1.bf16.msra.mxu0 %v2394
      %2432 = vmatprep.subr.bf16.mxu0 0
      %2433 = vmatpush1.bf16.msra.mxu0 %v2395
      %2434 = vmatprep.subr.bf16.mxu0 0
      %2435 = vmatpush1.bf16.msra.mxu0 %v2396
      %2436 = vmatprep.subr.bf16.mxu0 0
      %2437 = vmatpush1.bf16.msra.mxu0 %v2397
      %2438 = vmatprep.subr.bf16.mxu0 0
      %2439 = vmatpush1.bf16.msra.mxu0 %v2398
      %2440 = vmatprep.subr.bf16.mxu0 0
      %2441 = vmatpush1.bf16.msra.mxu0 %v2399
      %2442 = vmatprep.subr.bf16.mxu0 0
      %2443 = vmatpush1.bf16.msra.mxu0 %v2400
      %2444 = vmatprep.subr.bf16.mxu0 0
      %2445 = vmatpush1.bf16.msra.mxu0 %v2401
      %2446 = vmatprep.subr.bf16.mxu0 0
      %2447 = vmatpush1.bf16.msra.mxu0 %v2402
      %2448 = vmatprep.subr.bf16.mxu0 0
      %2449 = vmatpush1.bf16.msra.mxu0 %v2403
      %2450 = vmatprep.subr.bf16.mxu0 0
      %2451 = vmatpush1.bf16.msra.mxu0 %v2404
      %2452 = vmatprep.subr.bf16.mxu0 0
      %2453 = vmatpush1.bf16.msra.mxu0 %v2405
      %2454 = vmatprep.mubr.bf16.mxu0 %v879
      %2455 = vmatmul.mubr.bf16.gmra.mrb[0].mxu0 %v878
      %v2456 = vpop.f32.mrb[0].mxu0
      %v2457 = vadd.f32 0.0, %v2456
      %v2458 = vpop.f32.mrb[0].mxu0
      %v2459 = vpop.f32.mrb[0].mxu0
      %v2460 = vadd.f32 0.0, %v2459
      %v2461 = vpop.f32.mrb[0].mxu0
      %2462 = vmatprep.mubr.bf16.mxu0 %v881
      %2463 = vmatmul.mubr.bf16.gmra.mrb[0].mxu0 %v880
      %v2464 = vpop.f32.mrb[0].mxu0
      %v2465 = vadd.f32 0.0, %v2464
      %v2466 = vpop.f32.mrb[0].mxu0
      %v2467 = vpop.f32.mrb[0].mxu0
      %v2468 = vadd.f32 0.0, %v2467
      %v2469 = vpop.f32.mrb[0].mxu0
      %2470 = vmatprep.mubr.bf16.mxu0 %v883
      %2471 = vmatmul.mubr.bf16.gmra.mrb[0].mxu0 %v882
      %v2472 = vpop.f32.mrb[0].mxu0
      %v2473 = vadd.f32 0.0, %v2472
      %v2474 = vpop.f32.mrb[0].mxu0
      %v2475 = vpop.f32.mrb[0].mxu0
      %v2476 = vadd.f32 0.0, %v2475
      %v2477 = vpop.f32.mrb[0].mxu0
      %2478 = vmatprep.mubr.bf16.mxu0 %v885
      %2479 = vmatmul.mubr.bf16.gmra.mrb[0].mxu0 %v884
      %v2480 = vpop.f32.mrb[0].mxu0
      %v2481 = vadd.f32 0.0, %v2480
      %v2482 = vpop.f32.mrb[0].mxu0
      %v2483 = vpop.f32.mrb[0].mxu0
      %v2484 = vadd.f32 0.0, %v2483
      %v2485 = vpop.f32.mrb[0].mxu0
      %2486 = vmatprep.mubr.bf16.mxu0 %v887
      %2487 = vmatmul.mubr.bf16.gmra.mrb[0].mxu0 %v886
      %v2488 = vpop.f32.mrb[0].mxu0
      %v2489 = vadd.f32 0.0, %v2488
      %v2490 = vpop.f32.mrb[0].mxu0
      %v2491 = vpop.f32.mrb[0].mxu0
      %v2492 = vadd.f32 0.0, %v2491
      %v2493 = vpop.f32.mrb[0].mxu0
      %2494 = vmatprep.mubr.bf16.mxu0 %v889
      %2495 = vmatmul.mubr.bf16.gmra.mrb[0].mxu0 %v888
      %v2496 = vpop.f32.mrb[0].mxu0
      %v2497 = vadd.f32 0.0, %v2496
      %v2498 = vpop.f32.mrb[0].mxu0
      %v2499 = vpop.f32.mrb[0].mxu0
      %v2500 = vadd.f32 0.0, %v2499
      %v2501 = vpop.f32.mrb[0].mxu0
      %2502 = vmatprep.mubr.bf16.mxu0 %v891
      %2503 = vmatmul.mubr.bf16.gmra.mrb[0].mxu0 %v890
      %v2504 = vpop.f32.mrb[0].mxu0
      %v2505 = vadd.f32 0.0, %v2504
      %v2506 = vpop.f32.mrb[0].mxu0
      %v2507 = vpop.f32.mrb[0].mxu0
      %v2508 = vadd.f32 0.0, %v2507
      %v2509 = vpop.f32.mrb[0].mxu0
      %2510 = vmatprep.mubr.bf16.mxu0 %v893
      %2511 = vmatmul.mubr.bf16.gmra.mrb[0].mxu0 %v892
      %v2512 = vpop.f32.mrb[0].mxu0
      %v2513 = vadd.f32 0.0, %v2512
      %v2514 = vpop.f32.mrb[0].mxu0
      %v2515 = vpop.f32.mrb[0].mxu0
      %v2516 = vadd.f32 0.0, %v2515
      %v2517 = vpop.f32.mrb[0].mxu0
      %2518 = vdwg.mxu0
      %v2519 = vadd.f32 %v2231, %v2457
      %v2520 = vadd.f32 %v2234, %v2460
      %v2521 = vadd.f32 %v2239, %v2465
      %v2522 = vadd.f32 %v2242, %v2468
      %v2523 = vadd.f32 %v2247, %v2473
      %v2524 = vadd.f32 %v2250, %v2476
      %v2525 = vadd.f32 %v2255, %v2481
      %v2526 = vadd.f32 %v2258, %v2484
      %v2527 = vadd.f32 %v2263, %v2489
      %v2528 = vadd.f32 %v2266, %v2492
      %v2529 = vadd.f32 %v2271, %v2497
      %v2530 = vadd.f32 %v2274, %v2500
      %v2531 = vadd.f32 %v2279, %v2505
      %v2532 = vadd.f32 %v2282, %v2508
      %v2533 = vadd.f32 %v2287, %v2513
      %v2534 = vadd.f32 %v2290, %v2516
      %v2535 = vrot.slane %v2519, 1
      %v2536 = vrot.slane %v2520, 1
      %v2537 = vrot.slane %v2521, 1
      %v2538 = vrot.slane %v2522, 1
      %v2539 = vrot.slane %v2523, 1
      %v2540 = vrot.slane %v2524, 1
      %v2541 = vrot.slane %v2525, 1
      %v2542 = vrot.slane %v2526, 1
      %v2543 = vrot.slane %v2527, 1
      %v2544 = vrot.slane %v2528, 1
      %v2545 = vrot.slane %v2529, 1
      %v2546 = vrot.slane %v2530, 1
      %v2547 = vrot.slane %v2531, 1
      %v2548 = vrot.slane %v2532, 1
      %v2549 = vrot.slane %v2533, 1
      %v2550 = vrot.slane %v2534, 1
      %vm2551 = vcmp.lt.s32.totalorder %v1153, 7
      %v2552 = vsel %vm2551, %v2549, %v2550
      %v2553 = vsel %vm2551, %v2547, %v2548
      %v2554 = vsel %vm2551, %v2545, %v2546
      %v2555 = vsel %vm2551, %v2543, %v2544
      %v2556 = vsel %vm2551, %v2541, %v2542
      %v2557 = vsel %vm2551, %v2539, %v2540
      %v2558 = vsel %vm2551, %v2537, %v2538
      %v2559 = vsel %vm2551, %v2535, %v2536
      %v2560 = vadd.f32 %v1833, %v2559
      %v2561 = vadd.f32 %v1834, %v2558
      %v2562 = vadd.f32 %v1835, %v2557
      %v2563 = vadd.f32 %v1836, %v2556
      %v2564 = vadd.f32 %v1837, %v2555
      %v2565 = vadd.f32 %v1838, %v2554
      %v2566 = vadd.f32 %v1839, %v2553
      %v2567 = vadd.f32 %v1840, %v2552
      %v2568 = vld [vmem:[%s3] sm:$0x7]
      %v2569 = vlaneseq
      %v2570 = vshrl.u32 %v2569, 7
      %v2571 = vsub.s32 0, %v2570
      %v2572 = vrot.slane %v2568, %v2571
      %v2573 = vadd.f32 %v2560, %v2572
      %v2574 = vadd.f32 %v2561, %v2572
      %v2575 = vadd.f32 %v2562, %v2572
      %v2576 = vadd.f32 %v2563, %v2572
      %v2577 = vadd.f32 %v2564, %v2572
      %v2578 = vadd.f32 %v2565, %v2572
      %v2579 = vadd.f32 %v2566, %v2572
      %v2580 = vadd.f32 %v2567, %v2572
      %v2581 = vadd.f32 %v2573, %v2574
      %v2582 = vadd.f32 %v2581, %v2575
      %v2583 = vadd.f32 %v2582, %v2576
      %v2584 = vadd.f32 %v2583, %v2577
      %v2585 = vadd.f32 %v2584, %v2578
      %v2586 = vadd.f32 %v2585, %v2579
      %v2587 = vadd.f32 %v2586, %v2580
      %v2588 = vrot.slane %v2587, 4
      %v2589 = vadd.f32 %v2587, %v2588
      %v2590 = vrot.slane %v2589, 2
      %v2591 = vadd.f32 %v2589, %v2590
      %v2592 = vrot.slane %v2591, 1
      %v2593 = vadd.f32 %v2591, %v2592
      %v2594 = vmul.f32 %v2573, %v2573
      %v2595 = vmul.f32 %v2574, %v2574
      %v2596 = vmul.f32 %v2575, %v2575
      %v2597 = vmul.f32 %v2576, %v2576
      %v2598 = vmul.f32 %v2577, %v2577
      %v2599 = vmul.f32 %v2578, %v2578
      %v2600 = vmul.f32 %v2579, %v2579
      %v2601 = vmul.f32 %v2580, %v2580
      %v2602 = vadd.f32 %v2594, %v2595
      %v2603 = vadd.f32 %v2602, %v2596
      %v2604 = vadd.f32 %v2603, %v2597
      %v2605 = vadd.f32 %v2604, %v2598
      %v2606 = vadd.f32 %v2605, %v2599
      %v2607 = vadd.f32 %v2606, %v2600
      %v2608 = vadd.f32 %v2607, %v2601
      %v2609 = vrot.slane %v2608, 4
      %v2610 = vadd.f32 %v2608, %v2609
      %v2611 = vrot.slane %v2610, 2
      %v2612 = vadd.f32 %v2610, %v2611
      %v2613 = vrot.slane %v2612, 1
      %v2614 = vadd.f32 %v2612, %v2613
      %vm2615 = vcmask 1040384
      %v2616 = vsel %vm2615, %v2593, %v2614
      %v2617 = vld [vmem:[%s5] sm:$0xff]
      %v2618 = vld [vmem:[%s5 + $0x8] sm:$0xff]
      %v2619 = vld [vmem:[%s5 + $0x10] sm:$0xff]
      %v2620 = vld [vmem:[%s5 + $0x18] sm:$0xff]
      %v2621 = vld [vmem:[%s5 + $0x20] sm:$0xff]
      %v2622 = vld [vmem:[%s5 + $0x28] sm:$0xff]
      %v2623 = vld [vmem:[%s5 + $0x30] sm:$0xff]
      %v2624 = vld [vmem:[%s5 + $0x38] sm:$0xff]
      %v2625 = vld [vmem:[%s5 + $0x40] sm:$0xff]
      %v2626 = vld [vmem:[%s5 + $0x48] sm:$0xff]
      %v2627 = vld [vmem:[%s5 + $0x50] sm:$0xff]
      %v2628 = vld [vmem:[%s5 + $0x58] sm:$0xff]
      %v2629 = vld [vmem:[%s5 + $0x60] sm:$0xff]
      %v2630 = vld [vmem:[%s5 + $0x68] sm:$0xff]
      %v2631 = vld [vmem:[%s5 + $0x70] sm:$0xff]
      %v2632 = vld [vmem:[%s5 + $0x78] sm:$0xff]
      %2633 = vmatprep.subr.mxu0 0.0
      %2634 = vmatpush1.msra.mxu0 %v2617
      %2635 = vmatprep.subr.mxu0 0.0
      %2636 = vmatpush1.msra.mxu0 %v2618
      %2637 = vmatprep.subr.mxu0 0.0
      %2638 = vmatpush1.msra.mxu0 %v2619
      %2639 = vmatprep.subr.mxu0 0.0
      %2640 = vmatpush1.msra.mxu0 %v2620
      %2641 = vmatprep.subr.mxu0 0.0
      %2642 = vmatpush1.msra.mxu0 %v2621
      %2643 = vmatprep.subr.mxu0 0.0
      %2644 = vmatpush1.msra.mxu0 %v2622
      %2645 = vmatprep.subr.mxu0 0.0
      %2646 = vmatpush1.msra.mxu0 %v2623
      %2647 = vmatprep.subr.mxu0 0.0
      %2648 = vmatpush1.msra.mxu0 %v2624
      %2649 = vmatprep.subr.mxu0 0.0
      %2650 = vmatpush1.msra.mxu0 %v2625
      %2651 = vmatprep.subr.mxu0 0.0
      %2652 = vmatpush1.msra.mxu0 %v2626
      %2653 = vmatprep.subr.mxu0 0.0
      %2654 = vmatpush1.msra.mxu0 %v2627
      %2655 = vmatprep.subr.mxu0 0.0
      %2656 = vmatpush1.msra.mxu0 %v2628
      %2657 = vmatprep.subr.mxu0 0.0
      %2658 = vmatpush1.msra.mxu0 %v2629
      %2659 = vmatprep.subr.mxu0 0.0
      %2660 = vmatpush1.msra.mxu0 %v2630
      %2661 = vmatprep.subr.mxu0 0.0
      %2662 = vmatpush1.msra.mxu0 %v2631
      %2663 = vmatprep.subr.mxu0 0.0
      %2664 = vmatpush1.msra.mxu0 %v2632
      %2665 = vmatprep.subr.mxu0 0.0
      %2666 = vmatpush1.msra.mxu0 0.0
      %2667 = vmatprep.subr.mxu0 0.0
      %2668 = vmatpush1.msra.mxu0 0.0
      %2669 = vmatprep.subr.mxu0 0.0
      %2670 = vmatpush1.msra.mxu0 0.0
      %2671 = vmatprep.subr.mxu0 0.0
      %2672 = vmatpush1.msra.mxu0 0.0
      %2673 = vmatprep.subr.mxu0 0.0
      %2674 = vmatpush1.msra.mxu0 0.0
      %2675 = vmatprep.subr.mxu0 0.0
      %2676 = vmatpush1.msra.mxu0 0.0
      %2677 = vmatprep.subr.mxu0 0.0
      %2678 = vmatpush1.msra.mxu0 0.0
      %2679 = vmatprep.subr.mxu0 0.0
      %2680 = vmatpush1.msra.mxu0 0.0
      %2681 = vmatprep.subr.mxu0 0.0
      %2682 = vmatpush1.msra.mxu0 0.0
      %2683 = vmatprep.subr.mxu0 0.0
      %2684 = vmatpush1.msra.mxu0 0.0
      %2685 = vmatprep.subr.mxu0 0.0
      %2686 = vmatpush1.msra.mxu0 0.0
      %2687 = vmatprep.subr.mxu0 0.0
      %2688 = vmatpush1.msra.mxu0 0.0
      %2689 = vmatprep.subr.mxu0 0.0
      %2690 = vmatpush1.msra.mxu0 0.0
      %2691 = vmatprep.subr.mxu0 0.0
      %2692 = vmatpush1.msra.mxu0 0.0
      %2693 = vmatprep.subr.mxu0 0.0
      %2694 = vmatpush1.msra.mxu0 0.0
      %2695 = vmatprep.subr.mxu0 0.0
      %2696 = vmatpush1.msra.mxu0 0.0
      %2697 = vmatprep.mubr.f32.mxu0 0.0
      %2698 = vmatmul.mubr.f32.gmra.mrb[0].mxu0 %v2616
      %v2699 = vpop.f32.mrb[0].mxu0
      %v2700 = vadd.f32 0.0, %v2699
      %v2701 = vpop.f32.mrb[0].mxu0
      %2702 = vdwg.mxu0
      %v2703 = vld [vmem:[%s6] sm:$0xff]
      %vm2704 = vcmask 64512
      %v2706 = vsel %vm2704, %v2700, 0
      %2708 = vmatprep.subr.mxu0 0.0
      %2709 = vmatpush1.msra.mxu0 %v2703
      %2710 = vmatprep.subr.mxu0 0.0
      %2711 = vmatpush1.msra.mxu0 0.0
      %2712 = vmatprep.subr.mxu0 0.0
      %2713 = vmatpush1.msra.mxu0 0.0
      %2714 = vmatprep.subr.mxu0 0.0
      %2715 = vmatpush1.msra.mxu0 0.0
      %2716 = vmatprep.subr.mxu0 0.0
      %2717 = vmatpush1.msra.mxu0 0.0
      %2718 = vmatprep.subr.mxu0 0.0
      %2719 = vmatpush1.msra.mxu0 0.0
      %2720 = vmatprep.subr.mxu0 0.0
      %2721 = vmatpush1.msra.mxu0 0.0
      %2722 = vmatprep.subr.mxu0 0.0
      %2723 = vmatpush1.msra.mxu0 0.0
      %2724 = vmatprep.subr.mxu0 0.0
      %2725 = vmatpush1.msra.mxu0 0.0
      %2726 = vmatprep.subr.mxu0 0.0
      %2727 = vmatpush1.msra.mxu0 0.0
      %2728 = vmatprep.subr.mxu0 0.0
      %2729 = vmatpush1.msra.mxu0 0.0
      %2730 = vmatprep.subr.mxu0 0.0
      %2731 = vmatpush1.msra.mxu0 0.0
      %2732 = vmatprep.subr.mxu0 0.0
      %2733 = vmatpush1.msra.mxu0 0.0
      %2734 = vmatprep.subr.mxu0 0.0
      %2735 = vmatpush1.msra.mxu0 0.0
      %2736 = vmatprep.subr.mxu0 0.0
      %2737 = vmatpush1.msra.mxu0 0.0
      %2738 = vmatprep.subr.mxu0 0.0
      %2739 = vmatpush1.msra.mxu0 0.0
      %2740 = vmatprep.subr.mxu0 0.0
      %2741 = vmatpush1.msra.mxu0 0.0
      %2742 = vmatprep.subr.mxu0 0.0
      %2743 = vmatpush1.msra.mxu0 0.0
      %2744 = vmatprep.subr.mxu0 0.0
      %2745 = vmatpush1.msra.mxu0 0.0
      %2746 = vmatprep.subr.mxu0 0.0
      %2747 = vmatpush1.msra.mxu0 0.0
      %2748 = vmatprep.subr.mxu0 0.0
      %2749 = vmatpush1.msra.mxu0 0.0
      %2750 = vmatprep.subr.mxu0 0.0
      %2751 = vmatpush1.msra.mxu0 0.0
      %2752 = vmatprep.subr.mxu0 0.0
      %2753 = vmatpush1.msra.mxu0 0.0
      %2754 = vmatprep.subr.mxu0 0.0
      %2755 = vmatpush1.msra.mxu0 0.0
      %2756 = vmatprep.subr.mxu0 0.0
      %2757 = vmatpush1.msra.mxu0 0.0
      %2758 = vmatprep.subr.mxu0 0.0
      %2759 = vmatpush1.msra.mxu0 0.0
      %2760 = vmatprep.subr.mxu0 0.0
      %2761 = vmatpush1.msra.mxu0 0.0
      %2762 = vmatprep.subr.mxu0 0.0
      %2763 = vmatpush1.msra.mxu0 0.0
      %2764 = vmatprep.subr.mxu0 0.0
      %2765 = vmatpush1.msra.mxu0 0.0
      %2766 = vmatprep.subr.mxu0 0.0
      %2767 = vmatpush1.msra.mxu0 0.0
      %2768 = vmatprep.subr.mxu0 0.0
      %2769 = vmatpush1.msra.mxu0 0.0
      %2770 = vmatprep.subr.mxu0 0.0
      %2771 = vmatpush1.msra.mxu0 0.0
      %2772 = vmatprep.mubr.f32.mxu0 0.0
      %2773 = vmatmul.mubr.f32.gmra.mrb[0].mxu0 %v2706
      %v2774 = vpop.f32.mrb[0].mxu0
      %v2775 = vadd.f32 0.0, %v2774
      %v2776 = vpop.f32.mrb[0].mxu0
      %2777 = vdwg.mxu0
      %v2778 = vmul.f32 %v2775, %v2775
      %v2780 = vrot.slane %v2778, 7
      %v2782 = vsub.f32 %v2775, %v2780
      %v2783 = vadd.f32 %v2782, 1e-05
      %v2784 = vrsqrt.pop %v2783
      %v2785 = vmul.f32 %v2784, %v2568
      %v2786 = vlaneseq
      %v2787 = vshrl.u32 %v2786, 7
      %v2788 = vsub.s32 1, %v2787
      %v2789 = vrot.slane %v2785, %v2788
      %v2790 = vmul.f32 %v2573, %v2789
      %v2791 = vmul.f32 %v2574, %v2789
      %v2792 = vmul.f32 %v2575, %v2789
      %v2793 = vmul.f32 %v2576, %v2789
      %v2794 = vmul.f32 %v2577, %v2789
      %v2795 = vmul.f32 %v2578, %v2789
      %v2796 = vmul.f32 %v2579, %v2789
      %v2797 = vmul.f32 %v2580, %v2789
      %v2799 = vrot.slane %v2785, 1
      %v2801 = vmul.f32 %v2775, %v2799
      %v2803 = vrot.slane %v2801, 6
      %v2805 = vsub.f32 %v2568, %v2803
      %v2806 = vlaneseq
      %v2807 = vshrl.u32 %v2806, 7
      %v2808 = vsub.s32 2, %v2807
      %v2809 = vrot.slane %v2805, %v2808
      %v2810 = vadd.f32 %v2790, %v2809
      %v2811 = vadd.f32 %v2791, %v2809
      %v2812 = vadd.f32 %v2792, %v2809
      %v2813 = vadd.f32 %v2793, %v2809
      %v2814 = vadd.f32 %v2794, %v2809
      %v2815 = vadd.f32 %v2795, %v2809
      %v2816 = vadd.f32 %v2796, %v2809
      %v2817 = vadd.f32 %v2797, %v2809
      %v2818 = vmax.f32 %v2810, 0.0
      %v2819 = vmax.f32 %v2811, 0.0
      %v2820 = vmax.f32 %v2812, 0.0
      %v2821 = vmax.f32 %v2813, 0.0
      %v2822 = vmax.f32 %v2814, 0.0
      %v2823 = vmax.f32 %v2815, 0.0
      %v2824 = vmax.f32 %v2816, 0.0
      %v2825 = vmax.f32 %v2817, 0.0
      %v2826 = vpack.c.bf16 %v2818, %v2818
      %v2827 = vpack.c.bf16 %v2819, %v2819
      %v2828 = vpack.c.bf16 %v2820, %v2820
      %v2829 = vpack.c.bf16 %v2821, %v2821
      %v2830 = vpack.c.bf16 %v2822, %v2822
      %v2831 = vpack.c.bf16 %v2823, %v2823
      %v2832 = vpack.c.bf16 %v2824, %v2824
      %v2833 = vpack.c.bf16 %v2825, %v2825
      %2834 = vst [vmem:[%s305] sm:$0xf] %v2826
      %2835 = vst [vmem:[%s305 + $0x8] sm:$0xf] %v2827
      %2836 = vst [vmem:[%s305 + $0x10] sm:$0xf] %v2828
      %2837 = vst [vmem:[%s305 + $0x18] sm:$0xf] %v2829
      %2838 = vst [vmem:[%s305 + $0x20] sm:$0xf] %v2830
      %2839 = vst [vmem:[%s305 + $0x28] sm:$0xf] %v2831
      %2840 = vst [vmem:[%s305 + $0x30] sm:$0xf] %v2832
      %2841 = vst [vmem:[%s305 + $0x38] sm:$0xf] %v2833
      %v2842 = vld [vmem:[#allocation3] sm:$0xff]
      %v2843 = vld [vmem:[#allocation3 + $0x8] sm:$0xff]
      %v2844 = vld [vmem:[#allocation3 + $0x10] sm:$0xff]
      %v2845 = vld [vmem:[#allocation3 + $0x18] sm:$0xff]
      %v2846 = vld [vmem:[#allocation3 + $0x20] sm:$0xff]
      %v2847 = vld [vmem:[#allocation3 + $0x28] sm:$0xff]
      %v2848 = vld [vmem:[#allocation3 + $0x30] sm:$0xff]
      %v2849 = vld [vmem:[#allocation3 + $0x38] sm:$0xff]
      %v2850 = vld [vmem:[%s2] sm:$0xf]
      %v2851 = vld [vmem:[%s2 + $0x4] sm:$0xf]
      %v2852 = vld [vmem:[%s2 + $0x8] sm:$0xf]
      %v2853 = vld [vmem:[%s2 + $0xc] sm:$0xf]
      %v2854 = vld [vmem:[%s2 + $0x10] sm:$0xf]
      %v2855 = vld [vmem:[%s2 + $0x14] sm:$0xf]
      %v2856 = vld [vmem:[%s2 + $0x18] sm:$0xf]
      %v2857 = vld [vmem:[%s2 + $0x1c] sm:$0xf]
      %v2858 = vld [vmem:[%s2 + $0x20] sm:$0xf]
      %v2859 = vld [vmem:[%s2 + $0x24] sm:$0xf]
      %v2860 = vld [vmem:[%s2 + $0x28] sm:$0xf]
      %v2861 = vld [vmem:[%s2 + $0x2c] sm:$0xf]
      %v2862 = vld [vmem:[%s2 + $0x30] sm:$0xf]
      %v2863 = vld [vmem:[%s2 + $0x34] sm:$0xf]
      %v2864 = vld [vmem:[%s2 + $0x38] sm:$0xf]
      %v2865 = vld [vmem:[%s2 + $0x3c] sm:$0xf]
      %v2866 = vld [vmem:[%s305] sm:$0xff]
      %v2867 = vld [vmem:[%s305 + $0x8] sm:$0xff]
      %v2868 = vld [vmem:[%s305 + $0x10] sm:$0xff]
      %v2869 = vld [vmem:[%s305 + $0x18] sm:$0xff]
      %v2870 = vld [vmem:[%s305 + $0x20] sm:$0xff]
      %v2871 = vld [vmem:[%s305 + $0x28] sm:$0xff]
      %v2872 = vld [vmem:[%s305 + $0x30] sm:$0xff]
      %v2873 = vld [vmem:[%s305 + $0x38] sm:$0xff]
      %s2874 = scalar_lea.vmem %s2, 192
      %v2875 = vld [vmem:[%s2874] sm:$0xf]
      %v2876 = vld [vmem:[%s2874 + $0x4] sm:$0xf]
      %v2877 = vld [vmem:[%s2874 + $0x8] sm:$0xf]
      %v2878 = vld [vmem:[%s2874 + $0xc] sm:$0xf]
      %v2879 = vld [vmem:[%s2874 + $0x10] sm:$0xf]
      %v2880 = vld [vmem:[%s2874 + $0x14] sm:$0xf]
      %v2881 = vld [vmem:[%s2874 + $0x18] sm:$0xf]
      %v2882 = vld [vmem:[%s2874 + $0x1c] sm:$0xf]
      %v2883 = vld [vmem:[%s2874 + $0x20] sm:$0xf]
      %v2884 = vld [vmem:[%s2874 + $0x24] sm:$0xf]
      %v2885 = vld [vmem:[%s2874 + $0x28] sm:$0xf]
      %v2886 = vld [vmem:[%s2874 + $0x2c] sm:$0xf]
      %v2887 = vld [vmem:[%s2874 + $0x30] sm:$0xf]
      %v2888 = vld [vmem:[%s2874 + $0x34] sm:$0xf]
      %v2889 = vld [vmem:[%s2874 + $0x38] sm:$0xf]
      %v2890 = vld [vmem:[%s2874 + $0x3c] sm:$0xf]
      %v2907 = vunpack.c.l.b16 %v2875
      %v2908 = vunpack.c.l.b16 %v2876
      %v2909 = vunpack.c.l.b16 %v2877
      %v2910 = vunpack.c.l.b16 %v2878
      %v2911 = vunpack.c.l.b16 %v2879
      %v2912 = vunpack.c.l.b16 %v2880
      %v2913 = vunpack.c.l.b16 %v2881
      %v2914 = vunpack.c.l.b16 %v2882
      %v2915 = vunpack.c.l.b16 %v2883
      %v2916 = vunpack.c.l.b16 %v2884
      %v2917 = vunpack.c.l.b16 %v2885
      %v2918 = vunpack.c.l.b16 %v2886
      %v2919 = vunpack.c.l.b16 %v2887
      %v2920 = vunpack.c.l.b16 %v2888
      %v2921 = vunpack.c.l.b16 %v2889
      %v2922 = vunpack.c.l.b16 %v2890
      %v2923 = vpack.c.b16 %v2908, %v2907
      %v2924 = vpack.c.b16 %v2910, %v2909
      %v2925 = vpack.c.b16 %v2912, %v2911
      %v2926 = vpack.c.b16 %v2914, %v2913
      %v2927 = vpack.c.b16 %v2916, %v2915
      %v2928 = vpack.c.b16 %v2918, %v2917
      %v2929 = vpack.c.b16 %v2920, %v2919
      %v2930 = vpack.c.b16 %v2922, %v2921
      %2939 = vmatprep.subr.bf16.mxu0 0
      %2940 = vmatpush1.bf16.msra.mxu0 %v2923
      %2941 = vmatprep.subr.bf16.mxu0 0
      %2942 = vmatpush1.bf16.msra.mxu0 %v2924
      %2943 = vmatprep.subr.bf16.mxu0 0
      %2944 = vmatpush1.bf16.msra.mxu0 %v2925
      %2945 = vmatprep.subr.bf16.mxu0 0
      %2946 = vmatpush1.bf16.msra.mxu0 %v2926
      %2947 = vmatprep.subr.bf16.mxu0 0
      %2948 = vmatpush1.bf16.msra.mxu0 %v2927
      %2949 = vmatprep.subr.bf16.mxu0 0
      %2950 = vmatpush1.bf16.msra.mxu0 %v2928
      %2951 = vmatprep.subr.bf16.mxu0 0
      %2952 = vmatpush1.bf16.msra.mxu0 %v2929
      %2953 = vmatprep.subr.bf16.mxu0 0
      %2954 = vmatpush1.bf16.msra.mxu0 %v2930
      %2955 = vmatprep.subr.bf16.mxu0 0
      %2956 = vmatpush1.bf16.msra.mxu0 0
      %2957 = vmatprep.subr.bf16.mxu0 0
      %2958 = vmatpush1.bf16.msra.mxu0 0
      %2959 = vmatprep.subr.bf16.mxu0 0
      %2960 = vmatpush1.bf16.msra.mxu0 0
      %2961 = vmatprep.subr.bf16.mxu0 0
      %2962 = vmatpush1.bf16.msra.mxu0 0
      %2963 = vmatprep.subr.bf16.mxu0 0
      %2964 = vmatpush1.bf16.msra.mxu0 0
      %2965 = vmatprep.subr.bf16.mxu0 0
      %2966 = vmatpush1.bf16.msra.mxu0 0
      %2967 = vmatprep.subr.bf16.mxu0 0
      %2968 = vmatpush1.bf16.msra.mxu0 0
      %2969 = vmatprep.subr.bf16.mxu0 0
      %2970 = vmatpush1.bf16.msra.mxu0 0
      %2971 = vmatprep.mubr.bf16.mxu0 0
      %2972 = vmatmul.mubr.bf16.gmra.mrb[0].mxu0 %v2866
      %v2973 = vpop.f32.mrb[0].mxu0
      %v2974 = vadd.f32 0.0, %v2973
      %v2975 = vpop.f32.mrb[0].mxu0
      %v2976 = vpop.f32.mrb[0].mxu0
      %v2977 = vadd.f32 0.0, %v2976
      %v2978 = vpop.f32.mrb[0].mxu0
      %2979 = vmatprep.mubr.bf16.mxu0 0
      %2980 = vmatmul.mubr.bf16.gmra.mrb[0].mxu0 %v2867
      %v2981 = vpop.f32.mrb[0].mxu0
      %v2982 = vadd.f32 0.0, %v2981
      %v2983 = vpop.f32.mrb[0].mxu0
      %v2984 = vpop.f32.mrb[0].mxu0
      %v2985 = vadd.f32 0.0, %v2984
      %v2986 = vpop.f32.mrb[0].mxu0
      %2987 = vmatprep.mubr.bf16.mxu0 0
      %2988 = vmatmul.mubr.bf16.gmra.mrb[0].mxu0 %v2868
      %v2989 = vpop.f32.mrb[0].mxu0
      %v2990 = vadd.f32 0.0, %v2989
      %v2991 = vpop.f32.mrb[0].mxu0
      %v2992 = vpop.f32.mrb[0].mxu0
      %v2993 = vadd.f32 0.0, %v2992
      %v2994 = vpop.f32.mrb[0].mxu0
      %2995 = vmatprep.mubr.bf16.mxu0 0
      %2996 = vmatmul.mubr.bf16.gmra.mrb[0].mxu0 %v2869
      %v2997 = vpop.f32.mrb[0].mxu0
      %v2998 = vadd.f32 0.0, %v2997
      %v2999 = vpop.f32.mrb[0].mxu0
      %v3000 = vpop.f32.mrb[0].mxu0
      %v3001 = vadd.f32 0.0, %v3000
      %v3002 = vpop.f32.mrb[0].mxu0
      %3003 = vmatprep.mubr.bf16.mxu0 0
      %3004 = vmatmul.mubr.bf16.gmra.mrb[0].mxu0 %v2870
      %v3005 = vpop.f32.mrb[0].mxu0
      %v3006 = vadd.f32 0.0, %v3005
      %v3007 = vpop.f32.mrb[0].mxu0
      %v3008 = vpop.f32.mrb[0].mxu0
      %v3009 = vadd.f32 0.0, %v3008
      %v3010 = vpop.f32.mrb[0].mxu0
      %3011 = vmatprep.mubr.bf16.mxu0 0
      %3012 = vmatmul.mubr.bf16.gmra.mrb[0].mxu0 %v2871
      %v3013 = vpop.f32.mrb[0].mxu0
      %v3014 = vadd.f32 0.0, %v3013
      %v3015 = vpop.f32.mrb[0].mxu0
      %v3016 = vpop.f32.mrb[0].mxu0
      %v3017 = vadd.f32 0.0, %v3016
      %v3018 = vpop.f32.mrb[0].mxu0
      %3019 = vmatprep.mubr.bf16.mxu0 0
      %3020 = vmatmul.mubr.bf16.gmra.mrb[0].mxu0 %v2872
      %v3021 = vpop.f32.mrb[0].mxu0
      %v3022 = vadd.f32 0.0, %v3021
      %v3023 = vpop.f32.mrb[0].mxu0
      %v3024 = vpop.f32.mrb[0].mxu0
      %v3025 = vadd.f32 0.0, %v3024
      %v3026 = vpop.f32.mrb[0].mxu0
      %3027 = vmatprep.mubr.bf16.mxu0 0
      %3028 = vmatmul.mubr.bf16.gmra.mrb[0].mxu0 %v2873
      %v3029 = vpop.f32.mrb[0].mxu0
      %v3030 = vadd.f32 0.0, %v3029
      %v3031 = vpop.f32.mrb[0].mxu0
      %v3032 = vpop.f32.mrb[0].mxu0
      %v3033 = vadd.f32 0.0, %v3032
      %v3034 = vpop.f32.mrb[0].mxu0
      %3035 = vdwg.mxu0
      %v3052 = vunpack.c.l.b16 %v2850
      %v3053 = vunpack.c.l.b16 %v2851
      %v3054 = vunpack.c.l.b16 %v2852
      %v3055 = vunpack.c.l.b16 %v2853
      %v3056 = vunpack.c.l.b16 %v2854
      %v3057 = vunpack.c.l.b16 %v2855
      %v3058 = vunpack.c.l.b16 %v2856
      %v3059 = vunpack.c.l.b16 %v2857
      %v3060 = vunpack.c.l.b16 %v2858
      %v3061 = vunpack.c.l.b16 %v2859
      %v3062 = vunpack.c.l.b16 %v2860
      %v3063 = vunpack.c.l.b16 %v2861
      %v3064 = vunpack.c.l.b16 %v2862
      %v3065 = vunpack.c.l.b16 %v2863
      %v3066 = vunpack.c.l.b16 %v2864
      %v3067 = vunpack.c.l.b16 %v2865
      %v3068 = vpack.c.b16 %v3053, %v3052
      %v3069 = vpack.c.b16 %v3055, %v3054
      %v3070 = vpack.c.b16 %v3057, %v3056
      %v3071 = vpack.c.b16 %v3059, %v3058
      %v3072 = vpack.c.b16 %v3061, %v3060
      %v3073 = vpack.c.b16 %v3063, %v3062
      %v3074 = vpack.c.b16 %v3065, %v3064
      %v3075 = vpack.c.b16 %v3067, %v3066
      %3084 = vmatprep.subr.bf16.mxu0 0
      %3085 = vmatpush1.bf16.msra.mxu0 %v3068
      %3086 = vmatprep.subr.bf16.mxu0 0
      %3087 = vmatpush1.bf16.msra.mxu0 %v3069
      %3088 = vmatprep.subr.bf16.mxu0 0
      %3089 = vmatpush1.bf16.msra.mxu0 %v3070
      %3090 = vmatprep.subr.bf16.mxu0 0
      %3091 = vmatpush1.bf16.msra.mxu0 %v3071
      %3092 = vmatprep.subr.bf16.mxu0 0
      %3093 = vmatpush1.bf16.msra.mxu0 %v3072
      %3094 = vmatprep.subr.bf16.mxu0 0
      %3095 = vmatpush1.bf16.msra.mxu0 %v3073
      %3096 = vmatprep.subr.bf16.mxu0 0
      %3097 = vmatpush1.bf16.msra.mxu0 %v3074
      %3098 = vmatprep.subr.bf16.mxu0 0
      %3099 = vmatpush1.bf16.msra.mxu0 %v3075
      %3100 = vmatprep.subr.bf16.mxu0 0
      %3101 = vmatpush1.bf16.msra.mxu0 0
      %3102 = vmatprep.subr.bf16.mxu0 0
      %3103 = vmatpush1.bf16.msra.mxu0 0
      %3104 = vmatprep.subr.bf16.mxu0 0
      %3105 = vmatpush1.bf16.msra.mxu0 0
      %3106 = vmatprep.subr.bf16.mxu0 0
      %3107 = vmatpush1.bf16.msra.mxu0 0
      %3108 = vmatprep.subr.bf16.mxu0 0
      %3109 = vmatpush1.bf16.msra.mxu0 0
      %3110 = vmatprep.subr.bf16.mxu0 0
      %3111 = vmatpush1.bf16.msra.mxu0 0
      %3112 = vmatprep.subr.bf16.mxu0 0
      %3113 = vmatpush1.bf16.msra.mxu0 0
      %3114 = vmatprep.subr.bf16.mxu0 0
      %3115 = vmatpush1.bf16.msra.mxu0 0
      %3116 = vmatprep.mubr.bf16.mxu0 0
      %3117 = vmatmul.mubr.bf16.gmra.mrb[0].mxu0 %v2842
      %v3118 = vpop.f32.mrb[0].mxu0
      %v3119 = vadd.f32 %v2974, %v3118
      %v3120 = vpop.f32.mrb[0].mxu0
      %v3121 = vpop.f32.mrb[0].mxu0
      %v3122 = vadd.f32 %v2977, %v3121
      %v3123 = vpop.f32.mrb[0].mxu0
      %3124 = vmatprep.mubr.bf16.mxu0 0
      %3125 = vmatmul.mubr.bf16.gmra.mrb[0].mxu0 %v2843
      %v3126 = vpop.f32.mrb[0].mxu0
      %v3127 = vadd.f32 %v2982, %v3126
      %v3128 = vpop.f32.mrb[0].mxu0
      %v3129 = vpop.f32.mrb[0].mxu0
      %v3130 = vadd.f32 %v2985, %v3129
      %v3131 = vpop.f32.mrb[0].mxu0
      %3132 = vmatprep.mubr.bf16.mxu0 0
      %3133 = vmatmul.mubr.bf16.gmra.mrb[0].mxu0 %v2844
      %v3134 = vpop.f32.mrb[0].mxu0
      %v3135 = vadd.f32 %v2990, %v3134
      %v3136 = vpop.f32.mrb[0].mxu0
      %v3137 = vpop.f32.mrb[0].mxu0
      %v3138 = vadd.f32 %v2993, %v3137
      %v3139 = vpop.f32.mrb[0].mxu0
      %3140 = vmatprep.mubr.bf16.mxu0 0
      %3141 = vmatmul.mubr.bf16.gmra.mrb[0].mxu0 %v2845
      %v3142 = vpop.f32.mrb[0].mxu0
      %v3143 = vadd.f32 %v2998, %v3142
      %v3144 = vpop.f32.mrb[0].mxu0
      %v3145 = vpop.f32.mrb[0].mxu0
      %v3146 = vadd.f32 %v3001, %v3145
      %v3147 = vpop.f32.mrb[0].mxu0
      %3148 = vmatprep.mubr.bf16.mxu0 0
      %3149 = vmatmul.mubr.bf16.gmra.mrb[0].mxu0 %v2846
      %v3150 = vpop.f32.mrb[0].mxu0
      %v3151 = vadd.f32 %v3006, %v3150
      %v3152 = vpop.f32.mrb[0].mxu0
      %v3153 = vpop.f32.mrb[0].mxu0
      %v3154 = vadd.f32 %v3009, %v3153
      %v3155 = vpop.f32.mrb[0].mxu0
      %3156 = vmatprep.mubr.bf16.mxu0 0
      %3157 = vmatmul.mubr.bf16.gmra.mrb[0].mxu0 %v2847
      %v3158 = vpop.f32.mrb[0].mxu0
      %v3159 = vadd.f32 %v3014, %v3158
      %v3160 = vpop.f32.mrb[0].mxu0
      %v3161 = vpop.f32.mrb[0].mxu0
      %v3162 = vadd.f32 %v3017, %v3161
      %v3163 = vpop.f32.mrb[0].mxu0
      %3164 = vmatprep.mubr.bf16.mxu0 0
      %3165 = vmatmul.mubr.bf16.gmra.mrb[0].mxu0 %v2848
      %v3166 = vpop.f32.mrb[0].mxu0
      %v3167 = vadd.f32 %v3022, %v3166
      %v3168 = vpop.f32.mrb[0].mxu0
      %v3169 = vpop.f32.mrb[0].mxu0
      %v3170 = vadd.f32 %v3025, %v3169
      %v3171 = vpop.f32.mrb[0].mxu0
      %3172 = vmatprep.mubr.bf16.mxu0 0
      %3173 = vmatmul.mubr.bf16.gmra.mrb[0].mxu0 %v2849
      %v3174 = vpop.f32.mrb[0].mxu0
      %v3175 = vadd.f32 %v3030, %v3174
      %v3176 = vpop.f32.mrb[0].mxu0
      %v3177 = vpop.f32.mrb[0].mxu0
      %v3178 = vadd.f32 %v3033, %v3177
      %v3179 = vpop.f32.mrb[0].mxu0
      %3180 = vdwg.mxu0
      %s3181 = scalar_lea.vmem [#allocation3], 16
      %v3182 = vld [vmem:[%s3181] sm:$0xff]
      %v3183 = vld [vmem:[%s3181 + $0x8] sm:$0xff]
      %v3184 = vld [vmem:[%s3181 + $0x10] sm:$0xff]
      %v3185 = vld [vmem:[%s3181 + $0x18] sm:$0xff]
      %v3186 = vld [vmem:[%s3181 + $0x20] sm:$0xff]
      %v3187 = vld [vmem:[%s3181 + $0x28] sm:$0xff]
      %v3188 = vld [vmem:[%s3181 + $0x30] sm:$0xff]
      %v3189 = vld [vmem:[%s3181 + $0x38] sm:$0xff]
      %s3190 = scalar_lea.vmem %s2, 384
      %v3191 = vld [vmem:[%s3190] sm:$0xf]
      %v3192 = vld [vmem:[%s3190 + $0x4] sm:$0xf]
      %v3193 = vld [vmem:[%s3190 + $0x8] sm:$0xf]
      %v3194 = vld [vmem:[%s3190 + $0xc] sm:$0xf]
      %v3195 = vld [vmem:[%s3190 + $0x10] sm:$0xf]
      %v3196 = vld [vmem:[%s3190 + $0x14] sm:$0xf]
      %v3197 = vld [vmem:[%s3190 + $0x18] sm:$0xf]
      %v3198 = vld [vmem:[%s3190 + $0x1c] sm:$0xf]
      %v3199 = vld [vmem:[%s3190 + $0x20] sm:$0xf]
      %v3200 = vld [vmem:[%s3190 + $0x24] sm:$0xf]
      %v3201 = vld [vmem:[%s3190 + $0x28] sm:$0xf]
      %v3202 = vld [vmem:[%s3190 + $0x2c] sm:$0xf]
      %v3203 = vld [vmem:[%s3190 + $0x30] sm:$0xf]
      %v3204 = vld [vmem:[%s3190 + $0x34] sm:$0xf]
      %v3205 = vld [vmem:[%s3190 + $0x38] sm:$0xf]
      %v3206 = vld [vmem:[%s3190 + $0x3c] sm:$0xf]
      %v3223 = vunpack.c.l.b16 %v3191
      %v3224 = vunpack.c.l.b16 %v3192
      %v3225 = vunpack.c.l.b16 %v3193
      %v3226 = vunpack.c.l.b16 %v3194
      %v3227 = vunpack.c.l.b16 %v3195
      %v3228 = vunpack.c.l.b16 %v3196
      %v3229 = vunpack.c.l.b16 %v3197
      %v3230 = vunpack.c.l.b16 %v3198
      %v3231 = vunpack.c.l.b16 %v3199
      %v3232 = vunpack.c.l.b16 %v3200
      %v3233 = vunpack.c.l.b16 %v3201
      %v3234 = vunpack.c.l.b16 %v3202
      %v3235 = vunpack.c.l.b16 %v3203
      %v3236 = vunpack.c.l.b16 %v3204
      %v3237 = vunpack.c.l.b16 %v3205
      %v3238 = vunpack.c.l.b16 %v3206
      %v3239 = vpack.c.b16 %v3224, %v3223
      %v3240 = vpack.c.b16 %v3226, %v3225
      %v3241 = vpack.c.b16 %v3228, %v3227
      %v3242 = vpack.c.b16 %v3230, %v3229
      %v3243 = vpack.c.b16 %v3232, %v3231
      %v3244 = vpack.c.b16 %v3234, %v3233
      %v3245 = vpack.c.b16 %v3236, %v3235
      %v3246 = vpack.c.b16 %v3238, %v3237
      %3255 = vmatprep.subr.bf16.mxu0 0
      %3256 = vmatpush1.bf16.msra.mxu0 %v3239
      %3257 = vmatprep.subr.bf16.mxu0 0
      %3258 = vmatpush1.bf16.msra.mxu0 %v3240
      %3259 = vmatprep.subr.bf16.mxu0 0
      %3260 = vmatpush1.bf16.msra.mxu0 %v3241
      %3261 = vmatprep.subr.bf16.mxu0 0
      %3262 = vmatpush1.bf16.msra.mxu0 %v3242
      %3263 = vmatprep.subr.bf16.mxu0 0
      %3264 = vmatpush1.bf16.msra.mxu0 %v3243
      %3265 = vmatprep.subr.bf16.mxu0 0
      %3266 = vmatpush1.bf16.msra.mxu0 %v3244
      %3267 = vmatprep.subr.bf16.mxu0 0
      %3268 = vmatpush1.bf16.msra.mxu0 %v3245
      %3269 = vmatprep.subr.bf16.mxu0 0
      %3270 = vmatpush1.bf16.msra.mxu0 %v3246
      %3271 = vmatprep.subr.bf16.mxu0 0
      %3272 = vmatpush1.bf16.msra.mxu0 0
      %3273 = vmatprep.subr.bf16.mxu0 0
      %3274 = vmatpush1.bf16.msra.mxu0 0
      %3275 = vmatprep.subr.bf16.mxu0 0
      %3276 = vmatpush1.bf16.msra.mxu0 0
      %3277 = vmatprep.subr.bf16.mxu0 0
      %3278 = vmatpush1.bf16.msra.mxu0 0
      %3279 = vmatprep.subr.bf16.mxu0 0
      %3280 = vmatpush1.bf16.msra.mxu0 0
      %3281 = vmatprep.subr.bf16.mxu0 0
      %3282 = vmatpush1.bf16.msra.mxu0 0
      %3283 = vmatprep.subr.bf16.mxu0 0
      %3284 = vmatpush1.bf16.msra.mxu0 0
      %3285 = vmatprep.subr.bf16.mxu0 0
      %3286 = vmatpush1.bf16.msra.mxu0 0
      %3287 = vmatprep.mubr.bf16.mxu0 0
      %3288 = vmatmul.mubr.bf16.gmra.mrb[0].mxu0 %v3182
      %v3289 = vpop.f32.mrb[0].mxu0
      %v3290 = vadd.f32 0.0, %v3289
      %v3291 = vpop.f32.mrb[0].mxu0
      %v3292 = vpop.f32.mrb[0].mxu0
      %v3293 = vadd.f32 0.0, %v3292
      %v3294 = vpop.f32.mrb[0].mxu0
      %3295 = vmatprep.mubr.bf16.mxu0 0
      %3296 = vmatmul.mubr.bf16.gmra.mrb[0].mxu0 %v3183
      %v3297 = vpop.f32.mrb[0].mxu0
      %v3298 = vadd.f32 0.0, %v3297
      %v3299 = vpop.f32.mrb[0].mxu0
      %v3300 = vpop.f32.mrb[0].mxu0
      %v3301 = vadd.f32 0.0, %v3300
      %v3302 = vpop.f32.mrb[0].mxu0
      %3303 = vmatprep.mubr.bf16.mxu0 0
      %3304 = vmatmul.mubr.bf16.gmra.mrb[0].mxu0 %v3184
      %v3305 = vpop.f32.mrb[0].mxu0
      %v3306 = vadd.f32 0.0, %v3305
      %v3307 = vpop.f32.mrb[0].mxu0
      %v3308 = vpop.f32.mrb[0].mxu0
      %v3309 = vadd.f32 0.0, %v3308
      %v3310 = vpop.f32.mrb[0].mxu0
      %3311 = vmatprep.mubr.bf16.mxu0 0
      %3312 = vmatmul.mubr.bf16.gmra.mrb[0].mxu0 %v3185
      %v3313 = vpop.f32.mrb[0].mxu0
      %v3314 = vadd.f32 0.0, %v3313
      %v3315 = vpop.f32.mrb[0].mxu0
      %v3316 = vpop.f32.mrb[0].mxu0
      %v3317 = vadd.f32 0.0, %v3316
      %v3318 = vpop.f32.mrb[0].mxu0
      %3319 = vmatprep.mubr.bf16.mxu0 0
      %3320 = vmatmul.mubr.bf16.gmra.mrb[0].mxu0 %v3186
      %v3321 = vpop.f32.mrb[0].mxu0
      %v3322 = vadd.f32 0.0, %v3321
      %v3323 = vpop.f32.mrb[0].mxu0
      %v3324 = vpop.f32.mrb[0].mxu0
      %v3325 = vadd.f32 0.0, %v3324
      %v3326 = vpop.f32.mrb[0].mxu0
      %3327 = vmatprep.mubr.bf16.mxu0 0
      %3328 = vmatmul.mubr.bf16.gmra.mrb[0].mxu0 %v3187
      %v3329 = vpop.f32.mrb[0].mxu0
      %v3330 = vadd.f32 0.0, %v3329
      %v3331 = vpop.f32.mrb[0].mxu0
      %v3332 = vpop.f32.mrb[0].mxu0
      %v3333 = vadd.f32 0.0, %v3332
      %v3334 = vpop.f32.mrb[0].mxu0
      %3335 = vmatprep.mubr.bf16.mxu0 0
      %3336 = vmatmul.mubr.bf16.gmra.mrb[0].mxu0 %v3188
      %v3337 = vpop.f32.mrb[0].mxu0
      %v3338 = vadd.f32 0.0, %v3337
      %v3339 = vpop.f32.mrb[0].mxu0
      %v3340 = vpop.f32.mrb[0].mxu0
      %v3341 = vadd.f32 0.0, %v3340
      %v3342 = vpop.f32.mrb[0].mxu0
      %3343 = vmatprep.mubr.bf16.mxu0 0
      %3344 = vmatmul.mubr.bf16.gmra.mrb[0].mxu0 %v3189
      %v3345 = vpop.f32.mrb[0].mxu0
      %v3346 = vadd.f32 0.0, %v3345
      %v3347 = vpop.f32.mrb[0].mxu0
      %v3348 = vpop.f32.mrb[0].mxu0
      %v3349 = vadd.f32 0.0, %v3348
      %v3350 = vpop.f32.mrb[0].mxu0
      %3351 = vdwg.mxu0
      %v3352 = vadd.f32 %v3119, %v3290
      %v3353 = vadd.f32 %v3122, %v3293
      %v3354 = vadd.f32 %v3127, %v3298
      %v3355 = vadd.f32 %v3130, %v3301
      %v3356 = vadd.f32 %v3135, %v3306
      %v3357 = vadd.f32 %v3138, %v3309
      %v3358 = vadd.f32 %v3143, %v3314
      %v3359 = vadd.f32 %v3146, %v3317
      %v3360 = vadd.f32 %v3151, %v3322
      %v3361 = vadd.f32 %v3154, %v3325
      %v3362 = vadd.f32 %v3159, %v3330
      %v3363 = vadd.f32 %v3162, %v3333
      %v3364 = vadd.f32 %v3167, %v3338
      %v3365 = vadd.f32 %v3170, %v3341
      %v3366 = vadd.f32 %v3175, %v3346
      %v3367 = vadd.f32 %v3178, %v3349
      %v3368 = vrot.slane %v3352, 7
      %v3369 = vrot.slane %v3353, 7
      %v3370 = vrot.slane %v3354, 7
      %v3371 = vrot.slane %v3355, 7
      %v3372 = vrot.slane %v3356, 7
      %v3373 = vrot.slane %v3357, 7
      %v3374 = vrot.slane %v3358, 7
      %v3375 = vrot.slane %v3359, 7
      %v3376 = vrot.slane %v3360, 7
      %v3377 = vrot.slane %v3361, 7
      %v3378 = vrot.slane %v3362, 7
      %v3379 = vrot.slane %v3363, 7
      %v3380 = vrot.slane %v3364, 7
      %v3381 = vrot.slane %v3365, 7
      %v3382 = vrot.slane %v3366, 7
      %v3383 = vrot.slane %v3367, 7
      %v3384 = vsel %vm1154, %v3381, %v3382
      %v3385 = vsel %vm1154, %v3379, %v3380
      %v3386 = vsel %vm1154, %v3377, %v3378
      %v3387 = vsel %vm1154, %v3375, %v3376
      %v3388 = vsel %vm1154, %v3373, %v3374
      %v3389 = vsel %vm1154, %v3371, %v3372
      %v3390 = vsel %vm1154, %v3369, %v3370
      %v3391 = vsel %vm1154, %v3383, %v3368
      %v3392 = vadd.f32 %v3391, 0.0
      %v3393 = vadd.f32 %v3390, 0.0
      %v3394 = vadd.f32 %v3389, 0.0
      %v3395 = vadd.f32 %v3388, 0.0
      %v3396 = vadd.f32 %v3387, 0.0
      %v3397 = vadd.f32 %v3386, 0.0
      %v3398 = vadd.f32 %v3385, 0.0
      %v3399 = vadd.f32 %v3384, 0.0
      %s3400 = scalar_lea.vmem %s2, 64
      %v3401 = vld [vmem:[%s3400] sm:$0xf]
      %v3402 = vld [vmem:[%s3400 + $0x4] sm:$0xf]
      %v3403 = vld [vmem:[%s3400 + $0x8] sm:$0xf]
      %v3404 = vld [vmem:[%s3400 + $0xc] sm:$0xf]
      %v3405 = vld [vmem:[%s3400 + $0x10] sm:$0xf]
      %v3406 = vld [vmem:[%s3400 + $0x14] sm:$0xf]
      %v3407 = vld [vmem:[%s3400 + $0x18] sm:$0xf]
      %v3408 = vld [vmem:[%s3400 + $0x1c] sm:$0xf]
      %v3409 = vld [vmem:[%s3400 + $0x20] sm:$0xf]
      %v3410 = vld [vmem:[%s3400 + $0x24] sm:$0xf]
      %v3411 = vld [vmem:[%s3400 + $0x28] sm:$0xf]
      %v3412 = vld [vmem:[%s3400 + $0x2c] sm:$0xf]
      %v3413 = vld [vmem:[%s3400 + $0x30] sm:$0xf]
      %v3414 = vld [vmem:[%s3400 + $0x34] sm:$0xf]
      %v3415 = vld [vmem:[%s3400 + $0x38] sm:$0xf]
      %v3416 = vld [vmem:[%s3400 + $0x3c] sm:$0xf]
      %s3417 = scalar_lea.vmem %s2, 256
      %v3418 = vld [vmem:[%s3417] sm:$0xf]
      %v3419 = vld [vmem:[%s3417 + $0x4] sm:$0xf]
      %v3420 = vld [vmem:[%s3417 + $0x8] sm:$0xf]
      %v3421 = vld [vmem:[%s3417 + $0xc] sm:$0xf]
      %v3422 = vld [vmem:[%s3417 + $0x10] sm:$0xf]
      %v3423 = vld [vmem:[%s3417 + $0x14] sm:$0xf]
      %v3424 = vld [vmem:[%s3417 + $0x18] sm:$0xf]
      %v3425 = vld [vmem:[%s3417 + $0x1c] sm:$0xf]
      %v3426 = vld [vmem:[%s3417 + $0x20] sm:$0xf]
      %v3427 = vld [vmem:[%s3417 + $0x24] sm:$0xf]
      %v3428 = vld [vmem:[%s3417 + $0x28] sm:$0xf]
      %v3429 = vld [vmem:[%s3417 + $0x2c] sm:$0xf]
      %v3430 = vld [vmem:[%s3417 + $0x30] sm:$0xf]
      %v3431 = vld [vmem:[%s3417 + $0x34] sm:$0xf]
      %v3432 = vld [vmem:[%s3417 + $0x38] sm:$0xf]
      %v3433 = vld [vmem:[%s3417 + $0x3c] sm:$0xf]
      %v3450 = vunpack.c.l.b16 %v3418
      %v3451 = vunpack.c.l.b16 %v3419
      %v3452 = vunpack.c.l.b16 %v3420
      %v3453 = vunpack.c.l.b16 %v3421
      %v3454 = vunpack.c.l.b16 %v3422
      %v3455 = vunpack.c.l.b16 %v3423
      %v3456 = vunpack.c.l.b16 %v3424
      %v3457 = vunpack.c.l.b16 %v3425
      %v3458 = vunpack.c.l.b16 %v3426
      %v3459 = vunpack.c.l.b16 %v3427
      %v3460 = vunpack.c.l.b16 %v3428
      %v3461 = vunpack.c.l.b16 %v3429
      %v3462 = vunpack.c.l.b16 %v3430
      %v3463 = vunpack.c.l.b16 %v3431
      %v3464 = vunpack.c.l.b16 %v3432
      %v3465 = vunpack.c.l.b16 %v3433
      %v3466 = vpack.c.b16 %v3451, %v3450
      %v3467 = vpack.c.b16 %v3453, %v3452
      %v3468 = vpack.c.b16 %v3455, %v3454
      %v3469 = vpack.c.b16 %v3457, %v3456
      %v3470 = vpack.c.b16 %v3459, %v3458
      %v3471 = vpack.c.b16 %v3461, %v3460
      %v3472 = vpack.c.b16 %v3463, %v3462
      %v3473 = vpack.c.b16 %v3465, %v3464
      %3482 = vmatprep.subr.bf16.mxu0 0
      %3483 = vmatpush1.bf16.msra.mxu0 %v3466
      %3484 = vmatprep.subr.bf16.mxu0 0
      %3485 = vmatpush1.bf16.msra.mxu0 %v3467
      %3486 = vmatprep.subr.bf16.mxu0 0
      %3487 = vmatpush1.bf16.msra.mxu0 %v3468
      %3488 = vmatprep.subr.bf16.mxu0 0
      %3489 = vmatpush1.bf16.msra.mxu0 %v3469
      %3490 = vmatprep.subr.bf16.mxu0 0
      %3491 = vmatpush1.bf16.msra.mxu0 %v3470
      %3492 = vmatprep.subr.bf16.mxu0 0
      %3493 = vmatpush1.bf16.msra.mxu0 %v3471
      %3494 = vmatprep.subr.bf16.mxu0 0
      %3495 = vmatpush1.bf16.msra.mxu0 %v3472
      %3496 = vmatprep.subr.bf16.mxu0 0
      %3497 = vmatpush1.bf16.msra.mxu0 %v3473
      %3498 = vmatprep.subr.bf16.mxu0 0
      %3499 = vmatpush1.bf16.msra.mxu0 0
      %3500 = vmatprep.subr.bf16.mxu0 0
      %3501 = vmatpush1.bf16.msra.mxu0 0
      %3502 = vmatprep.subr.bf16.mxu0 0
      %3503 = vmatpush1.bf16.msra.mxu0 0
      %3504 = vmatprep.subr.bf16.mxu0 0
      %3505 = vmatpush1.bf16.msra.mxu0 0
      %3506 = vmatprep.subr.bf16.mxu0 0
      %3507 = vmatpush1.bf16.msra.mxu0 0
      %3508 = vmatprep.subr.bf16.mxu0 0
      %3509 = vmatpush1.bf16.msra.mxu0 0
      %3510 = vmatprep.subr.bf16.mxu0 0
      %3511 = vmatpush1.bf16.msra.mxu0 0
      %3512 = vmatprep.subr.bf16.mxu0 0
      %3513 = vmatpush1.bf16.msra.mxu0 0
      %3514 = vmatprep.mubr.bf16.mxu0 0
      %3515 = vmatmul.mubr.bf16.gmra.mrb[0].mxu0 %v2866
      %v3516 = vpop.f32.mrb[0].mxu0
      %v3517 = vadd.f32 0.0, %v3516
      %v3518 = vpop.f32.mrb[0].mxu0
      %v3519 = vpop.f32.mrb[0].mxu0
      %v3520 = vpop.f32.mrb[0].mxu0
      %3521 = vmatprep.mubr.bf16.mxu0 0
      %3522 = vmatmul.mubr.bf16.gmra.mrb[0].mxu0 %v2867
      %v3523 = vpop.f32.mrb[0].mxu0
      %v3524 = vadd.f32 0.0, %v3523
      %v3525 = vpop.f32.mrb[0].mxu0
      %v3526 = vpop.f32.mrb[0].mxu0
      %v3527 = vpop.f32.mrb[0].mxu0
      %3528 = vmatprep.mubr.bf16.mxu0 0
      %3529 = vmatmul.mubr.bf16.gmra.mrb[0].mxu0 %v2868
      %v3530 = vpop.f32.mrb[0].mxu0
      %v3531 = vadd.f32 0.0, %v3530
      %v3532 = vpop.f32.mrb[0].mxu0
      %v3533 = vpop.f32.mrb[0].mxu0
      %v3534 = vpop.f32.mrb[0].mxu0
      %3535 = vmatprep.mubr.bf16.mxu0 0
      %3536 = vmatmul.mubr.bf16.gmra.mrb[0].mxu0 %v2869
      %v3537 = vpop.f32.mrb[0].mxu0
      %v3538 = vadd.f32 0.0, %v3537
      %v3539 = vpop.f32.mrb[0].mxu0
      %v3540 = vpop.f32.mrb[0].mxu0
      %v3541 = vpop.f32.mrb[0].mxu0
      %3542 = vmatprep.mubr.bf16.mxu0 0
      %3543 = vmatmul.mubr.bf16.gmra.mrb[0].mxu0 %v2870
      %v3544 = vpop.f32.mrb[0].mxu0
      %v3545 = vadd.f32 0.0, %v3544
      %v3546 = vpop.f32.mrb[0].mxu0
      %v3547 = vpop.f32.mrb[0].mxu0
      %v3548 = vpop.f32.mrb[0].mxu0
      %3549 = vmatprep.mubr.bf16.mxu0 0
      %3550 = vmatmul.mubr.bf16.gmra.mrb[0].mxu0 %v2871
      %v3551 = vpop.f32.mrb[0].mxu0
      %v3552 = vadd.f32 0.0, %v3551
      %v3553 = vpop.f32.mrb[0].mxu0
      %v3554 = vpop.f32.mrb[0].mxu0
      %v3555 = vpop.f32.mrb[0].mxu0
      %3556 = vmatprep.mubr.bf16.mxu0 0
      %3557 = vmatmul.mubr.bf16.gmra.mrb[0].mxu0 %v2872
      %v3558 = vpop.f32.mrb[0].mxu0
      %v3559 = vadd.f32 0.0, %v3558
      %v3560 = vpop.f32.mrb[0].mxu0
      %v3561 = vpop.f32.mrb[0].mxu0
      %v3562 = vpop.f32.mrb[0].mxu0
      %3563 = vmatprep.mubr.bf16.mxu0 0
      %3564 = vmatmul.mubr.bf16.gmra.mrb[0].mxu0 %v2873
      %v3565 = vpop.f32.mrb[0].mxu0
      %v3566 = vadd.f32 0.0, %v3565
      %v3567 = vpop.f32.mrb[0].mxu0
      %v3568 = vpop.f32.mrb[0].mxu0
      %v3569 = vpop.f32.mrb[0].mxu0
      %3570 = vdwg.mxu0
      %v3587 = vunpack.c.l.b16 %v3401
      %v3588 = vunpack.c.l.b16 %v3402
      %v3589 = vunpack.c.l.b16 %v3403
      %v3590 = vunpack.c.l.b16 %v3404
      %v3591 = vunpack.c.l.b16 %v3405
      %v3592 = vunpack.c.l.b16 %v3406
      %v3593 = vunpack.c.l.b16 %v3407
      %v3594 = vunpack.c.l.b16 %v3408
      %v3595 = vunpack.c.l.b16 %v3409
      %v3596 = vunpack.c.l.b16 %v3410
      %v3597 = vunpack.c.l.b16 %v3411
      %v3598 = vunpack.c.l.b16 %v3412
      %v3599 = vunpack.c.l.b16 %v3413
      %v3600 = vunpack.c.l.b16 %v3414
      %v3601 = vunpack.c.l.b16 %v3415
      %v3602 = vunpack.c.l.b16 %v3416
      %v3603 = vpack.c.b16 %v3588, %v3587
      %v3604 = vpack.c.b16 %v3590, %v3589
      %v3605 = vpack.c.b16 %v3592, %v3591
      %v3606 = vpack.c.b16 %v3594, %v3593
      %v3607 = vpack.c.b16 %v3596, %v3595
      %v3608 = vpack.c.b16 %v3598, %v3597
      %v3609 = vpack.c.b16 %v3600, %v3599
      %v3610 = vpack.c.b16 %v3602, %v3601
      %3619 = vmatprep.subr.bf16.mxu0 0
      %3620 = vmatpush1.bf16.msra.mxu0 %v3603
      %3621 = vmatprep.subr.bf16.mxu0 0
      %3622 = vmatpush1.bf16.msra.mxu0 %v3604
      %3623 = vmatprep.subr.bf16.mxu0 0
      %3624 = vmatpush1.bf16.msra.mxu0 %v3605
      %3625 = vmatprep.subr.bf16.mxu0 0
      %3626 = vmatpush1.bf16.msra.mxu0 %v3606
      %3627 = vmatprep.subr.bf16.mxu0 0
      %3628 = vmatpush1.bf16.msra.mxu0 %v3607
      %3629 = vmatprep.subr.bf16.mxu0 0
      %3630 = vmatpush1.bf16.msra.mxu0 %v3608
      %3631 = vmatprep.subr.bf16.mxu0 0
      %3632 = vmatpush1.bf16.msra.mxu0 %v3609
      %3633 = vmatprep.subr.bf16.mxu0 0
      %3634 = vmatpush1.bf16.msra.mxu0 %v3610
      %3635 = vmatprep.subr.bf16.mxu0 0
      %3636 = vmatpush1.bf16.msra.mxu0 0
      %3637 = vmatprep.subr.bf16.mxu0 0
      %3638 = vmatpush1.bf16.msra.mxu0 0
      %3639 = vmatprep.subr.bf16.mxu0 0
      %3640 = vmatpush1.bf16.msra.mxu0 0
      %3641 = vmatprep.subr.bf16.mxu0 0
      %3642 = vmatpush1.bf16.msra.mxu0 0
      %3643 = vmatprep.subr.bf16.mxu0 0
      %3644 = vmatpush1.bf16.msra.mxu0 0
      %3645 = vmatprep.subr.bf16.mxu0 0
      %3646 = vmatpush1.bf16.msra.mxu0 0
      %3647 = vmatprep.subr.bf16.mxu0 0
      %3648 = vmatpush1.bf16.msra.mxu0 0
      %3649 = vmatprep.subr.bf16.mxu0 0
      %3650 = vmatpush1.bf16.msra.mxu0 0
      %3651 = vmatprep.mubr.bf16.mxu0 0
      %3652 = vmatmul.mubr.bf16.gmra.mrb[0].mxu0 %v2842
      %v3653 = vpop.f32.mrb[0].mxu0
      %v3654 = vadd.f32 %v3517, %v3653
      %v3655 = vpop.f32.mrb[0].mxu0
      %v3656 = vpop.f32.mrb[0].mxu0
      %v3657 = vpop.f32.mrb[0].mxu0
      %3658 = vmatprep.mubr.bf16.mxu0 0
      %3659 = vmatmul.mubr.bf16.gmra.mrb[0].mxu0 %v2843
      %v3660 = vpop.f32.mrb[0].mxu0
      %v3661 = vadd.f32 %v3524, %v3660
      %v3662 = vpop.f32.mrb[0].mxu0
      %v3663 = vpop.f32.mrb[0].mxu0
      %v3664 = vpop.f32.mrb[0].mxu0
      %3665 = vmatprep.mubr.bf16.mxu0 0
      %3666 = vmatmul.mubr.bf16.gmra.mrb[0].mxu0 %v2844
      %v3667 = vpop.f32.mrb[0].mxu0
      %v3668 = vadd.f32 %v3531, %v3667
      %v3669 = vpop.f32.mrb[0].mxu0
      %v3670 = vpop.f32.mrb[0].mxu0
      %v3671 = vpop.f32.mrb[0].mxu0
      %3672 = vmatprep.mubr.bf16.mxu0 0
      %3673 = vmatmul.mubr.bf16.gmra.mrb[0].mxu0 %v2845
      %v3674 = vpop.f32.mrb[0].mxu0
      %v3675 = vadd.f32 %v3538, %v3674
      %v3676 = vpop.f32.mrb[0].mxu0
      %v3677 = vpop.f32.mrb[0].mxu0
      %v3678 = vpop.f32.mrb[0].mxu0
      %3679 = vmatprep.mubr.bf16.mxu0 0
      %3680 = vmatmul.mubr.bf16.gmra.mrb[0].mxu0 %v2846
      %v3681 = vpop.f32.mrb[0].mxu0
      %v3682 = vadd.f32 %v3545, %v3681
      %v3683 = vpop.f32.mrb[0].mxu0
      %v3684 = vpop.f32.mrb[0].mxu0
      %v3685 = vpop.f32.mrb[0].mxu0
      %3686 = vmatprep.mubr.bf16.mxu0 0
      %3687 = vmatmul.mubr.bf16.gmra.mrb[0].mxu0 %v2847
      %v3688 = vpop.f32.mrb[0].mxu0
      %v3689 = vadd.f32 %v3552, %v3688
      %v3690 = vpop.f32.mrb[0].mxu0
      %v3691 = vpop.f32.mrb[0].mxu0
      %v3692 = vpop.f32.mrb[0].mxu0
      %3693 = vmatprep.mubr.bf16.mxu0 0
      %3694 = vmatmul.mubr.bf16.gmra.mrb[0].mxu0 %v2848
      %v3695 = vpop.f32.mrb[0].mxu0
      %v3696 = vadd.f32 %v3559, %v3695
      %v3697 = vpop.f32.mrb[0].mxu0
      %v3698 = vpop.f32.mrb[0].mxu0
      %v3699 = vpop.f32.mrb[0].mxu0
      %3700 = vmatprep.mubr.bf16.mxu0 0
      %3701 = vmatmul.mubr.bf16.gmra.mrb[0].mxu0 %v2849
      %v3702 = vpop.f32.mrb[0].mxu0
      %v3703 = vadd.f32 %v3566, %v3702
      %v3704 = vpop.f32.mrb[0].mxu0
      %v3705 = vpop.f32.mrb[0].mxu0
      %v3706 = vpop.f32.mrb[0].mxu0
      %3707 = vdwg.mxu0
      %s3708 = scalar_lea.vmem %s2, 448
      %v3709 = vld [vmem:[%s3708] sm:$0xf]
      %v3710 = vld [vmem:[%s3708 + $0x4] sm:$0xf]
      %v3711 = vld [vmem:[%s3708 + $0x8] sm:$0xf]
      %v3712 = vld [vmem:[%s3708 + $0xc] sm:$0xf]
      %v3713 = vld [vmem:[%s3708 + $0x10] sm:$0xf]
      %v3714 = vld [vmem:[%s3708 + $0x14] sm:$0xf]
      %v3715 = vld [vmem:[%s3708 + $0x18] sm:$0xf]
      %v3716 = vld [vmem:[%s3708 + $0x1c] sm:$0xf]
      %v3717 = vld [vmem:[%s3708 + $0x20] sm:$0xf]
      %v3718 = vld [vmem:[%s3708 + $0x24] sm:$0xf]
      %v3719 = vld [vmem:[%s3708 + $0x28] sm:$0xf]
      %v3720 = vld [vmem:[%s3708 + $0x2c] sm:$0xf]
      %v3721 = vld [vmem:[%s3708 + $0x30] sm:$0xf]
      %v3722 = vld [vmem:[%s3708 + $0x34] sm:$0xf]
      %v3723 = vld [vmem:[%s3708 + $0x38] sm:$0xf]
      %v3724 = vld [vmem:[%s3708 + $0x3c] sm:$0xf]
      %v3741 = vunpack.c.l.b16 %v3709
      %v3742 = vunpack.c.l.b16 %v3710
      %v3743 = vunpack.c.l.b16 %v3711
      %v3744 = vunpack.c.l.b16 %v3712
      %v3745 = vunpack.c.l.b16 %v3713
      %v3746 = vunpack.c.l.b16 %v3714
      %v3747 = vunpack.c.l.b16 %v3715
      %v3748 = vunpack.c.l.b16 %v3716
      %v3749 = vunpack.c.l.b16 %v3717
      %v3750 = vunpack.c.l.b16 %v3718
      %v3751 = vunpack.c.l.b16 %v3719
      %v3752 = vunpack.c.l.b16 %v3720
      %v3753 = vunpack.c.l.b16 %v3721
      %v3754 = vunpack.c.l.b16 %v3722
      %v3755 = vunpack.c.l.b16 %v3723
      %v3756 = vunpack.c.l.b16 %v3724
      %v3757 = vpack.c.b16 %v3742, %v3741
      %v3758 = vpack.c.b16 %v3744, %v3743
      %v3759 = vpack.c.b16 %v3746, %v3745
      %v3760 = vpack.c.b16 %v3748, %v3747
      %v3761 = vpack.c.b16 %v3750, %v3749
      %v3762 = vpack.c.b16 %v3752, %v3751
      %v3763 = vpack.c.b16 %v3754, %v3753
      %v3764 = vpack.c.b16 %v3756, %v3755
      %3773 = vmatprep.subr.bf16.mxu0 0
      %3774 = vmatpush1.bf16.msra.mxu0 %v3757
      %3775 = vmatprep.subr.bf16.mxu0 0
      %3776 = vmatpush1.bf16.msra.mxu0 %v3758
      %3777 = vmatprep.subr.bf16.mxu0 0
      %3778 = vmatpush1.bf16.msra.mxu0 %v3759
      %3779 = vmatprep.subr.bf16.mxu0 0
      %3780 = vmatpush1.bf16.msra.mxu0 %v3760
      %3781 = vmatprep.subr.bf16.mxu0 0
      %3782 = vmatpush1.bf16.msra.mxu0 %v3761
      %3783 = vmatprep.subr.bf16.mxu0 0
      %3784 = vmatpush1.bf16.msra.mxu0 %v3762
      %3785 = vmatprep.subr.bf16.mxu0 0
      %3786 = vmatpush1.bf16.msra.mxu0 %v3763
      %3787 = vmatprep.subr.bf16.mxu0 0
      %3788 = vmatpush1.bf16.msra.mxu0 %v3764
      %3789 = vmatprep.subr.bf16.mxu0 0
      %3790 = vmatpush1.bf16.msra.mxu0 0
      %3791 = vmatprep.subr.bf16.mxu0 0
      %3792 = vmatpush1.bf16.msra.mxu0 0
      %3793 = vmatprep.subr.bf16.mxu0 0
      %3794 = vmatpush1.bf16.msra.mxu0 0
      %3795 = vmatprep.subr.bf16.mxu0 0
      %3796 = vmatpush1.bf16.msra.mxu0 0
      %3797 = vmatprep.subr.bf16.mxu0 0
      %3798 = vmatpush1.bf16.msra.mxu0 0
      %3799 = vmatprep.subr.bf16.mxu0 0
      %3800 = vmatpush1.bf16.msra.mxu0 0
      %3801 = vmatprep.subr.bf16.mxu0 0
      %3802 = vmatpush1.bf16.msra.mxu0 0
      %3803 = vmatprep.subr.bf16.mxu0 0
      %3804 = vmatpush1.bf16.msra.mxu0 0
      %3805 = vmatprep.mubr.bf16.mxu0 0
      %3806 = vmatmul.mubr.bf16.gmra.mrb[0].mxu0 %v3182
      %v3807 = vpop.f32.mrb[0].mxu0
      %v3808 = vadd.f32 0.0, %v3807
      %v3809 = vpop.f32.mrb[0].mxu0
      %v3810 = vpop.f32.mrb[0].mxu0
      %v3811 = vpop.f32.mrb[0].mxu0
      %3812 = vmatprep.mubr.bf16.mxu0 0
      %3813 = vmatmul.mubr.bf16.gmra.mrb[0].mxu0 %v3183
      %v3814 = vpop.f32.mrb[0].mxu0
      %v3815 = vadd.f32 0.0, %v3814
      %v3816 = vpop.f32.mrb[0].mxu0
      %v3817 = vpop.f32.mrb[0].mxu0
      %v3818 = vpop.f32.mrb[0].mxu0
      %3819 = vmatprep.mubr.bf16.mxu0 0
      %3820 = vmatmul.mubr.bf16.gmra.mrb[0].mxu0 %v3184
      %v3821 = vpop.f32.mrb[0].mxu0
      %v3822 = vadd.f32 0.0, %v3821
      %v3823 = vpop.f32.mrb[0].mxu0
      %v3824 = vpop.f32.mrb[0].mxu0
      %v3825 = vpop.f32.mrb[0].mxu0
      %3826 = vmatprep.mubr.bf16.mxu0 0
      %3827 = vmatmul.mubr.bf16.gmra.mrb[0].mxu0 %v3185
      %v3828 = vpop.f32.mrb[0].mxu0
      %v3829 = vadd.f32 0.0, %v3828
      %v3830 = vpop.f32.mrb[0].mxu0
      %v3831 = vpop.f32.mrb[0].mxu0
      %v3832 = vpop.f32.mrb[0].mxu0
      %3833 = vmatprep.mubr.bf16.mxu0 0
      %3834 = vmatmul.mubr.bf16.gmra.mrb[0].mxu0 %v3186
      %v3835 = vpop.f32.mrb[0].mxu0
      %v3836 = vadd.f32 0.0, %v3835
      %v3837 = vpop.f32.mrb[0].mxu0
      %v3838 = vpop.f32.mrb[0].mxu0
      %v3839 = vpop.f32.mrb[0].mxu0
      %3840 = vmatprep.mubr.bf16.mxu0 0
      %3841 = vmatmul.mubr.bf16.gmra.mrb[0].mxu0 %v3187
      %v3842 = vpop.f32.mrb[0].mxu0
      %v3843 = vadd.f32 0.0, %v3842
      %v3844 = vpop.f32.mrb[0].mxu0
      %v3845 = vpop.f32.mrb[0].mxu0
      %v3846 = vpop.f32.mrb[0].mxu0
      %3847 = vmatprep.mubr.bf16.mxu0 0
      %3848 = vmatmul.mubr.bf16.gmra.mrb[0].mxu0 %v3188
      %v3849 = vpop.f32.mrb[0].mxu0
      %v3850 = vadd.f32 0.0, %v3849
      %v3851 = vpop.f32.mrb[0].mxu0
      %v3852 = vpop.f32.mrb[0].mxu0
      %v3853 = vpop.f32.mrb[0].mxu0
      %3854 = vmatprep.mubr.bf16.mxu0 0
      %3855 = vmatmul.mubr.bf16.gmra.mrb[0].mxu0 %v3189
      %v3856 = vpop.f32.mrb[0].mxu0
      %v3857 = vadd.f32 0.0, %v3856
      %v3858 = vpop.f32.mrb[0].mxu0
      %v3859 = vpop.f32.mrb[0].mxu0
      %v3860 = vpop.f32.mrb[0].mxu0
      %3861 = vdwg.mxu0
      %v3862 = vadd.f32 %v3654, %v3808
      %v3863 = vadd.f32 %v3661, %v3815
      %v3864 = vadd.f32 %v3668, %v3822
      %v3865 = vadd.f32 %v3675, %v3829
      %v3866 = vadd.f32 %v3682, %v3836
      %v3867 = vadd.f32 %v3689, %v3843
      %v3868 = vadd.f32 %v3696, %v3850
      %v3869 = vadd.f32 %v3703, %v3857
      %v3870 = vadd.f32 %v3392, %v3862
      %v3871 = vadd.f32 %v3393, %v3863
      %v3872 = vadd.f32 %v3394, %v3864
      %v3873 = vadd.f32 %v3395, %v3865
      %v3874 = vadd.f32 %v3396, %v3866
      %v3875 = vadd.f32 %v3397, %v3867
      %v3876 = vadd.f32 %v3398, %v3868
      %v3877 = vadd.f32 %v3399, %v3869
      %s3878 = scalar_lea.vmem %s2, 128
      %v3879 = vld [vmem:[%s3878] sm:$0xf]
      %v3880 = vld [vmem:[%s3878 + $0x4] sm:$0xf]
      %v3881 = vld [vmem:[%s3878 + $0x8] sm:$0xf]
      %v3882 = vld [vmem:[%s3878 + $0xc] sm:$0xf]
      %v3883 = vld [vmem:[%s3878 + $0x10] sm:$0xf]
      %v3884 = vld [vmem:[%s3878 + $0x14] sm:$0xf]
      %v3885 = vld [vmem:[%s3878 + $0x18] sm:$0xf]
      %v3886 = vld [vmem:[%s3878 + $0x1c] sm:$0xf]
      %v3887 = vld [vmem:[%s3878 + $0x20] sm:$0xf]
      %v3888 = vld [vmem:[%s3878 + $0x24] sm:$0xf]
      %v3889 = vld [vmem:[%s3878 + $0x28] sm:$0xf]
      %v3890 = vld [vmem:[%s3878 + $0x2c] sm:$0xf]
      %v3891 = vld [vmem:[%s3878 + $0x30] sm:$0xf]
      %v3892 = vld [vmem:[%s3878 + $0x34] sm:$0xf]
      %v3893 = vld [vmem:[%s3878 + $0x38] sm:$0xf]
      %v3894 = vld [vmem:[%s3878 + $0x3c] sm:$0xf]
      %s3895 = scalar_lea.vmem %s2, 320
      %v3896 = vld [vmem:[%s3895] sm:$0xf]
      %v3897 = vld [vmem:[%s3895 + $0x4] sm:$0xf]
      %v3898 = vld [vmem:[%s3895 + $0x8] sm:$0xf]
      %v3899 = vld [vmem:[%s3895 + $0xc] sm:$0xf]
      %v3900 = vld [vmem:[%s3895 + $0x10] sm:$0xf]
      %v3901 = vld [vmem:[%s3895 + $0x14] sm:$0xf]
      %v3902 = vld [vmem:[%s3895 + $0x18] sm:$0xf]
      %v3903 = vld [vmem:[%s3895 + $0x1c] sm:$0xf]
      %v3904 = vld [vmem:[%s3895 + $0x20] sm:$0xf]
      %v3905 = vld [vmem:[%s3895 + $0x24] sm:$0xf]
      %v3906 = vld [vmem:[%s3895 + $0x28] sm:$0xf]
      %v3907 = vld [vmem:[%s3895 + $0x2c] sm:$0xf]
      %v3908 = vld [vmem:[%s3895 + $0x30] sm:$0xf]
      %v3909 = vld [vmem:[%s3895 + $0x34] sm:$0xf]
      %v3910 = vld [vmem:[%s3895 + $0x38] sm:$0xf]
      %v3911 = vld [vmem:[%s3895 + $0x3c] sm:$0xf]
      %v3928 = vunpack.c.l.b16 %v3896
      %v3929 = vunpack.c.l.b16 %v3897
      %v3930 = vunpack.c.l.b16 %v3898
      %v3931 = vunpack.c.l.b16 %v3899
      %v3932 = vunpack.c.l.b16 %v3900
      %v3933 = vunpack.c.l.b16 %v3901
      %v3934 = vunpack.c.l.b16 %v3902
      %v3935 = vunpack.c.l.b16 %v3903
      %v3936 = vunpack.c.l.b16 %v3904
      %v3937 = vunpack.c.l.b16 %v3905
      %v3938 = vunpack.c.l.b16 %v3906
      %v3939 = vunpack.c.l.b16 %v3907
      %v3940 = vunpack.c.l.b16 %v3908
      %v3941 = vunpack.c.l.b16 %v3909
      %v3942 = vunpack.c.l.b16 %v3910
      %v3943 = vunpack.c.l.b16 %v3911
      %v3944 = vpack.c.b16 %v3929, %v3928
      %v3945 = vpack.c.b16 %v3931, %v3930
      %v3946 = vpack.c.b16 %v3933, %v3932
      %v3947 = vpack.c.b16 %v3935, %v3934
      %v3948 = vpack.c.b16 %v3937, %v3936
      %v3949 = vpack.c.b16 %v3939, %v3938
      %v3950 = vpack.c.b16 %v3941, %v3940
      %v3951 = vpack.c.b16 %v3943, %v3942
      %3960 = vmatprep.subr.bf16.mxu0 0
      %3961 = vmatpush1.bf16.msra.mxu0 %v3944
      %3962 = vmatprep.subr.bf16.mxu0 0
      %3963 = vmatpush1.bf16.msra.mxu0 %v3945
      %3964 = vmatprep.subr.bf16.mxu0 0
      %3965 = vmatpush1.bf16.msra.mxu0 %v3946
      %3966 = vmatprep.subr.bf16.mxu0 0
      %3967 = vmatpush1.bf16.msra.mxu0 %v3947
      %3968 = vmatprep.subr.bf16.mxu0 0
      %3969 = vmatpush1.bf16.msra.mxu0 %v3948
      %3970 = vmatprep.subr.bf16.mxu0 0
      %3971 = vmatpush1.bf16.msra.mxu0 %v3949
      %3972 = vmatprep.subr.bf16.mxu0 0
      %3973 = vmatpush1.bf16.msra.mxu0 %v3950
      %3974 = vmatprep.subr.bf16.mxu0 0
      %3975 = vmatpush1.bf16.msra.mxu0 %v3951
      %3976 = vmatprep.subr.bf16.mxu0 0
      %3977 = vmatpush1.bf16.msra.mxu0 0
      %3978 = vmatprep.subr.bf16.mxu0 0
      %3979 = vmatpush1.bf16.msra.mxu0 0
      %3980 = vmatprep.subr.bf16.mxu0 0
      %3981 = vmatpush1.bf16.msra.mxu0 0
      %3982 = vmatprep.subr.bf16.mxu0 0
      %3983 = vmatpush1.bf16.msra.mxu0 0
      %3984 = vmatprep.subr.bf16.mxu0 0
      %3985 = vmatpush1.bf16.msra.mxu0 0
      %3986 = vmatprep.subr.bf16.mxu0 0
      %3987 = vmatpush1.bf16.msra.mxu0 0
      %3988 = vmatprep.subr.bf16.mxu0 0
      %3989 = vmatpush1.bf16.msra.mxu0 0
      %3990 = vmatprep.subr.bf16.mxu0 0
      %3991 = vmatpush1.bf16.msra.mxu0 0
      %3992 = vmatprep.mubr.bf16.mxu0 0
      %3993 = vmatmul.mubr.bf16.gmra.mrb[0].mxu0 %v2866
      %v3994 = vpop.f32.mrb[0].mxu0
      %v3995 = vadd.f32 0.0, %v3994
      %v3996 = vpop.f32.mrb[0].mxu0
      %v3997 = vpop.f32.mrb[0].mxu0
      %v3998 = vadd.f32 0.0, %v3997
      %v3999 = vpop.f32.mrb[0].mxu0
      %4000 = vmatprep.mubr.bf16.mxu0 0
      %4001 = vmatmul.mubr.bf16.gmra.mrb[0].mxu0 %v2867
      %v4002 = vpop.f32.mrb[0].mxu0
      %v4003 = vadd.f32 0.0, %v4002
      %v4004 = vpop.f32.mrb[0].mxu0
      %v4005 = vpop.f32.mrb[0].mxu0
      %v4006 = vadd.f32 0.0, %v4005
      %v4007 = vpop.f32.mrb[0].mxu0
      %4008 = vmatprep.mubr.bf16.mxu0 0
      %4009 = vmatmul.mubr.bf16.gmra.mrb[0].mxu0 %v2868
      %v4010 = vpop.f32.mrb[0].mxu0
      %v4011 = vadd.f32 0.0, %v4010
      %v4012 = vpop.f32.mrb[0].mxu0
      %v4013 = vpop.f32.mrb[0].mxu0
      %v4014 = vadd.f32 0.0, %v4013
      %v4015 = vpop.f32.mrb[0].mxu0
      %4016 = vmatprep.mubr.bf16.mxu0 0
      %4017 = vmatmul.mubr.bf16.gmra.mrb[0].mxu0 %v2869
      %v4018 = vpop.f32.mrb[0].mxu0
      %v4019 = vadd.f32 0.0, %v4018
      %v4020 = vpop.f32.mrb[0].mxu0
      %v4021 = vpop.f32.mrb[0].mxu0
      %v4022 = vadd.f32 0.0, %v4021
      %v4023 = vpop.f32.mrb[0].mxu0
      %4024 = vmatprep.mubr.bf16.mxu0 0
      %4025 = vmatmul.mubr.bf16.gmra.mrb[0].mxu0 %v2870
      %v4026 = vpop.f32.mrb[0].mxu0
      %v4027 = vadd.f32 0.0, %v4026
      %v4028 = vpop.f32.mrb[0].mxu0
      %v4029 = vpop.f32.mrb[0].mxu0
      %v4030 = vadd.f32 0.0, %v4029
      %v4031 = vpop.f32.mrb[0].mxu0
      %4032 = vmatprep.mubr.bf16.mxu0 0
      %4033 = vmatmul.mubr.bf16.gmra.mrb[0].mxu0 %v2871
      %v4034 = vpop.f32.mrb[0].mxu0
      %v4035 = vadd.f32 0.0, %v4034
      %v4036 = vpop.f32.mrb[0].mxu0
      %v4037 = vpop.f32.mrb[0].mxu0
      %v4038 = vadd.f32 0.0, %v4037
      %v4039 = vpop.f32.mrb[0].mxu0
      %4040 = vmatprep.mubr.bf16.mxu0 0
      %4041 = vmatmul.mubr.bf16.gmra.mrb[0].mxu0 %v2872
      %v4042 = vpop.f32.mrb[0].mxu0
      %v4043 = vadd.f32 0.0, %v4042
      %v4044 = vpop.f32.mrb[0].mxu0
      %v4045 = vpop.f32.mrb[0].mxu0
      %v4046 = vadd.f32 0.0, %v4045
      %v4047 = vpop.f32.mrb[0].mxu0
      %4048 = vmatprep.mubr.bf16.mxu0 0
      %4049 = vmatmul.mubr.bf16.gmra.mrb[0].mxu0 %v2873
      %v4050 = vpop.f32.mrb[0].mxu0
      %v4051 = vadd.f32 0.0, %v4050
      %v4052 = vpop.f32.mrb[0].mxu0
      %v4053 = vpop.f32.mrb[0].mxu0
      %v4054 = vadd.f32 0.0, %v4053
      %v4055 = vpop.f32.mrb[0].mxu0
      %4056 = vdwg.mxu0
      %v4073 = vunpack.c.l.b16 %v3879
      %v4074 = vunpack.c.l.b16 %v3880
      %v4075 = vunpack.c.l.b16 %v3881
      %v4076 = vunpack.c.l.b16 %v3882
      %v4077 = vunpack.c.l.b16 %v3883
      %v4078 = vunpack.c.l.b16 %v3884
      %v4079 = vunpack.c.l.b16 %v3885
      %v4080 = vunpack.c.l.b16 %v3886
      %v4081 = vunpack.c.l.b16 %v3887
      %v4082 = vunpack.c.l.b16 %v3888
      %v4083 = vunpack.c.l.b16 %v3889
      %v4084 = vunpack.c.l.b16 %v3890
      %v4085 = vunpack.c.l.b16 %v3891
      %v4086 = vunpack.c.l.b16 %v3892
      %v4087 = vunpack.c.l.b16 %v3893
      %v4088 = vunpack.c.l.b16 %v3894
      %v4089 = vpack.c.b16 %v4074, %v4073
      %v4090 = vpack.c.b16 %v4076, %v4075
      %v4091 = vpack.c.b16 %v4078, %v4077
      %v4092 = vpack.c.b16 %v4080, %v4079
      %v4093 = vpack.c.b16 %v4082, %v4081
      %v4094 = vpack.c.b16 %v4084, %v4083
      %v4095 = vpack.c.b16 %v4086, %v4085
      %v4096 = vpack.c.b16 %v4088, %v4087
      %4105 = vmatprep.subr.bf16.mxu0 0
      %4106 = vmatpush1.bf16.msra.mxu0 %v4089
      %4107 = vmatprep.subr.bf16.mxu0 0
      %4108 = vmatpush1.bf16.msra.mxu0 %v4090
      %4109 = vmatprep.subr.bf16.mxu0 0
      %4110 = vmatpush1.bf16.msra.mxu0 %v4091
      %4111 = vmatprep.subr.bf16.mxu0 0
      %4112 = vmatpush1.bf16.msra.mxu0 %v4092
      %4113 = vmatprep.subr.bf16.mxu0 0
      %4114 = vmatpush1.bf16.msra.mxu0 %v4093
      %4115 = vmatprep.subr.bf16.mxu0 0
      %4116 = vmatpush1.bf16.msra.mxu0 %v4094
      %4117 = vmatprep.subr.bf16.mxu0 0
      %4118 = vmatpush1.bf16.msra.mxu0 %v4095
      %4119 = vmatprep.subr.bf16.mxu0 0
      %4120 = vmatpush1.bf16.msra.mxu0 %v4096
      %4121 = vmatprep.subr.bf16.mxu0 0
      %4122 = vmatpush1.bf16.msra.mxu0 0
      %4123 = vmatprep.subr.bf16.mxu0 0
      %4124 = vmatpush1.bf16.msra.mxu0 0
      %4125 = vmatprep.subr.bf16.mxu0 0
      %4126 = vmatpush1.bf16.msra.mxu0 0
      %4127 = vmatprep.subr.bf16.mxu0 0
      %4128 = vmatpush1.bf16.msra.mxu0 0
      %4129 = vmatprep.subr.bf16.mxu0 0
      %4130 = vmatpush1.bf16.msra.mxu0 0
      %4131 = vmatprep.subr.bf16.mxu0 0
      %4132 = vmatpush1.bf16.msra.mxu0 0
      %4133 = vmatprep.subr.bf16.mxu0 0
      %4134 = vmatpush1.bf16.msra.mxu0 0
      %4135 = vmatprep.subr.bf16.mxu0 0
      %4136 = vmatpush1.bf16.msra.mxu0 0
      %4137 = vmatprep.mubr.bf16.mxu0 0
      %4138 = vmatmul.mubr.bf16.gmra.mrb[0].mxu0 %v2842
      %v4139 = vpop.f32.mrb[0].mxu0
      %v4140 = vadd.f32 %v3995, %v4139
      %v4141 = vpop.f32.mrb[0].mxu0
      %v4142 = vpop.f32.mrb[0].mxu0
      %v4143 = vadd.f32 %v3998, %v4142
      %v4144 = vpop.f32.mrb[0].mxu0
      %4145 = vmatprep.mubr.bf16.mxu0 0
      %4146 = vmatmul.mubr.bf16.gmra.mrb[0].mxu0 %v2843
      %v4147 = vpop.f32.mrb[0].mxu0
      %v4148 = vadd.f32 %v4003, %v4147
      %v4149 = vpop.f32.mrb[0].mxu0
      %v4150 = vpop.f32.mrb[0].mxu0
      %v4151 = vadd.f32 %v4006, %v4150
      %v4152 = vpop.f32.mrb[0].mxu0
      %4153 = vmatprep.mubr.bf16.mxu0 0
      %4154 = vmatmul.mubr.bf16.gmra.mrb[0].mxu0 %v2844
      %v4155 = vpop.f32.mrb[0].mxu0
      %v4156 = vadd.f32 %v4011, %v4155
      %v4157 = vpop.f32.mrb[0].mxu0
      %v4158 = vpop.f32.mrb[0].mxu0
      %v4159 = vadd.f32 %v4014, %v4158
      %v4160 = vpop.f32.mrb[0].mxu0
      %4161 = vmatprep.mubr.bf16.mxu0 0
      %4162 = vmatmul.mubr.bf16.gmra.mrb[0].mxu0 %v2845
      %v4163 = vpop.f32.mrb[0].mxu0
      %v4164 = vadd.f32 %v4019, %v4163
      %v4165 = vpop.f32.mrb[0].mxu0
      %v4166 = vpop.f32.mrb[0].mxu0
      %v4167 = vadd.f32 %v4022, %v4166
      %v4168 = vpop.f32.mrb[0].mxu0
      %4169 = vmatprep.mubr.bf16.mxu0 0
      %4170 = vmatmul.mubr.bf16.gmra.mrb[0].mxu0 %v2846
      %v4171 = vpop.f32.mrb[0].mxu0
      %v4172 = vadd.f32 %v4027, %v4171
      %v4173 = vpop.f32.mrb[0].mxu0
      %v4174 = vpop.f32.mrb[0].mxu0
      %v4175 = vadd.f32 %v4030, %v4174
      %v4176 = vpop.f32.mrb[0].mxu0
      %4177 = vmatprep.mubr.bf16.mxu0 0
      %4178 = vmatmul.mubr.bf16.gmra.mrb[0].mxu0 %v2847
      %v4179 = vpop.f32.mrb[0].mxu0
      %v4180 = vadd.f32 %v4035, %v4179
      %v4181 = vpop.f32.mrb[0].mxu0
      %v4182 = vpop.f32.mrb[0].mxu0
      %v4183 = vadd.f32 %v4038, %v4182
      %v4184 = vpop.f32.mrb[0].mxu0
      %4185 = vmatprep.mubr.bf16.mxu0 0
      %4186 = vmatmul.mubr.bf16.gmra.mrb[0].mxu0 %v2848
      %v4187 = vpop.f32.mrb[0].mxu0
      %v4188 = vadd.f32 %v4043, %v4187
      %v4189 = vpop.f32.mrb[0].mxu0
      %v4190 = vpop.f32.mrb[0].mxu0
      %v4191 = vadd.f32 %v4046, %v4190
      %v4192 = vpop.f32.mrb[0].mxu0
      %4193 = vmatprep.mubr.bf16.mxu0 0
      %4194 = vmatmul.mubr.bf16.gmra.mrb[0].mxu0 %v2849
      %v4195 = vpop.f32.mrb[0].mxu0
      %v4196 = vadd.f32 %v4051, %v4195
      %v4197 = vpop.f32.mrb[0].mxu0
      %v4198 = vpop.f32.mrb[0].mxu0
      %v4199 = vadd.f32 %v4054, %v4198
      %v4200 = vpop.f32.mrb[0].mxu0
      %4201 = vdwg.mxu0
      %s4202 = scalar_lea.vmem %s2, 512
      %v4203 = vld [vmem:[%s4202] sm:$0xf]
      %v4204 = vld [vmem:[%s4202 + $0x4] sm:$0xf]
      %v4205 = vld [vmem:[%s4202 + $0x8] sm:$0xf]
      %v4206 = vld [vmem:[%s4202 + $0xc] sm:$0xf]
      %v4207 = vld [vmem:[%s4202 + $0x10] sm:$0xf]
      %v4208 = vld [vmem:[%s4202 + $0x14] sm:$0xf]
      %v4209 = vld [vmem:[%s4202 + $0x18] sm:$0xf]
      %v4210 = vld [vmem:[%s4202 + $0x1c] sm:$0xf]
      %v4211 = vld [vmem:[%s4202 + $0x20] sm:$0xf]
      %v4212 = vld [vmem:[%s4202 + $0x24] sm:$0xf]
      %v4213 = vld [vmem:[%s4202 + $0x28] sm:$0xf]
      %v4214 = vld [vmem:[%s4202 + $0x2c] sm:$0xf]
      %v4215 = vld [vmem:[%s4202 + $0x30] sm:$0xf]
      %v4216 = vld [vmem:[%s4202 + $0x34] sm:$0xf]
      %v4217 = vld [vmem:[%s4202 + $0x38] sm:$0xf]
      %v4218 = vld [vmem:[%s4202 + $0x3c] sm:$0xf]
      %v4235 = vunpack.c.l.b16 %v4203
      %v4236 = vunpack.c.l.b16 %v4204
      %v4237 = vunpack.c.l.b16 %v4205
      %v4238 = vunpack.c.l.b16 %v4206
      %v4239 = vunpack.c.l.b16 %v4207
      %v4240 = vunpack.c.l.b16 %v4208
      %v4241 = vunpack.c.l.b16 %v4209
      %v4242 = vunpack.c.l.b16 %v4210
      %v4243 = vunpack.c.l.b16 %v4211
      %v4244 = vunpack.c.l.b16 %v4212
      %v4245 = vunpack.c.l.b16 %v4213
      %v4246 = vunpack.c.l.b16 %v4214
      %v4247 = vunpack.c.l.b16 %v4215
      %v4248 = vunpack.c.l.b16 %v4216
      %v4249 = vunpack.c.l.b16 %v4217
      %v4250 = vunpack.c.l.b16 %v4218
      %v4251 = vpack.c.b16 %v4236, %v4235
      %v4252 = vpack.c.b16 %v4238, %v4237
      %v4253 = vpack.c.b16 %v4240, %v4239
      %v4254 = vpack.c.b16 %v4242, %v4241
      %v4255 = vpack.c.b16 %v4244, %v4243
      %v4256 = vpack.c.b16 %v4246, %v4245
      %v4257 = vpack.c.b16 %v4248, %v4247
      %v4258 = vpack.c.b16 %v4250, %v4249
      %4267 = vmatprep.subr.bf16.mxu0 0
      %4268 = vmatpush1.bf16.msra.mxu0 %v4251
      %4269 = vmatprep.subr.bf16.mxu0 0
      %4270 = vmatpush1.bf16.msra.mxu0 %v4252
      %4271 = vmatprep.subr.bf16.mxu0 0
      %4272 = vmatpush1.bf16.msra.mxu0 %v4253
      %4273 = vmatprep.subr.bf16.mxu0 0
      %4274 = vmatpush1.bf16.msra.mxu0 %v4254
      %4275 = vmatprep.subr.bf16.mxu0 0
      %4276 = vmatpush1.bf16.msra.mxu0 %v4255
      %4277 = vmatprep.subr.bf16.mxu0 0
      %4278 = vmatpush1.bf16.msra.mxu0 %v4256
      %4279 = vmatprep.subr.bf16.mxu0 0
      %4280 = vmatpush1.bf16.msra.mxu0 %v4257
      %4281 = vmatprep.subr.bf16.mxu0 0
      %4282 = vmatpush1.bf16.msra.mxu0 %v4258
      %4283 = vmatprep.subr.bf16.mxu0 0
      %4284 = vmatpush1.bf16.msra.mxu0 0
      %4285 = vmatprep.subr.bf16.mxu0 0
      %4286 = vmatpush1.bf16.msra.mxu0 0
      %4287 = vmatprep.subr.bf16.mxu0 0
      %4288 = vmatpush1.bf16.msra.mxu0 0
      %4289 = vmatprep.subr.bf16.mxu0 0
      %4290 = vmatpush1.bf16.msra.mxu0 0
      %4291 = vmatprep.subr.bf16.mxu0 0
      %4292 = vmatpush1.bf16.msra.mxu0 0
      %4293 = vmatprep.subr.bf16.mxu0 0
      %4294 = vmatpush1.bf16.msra.mxu0 0
      %4295 = vmatprep.subr.bf16.mxu0 0
      %4296 = vmatpush1.bf16.msra.mxu0 0
      %4297 = vmatprep.subr.bf16.mxu0 0
      %4298 = vmatpush1.bf16.msra.mxu0 0
      %4299 = vmatprep.mubr.bf16.mxu0 0
      %4300 = vmatmul.mubr.bf16.gmra.mrb[0].mxu0 %v3182
      %v4301 = vpop.f32.mrb[0].mxu0
      %v4302 = vadd.f32 0.0, %v4301
      %v4303 = vpop.f32.mrb[0].mxu0
      %v4304 = vpop.f32.mrb[0].mxu0
      %v4305 = vadd.f32 0.0, %v4304
      %v4306 = vpop.f32.mrb[0].mxu0
      %4307 = vmatprep.mubr.bf16.mxu0 0
      %4308 = vmatmul.mubr.bf16.gmra.mrb[0].mxu0 %v3183
      %v4309 = vpop.f32.mrb[0].mxu0
      %v4310 = vadd.f32 0.0, %v4309
      %v4311 = vpop.f32.mrb[0].mxu0
      %v4312 = vpop.f32.mrb[0].mxu0
      %v4313 = vadd.f32 0.0, %v4312
      %v4314 = vpop.f32.mrb[0].mxu0
      %4315 = vmatprep.mubr.bf16.mxu0 0
      %4316 = vmatmul.mubr.bf16.gmra.mrb[0].mxu0 %v3184
      %v4317 = vpop.f32.mrb[0].mxu0
      %v4318 = vadd.f32 0.0, %v4317
      %v4319 = vpop.f32.mrb[0].mxu0
      %v4320 = vpop.f32.mrb[0].mxu0
      %v4321 = vadd.f32 0.0, %v4320
      %v4322 = vpop.f32.mrb[0].mxu0
      %4323 = vmatprep.mubr.bf16.mxu0 0
      %4324 = vmatmul.mubr.bf16.gmra.mrb[0].mxu0 %v3185
      %v4325 = vpop.f32.mrb[0].mxu0
      %v4326 = vadd.f32 0.0, %v4325
      %v4327 = vpop.f32.mrb[0].mxu0
      %v4328 = vpop.f32.mrb[0].mxu0
      %v4329 = vadd.f32 0.0, %v4328
      %v4330 = vpop.f32.mrb[0].mxu0
      %4331 = vmatprep.mubr.bf16.mxu0 0
      %4332 = vmatmul.mubr.bf16.gmra.mrb[0].mxu0 %v3186
      %v4333 = vpop.f32.mrb[0].mxu0
      %v4334 = vadd.f32 0.0, %v4333
      %v4335 = vpop.f32.mrb[0].mxu0
      %v4336 = vpop.f32.mrb[0].mxu0
      %v4337 = vadd.f32 0.0, %v4336
      %v4338 = vpop.f32.mrb[0].mxu0
      %4339 = vmatprep.mubr.bf16.mxu0 0
      %4340 = vmatmul.mubr.bf16.gmra.mrb[0].mxu0 %v3187
      %v4341 = vpop.f32.mrb[0].mxu0
      %v4342 = vadd.f32 0.0, %v4341
      %v4343 = vpop.f32.mrb[0].mxu0
      %v4344 = vpop.f32.mrb[0].mxu0
      %v4345 = vadd.f32 0.0, %v4344
      %v4346 = vpop.f32.mrb[0].mxu0
      %4347 = vmatprep.mubr.bf16.mxu0 0
      %4348 = vmatmul.mubr.bf16.gmra.mrb[0].mxu0 %v3188
      %v4349 = vpop.f32.mrb[0].mxu0
      %v4350 = vadd.f32 0.0, %v4349
      %v4351 = vpop.f32.mrb[0].mxu0
      %v4352 = vpop.f32.mrb[0].mxu0
      %v4353 = vadd.f32 0.0, %v4352
      %v4354 = vpop.f32.mrb[0].mxu0
      %4355 = vmatprep.mubr.bf16.mxu0 0
      %4356 = vmatmul.mubr.bf16.gmra.mrb[0].mxu0 %v3189
      %v4357 = vpop.f32.mrb[0].mxu0
      %v4358 = vadd.f32 0.0, %v4357
      %v4359 = vpop.f32.mrb[0].mxu0
      %v4360 = vpop.f32.mrb[0].mxu0
      %v4361 = vadd.f32 0.0, %v4360
      %v4362 = vpop.f32.mrb[0].mxu0
      %4363 = vdwg.mxu0
      %v4364 = vadd.f32 %v4140, %v4302
      %v4365 = vadd.f32 %v4143, %v4305
      %v4366 = vadd.f32 %v4148, %v4310
      %v4367 = vadd.f32 %v4151, %v4313
      %v4368 = vadd.f32 %v4156, %v4318
      %v4369 = vadd.f32 %v4159, %v4321
      %v4370 = vadd.f32 %v4164, %v4326
      %v4371 = vadd.f32 %v4167, %v4329
      %v4372 = vadd.f32 %v4172, %v4334
      %v4373 = vadd.f32 %v4175, %v4337
      %v4374 = vadd.f32 %v4180, %v4342
      %v4375 = vadd.f32 %v4183, %v4345
      %v4376 = vadd.f32 %v4188, %v4350
      %v4377 = vadd.f32 %v4191, %v4353
      %v4378 = vadd.f32 %v4196, %v4358
      %v4379 = vadd.f32 %v4199, %v4361
      %v4380 = vrot.slane %v4364, 1
      %v4381 = vrot.slane %v4365, 1
      %v4382 = vrot.slane %v4366, 1
      %v4383 = vrot.slane %v4367, 1
      %v4384 = vrot.slane %v4368, 1
      %v4385 = vrot.slane %v4369, 1
      %v4386 = vrot.slane %v4370, 1
      %v4387 = vrot.slane %v4371, 1
      %v4388 = vrot.slane %v4372, 1
      %v4389 = vrot.slane %v4373, 1
      %v4390 = vrot.slane %v4374, 1
      %v4391 = vrot.slane %v4375, 1
      %v4392 = vrot.slane %v4376, 1
      %v4393 = vrot.slane %v4377, 1
      %v4394 = vrot.slane %v4378, 1
      %v4395 = vrot.slane %v4379, 1
      %v4396 = vsel %vm2551, %v4394, %v4395
      %v4397 = vsel %vm2551, %v4392, %v4393
      %v4398 = vsel %vm2551, %v4390, %v4391
      %v4399 = vsel %vm2551, %v4388, %v4389
      %v4400 = vsel %vm2551, %v4386, %v4387
      %v4401 = vsel %vm2551, %v4384, %v4385
      %v4402 = vsel %vm2551, %v4382, %v4383
      %v4403 = vsel %vm2551, %v4380, %v4381
      %v4404 = vadd.f32 %v3870, %v4403
      %v4405 = vadd.f32 %v3871, %v4402
      %v4406 = vadd.f32 %v3872, %v4401
      %v4407 = vadd.f32 %v3873, %v4400
      %v4408 = vadd.f32 %v3874, %v4399
      %v4409 = vadd.f32 %v3875, %v4398
      %v4410 = vadd.f32 %v3876, %v4397
      %v4411 = vadd.f32 %v3877, %v4396
      %v4412 = vld [vmem:[%s4] sm:$0x7]
      %v4413 = vlaneseq
      %v4414 = vshrl.u32 %v4413, 7
      %v4415 = vsub.s32 0, %v4414
      %v4416 = vrot.slane %v4412, %v4415
      %v4417 = vadd.f32 %v4404, %v4416
      %v4418 = vadd.f32 %v4405, %v4416
      %v4419 = vadd.f32 %v4406, %v4416
      %v4420 = vadd.f32 %v4407, %v4416
      %v4421 = vadd.f32 %v4408, %v4416
      %v4422 = vadd.f32 %v4409, %v4416
      %v4423 = vadd.f32 %v4410, %v4416
      %v4424 = vadd.f32 %v4411, %v4416
      %v4425 = vadd.f32 %v4417, %v4418
      %v4426 = vadd.f32 %v4425, %v4419
      %v4427 = vadd.f32 %v4426, %v4420
      %v4428 = vadd.f32 %v4427, %v4421
      %v4429 = vadd.f32 %v4428, %v4422
      %v4430 = vadd.f32 %v4429, %v4423
      %v4431 = vadd.f32 %v4430, %v4424
      %v4432 = vrot.slane %v4431, 4
      %v4433 = vadd.f32 %v4431, %v4432
      %v4434 = vrot.slane %v4433, 2
      %v4435 = vadd.f32 %v4433, %v4434
      %v4436 = vrot.slane %v4435, 1
      %v4437 = vadd.f32 %v4435, %v4436
      %v4438 = vmul.f32 %v4417, %v4417
      %v4439 = vmul.f32 %v4418, %v4418
      %v4440 = vmul.f32 %v4419, %v4419
      %v4441 = vmul.f32 %v4420, %v4420
      %v4442 = vmul.f32 %v4421, %v4421
      %v4443 = vmul.f32 %v4422, %v4422
      %v4444 = vmul.f32 %v4423, %v4423
      %v4445 = vmul.f32 %v4424, %v4424
      %v4446 = vadd.f32 %v4438, %v4439
      %v4447 = vadd.f32 %v4446, %v4440
      %v4448 = vadd.f32 %v4447, %v4441
      %v4449 = vadd.f32 %v4448, %v4442
      %v4450 = vadd.f32 %v4449, %v4443
      %v4451 = vadd.f32 %v4450, %v4444
      %v4452 = vadd.f32 %v4451, %v4445
      %v4453 = vrot.slane %v4452, 4
      %v4454 = vadd.f32 %v4452, %v4453
      %v4455 = vrot.slane %v4454, 2
      %v4456 = vadd.f32 %v4454, %v4455
      %v4457 = vrot.slane %v4456, 1
      %v4458 = vadd.f32 %v4456, %v4457
      %v4459 = vsel %vm2615, %v4437, %v4458
      %v4460 = vld [vmem:[%s5] sm:$0xff]
      %v4461 = vld [vmem:[%s5 + $0x8] sm:$0xff]
      %v4462 = vld [vmem:[%s5 + $0x10] sm:$0xff]
      %v4463 = vld [vmem:[%s5 + $0x18] sm:$0xff]
      %v4464 = vld [vmem:[%s5 + $0x20] sm:$0xff]
      %v4465 = vld [vmem:[%s5 + $0x28] sm:$0xff]
      %v4466 = vld [vmem:[%s5 + $0x30] sm:$0xff]
      %v4467 = vld [vmem:[%s5 + $0x38] sm:$0xff]
      %v4468 = vld [vmem:[%s5 + $0x40] sm:$0xff]
      %v4469 = vld [vmem:[%s5 + $0x48] sm:$0xff]
      %v4470 = vld [vmem:[%s5 + $0x50] sm:$0xff]
      %v4471 = vld [vmem:[%s5 + $0x58] sm:$0xff]
      %v4472 = vld [vmem:[%s5 + $0x60] sm:$0xff]
      %v4473 = vld [vmem:[%s5 + $0x68] sm:$0xff]
      %v4474 = vld [vmem:[%s5 + $0x70] sm:$0xff]
      %v4475 = vld [vmem:[%s5 + $0x78] sm:$0xff]
      %4476 = vmatprep.subr.mxu0 0.0
      %4477 = vmatpush1.msra.mxu0 %v4460
      %4478 = vmatprep.subr.mxu0 0.0
      %4479 = vmatpush1.msra.mxu0 %v4461
      %4480 = vmatprep.subr.mxu0 0.0
      %4481 = vmatpush1.msra.mxu0 %v4462
      %4482 = vmatprep.subr.mxu0 0.0
      %4483 = vmatpush1.msra.mxu0 %v4463
      %4484 = vmatprep.subr.mxu0 0.0
      %4485 = vmatpush1.msra.mxu0 %v4464
      %4486 = vmatprep.subr.mxu0 0.0
      %4487 = vmatpush1.msra.mxu0 %v4465
      %4488 = vmatprep.subr.mxu0 0.0
      %4489 = vmatpush1.msra.mxu0 %v4466
      %4490 = vmatprep.subr.mxu0 0.0
      %4491 = vmatpush1.msra.mxu0 %v4467
      %4492 = vmatprep.subr.mxu0 0.0
      %4493 = vmatpush1.msra.mxu0 %v4468
      %4494 = vmatprep.subr.mxu0 0.0
      %4495 = vmatpush1.msra.mxu0 %v4469
      %4496 = vmatprep.subr.mxu0 0.0
      %4497 = vmatpush1.msra.mxu0 %v4470
      %4498 = vmatprep.subr.mxu0 0.0
      %4499 = vmatpush1.msra.mxu0 %v4471
      %4500 = vmatprep.subr.mxu0 0.0
      %4501 = vmatpush1.msra.mxu0 %v4472
      %4502 = vmatprep.subr.mxu0 0.0
      %4503 = vmatpush1.msra.mxu0 %v4473
      %4504 = vmatprep.subr.mxu0 0.0
      %4505 = vmatpush1.msra.mxu0 %v4474
      %4506 = vmatprep.subr.mxu0 0.0
      %4507 = vmatpush1.msra.mxu0 %v4475
      %4508 = vmatprep.subr.mxu0 0.0
      %4509 = vmatpush1.msra.mxu0 0.0
      %4510 = vmatprep.subr.mxu0 0.0
      %4511 = vmatpush1.msra.mxu0 0.0
      %4512 = vmatprep.subr.mxu0 0.0
      %4513 = vmatpush1.msra.mxu0 0.0
      %4514 = vmatprep.subr.mxu0 0.0
      %4515 = vmatpush1.msra.mxu0 0.0
      %4516 = vmatprep.subr.mxu0 0.0
      %4517 = vmatpush1.msra.mxu0 0.0
      %4518 = vmatprep.subr.mxu0 0.0
      %4519 = vmatpush1.msra.mxu0 0.0
      %4520 = vmatprep.subr.mxu0 0.0
      %4521 = vmatpush1.msra.mxu0 0.0
      %4522 = vmatprep.subr.mxu0 0.0
      %4523 = vmatpush1.msra.mxu0 0.0
      %4524 = vmatprep.subr.mxu0 0.0
      %4525 = vmatpush1.msra.mxu0 0.0
      %4526 = vmatprep.subr.mxu0 0.0
      %4527 = vmatpush1.msra.mxu0 0.0
      %4528 = vmatprep.subr.mxu0 0.0
      %4529 = vmatpush1.msra.mxu0 0.0
      %4530 = vmatprep.subr.mxu0 0.0
      %4531 = vmatpush1.msra.mxu0 0.0
      %4532 = vmatprep.subr.mxu0 0.0
      %4533 = vmatpush1.msra.mxu0 0.0
      %4534 = vmatprep.subr.mxu0 0.0
      %4535 = vmatpush1.msra.mxu0 0.0
      %4536 = vmatprep.subr.mxu0 0.0
      %4537 = vmatpush1.msra.mxu0 0.0
      %4538 = vmatprep.subr.mxu0 0.0
      %4539 = vmatpush1.msra.mxu0 0.0
      %4540 = vmatprep.mubr.f32.mxu0 0.0
      %4541 = vmatmul.mubr.f32.gmra.mrb[0].mxu0 %v4459
      %v4542 = vpop.f32.mrb[0].mxu0
      %v4543 = vadd.f32 0.0, %v4542
      %v4544 = vpop.f32.mrb[0].mxu0
      %4545 = vdwg.mxu0
      %v4546 = vld [vmem:[%s6] sm:$0xff]
      %v4548 = vsel %vm2704, %v4543, 0
      %4550 = vmatprep.subr.mxu0 0.0
      %4551 = vmatpush1.msra.mxu0 %v4546
      %4552 = vmatprep.subr.mxu0 0.0
      %4553 = vmatpush1.msra.mxu0 0.0
      %4554 = vmatprep.subr.mxu0 0.0
      %4555 = vmatpush1.msra.mxu0 0.0
      %4556 = vmatprep.subr.mxu0 0.0
      %4557 = vmatpush1.msra.mxu0 0.0
      %4558 = vmatprep.subr.mxu0 0.0
      %4559 = vmatpush1.msra.mxu0 0.0
      %4560 = vmatprep.subr.mxu0 0.0
      %4561 = vmatpush1.msra.mxu0 0.0
      %4562 = vmatprep.subr.mxu0 0.0
      %4563 = vmatpush1.msra.mxu0 0.0
      %4564 = vmatprep.subr.mxu0 0.0
      %4565 = vmatpush1.msra.mxu0 0.0
      %4566 = vmatprep.subr.mxu0 0.0
      %4567 = vmatpush1.msra.mxu0 0.0
      %4568 = vmatprep.subr.mxu0 0.0
      %4569 = vmatpush1.msra.mxu0 0.0
      %4570 = vmatprep.subr.mxu0 0.0
      %4571 = vmatpush1.msra.mxu0 0.0
      %4572 = vmatprep.subr.mxu0 0.0
      %4573 = vmatpush1.msra.mxu0 0.0
      %4574 = vmatprep.subr.mxu0 0.0
      %4575 = vmatpush1.msra.mxu0 0.0
      %4576 = vmatprep.subr.mxu0 0.0
      %4577 = vmatpush1.msra.mxu0 0.0
      %4578 = vmatprep.subr.mxu0 0.0
      %4579 = vmatpush1.msra.mxu0 0.0
      %4580 = vmatprep.subr.mxu0 0.0
      %4581 = vmatpush1.msra.mxu0 0.0
      %4582 = vmatprep.subr.mxu0 0.0
      %4583 = vmatpush1.msra.mxu0 0.0
      %4584 = vmatprep.subr.mxu0 0.0
      %4585 = vmatpush1.msra.mxu0 0.0
      %4586 = vmatprep.subr.mxu0 0.0
      %4587 = vmatpush1.msra.mxu0 0.0
      %4588 = vmatprep.subr.mxu0 0.0
      %4589 = vmatpush1.msra.mxu0 0.0
      %4590 = vmatprep.subr.mxu0 0.0
      %4591 = vmatpush1.msra.mxu0 0.0
      %4592 = vmatprep.subr.mxu0 0.0
      %4593 = vmatpush1.msra.mxu0 0.0
      %4594 = vmatprep.subr.mxu0 0.0
      %4595 = vmatpush1.msra.mxu0 0.0
      %4596 = vmatprep.subr.mxu0 0.0
      %4597 = vmatpush1.msra.mxu0 0.0
      %4598 = vmatprep.subr.mxu0 0.0
      %4599 = vmatpush1.msra.mxu0 0.0
      %4600 = vmatprep.subr.mxu0 0.0
      %4601 = vmatpush1.msra.mxu0 0.0
      %4602 = vmatprep.subr.mxu0 0.0
      %4603 = vmatpush1.msra.mxu0 0.0
      %4604 = vmatprep.subr.mxu0 0.0
      %4605 = vmatpush1.msra.mxu0 0.0
      %4606 = vmatprep.subr.mxu0 0.0
      %4607 = vmatpush1.msra.mxu0 0.0
      %4608 = vmatprep.subr.mxu0 0.0
      %4609 = vmatpush1.msra.mxu0 0.0
      %4610 = vmatprep.subr.mxu0 0.0
      %4611 = vmatpush1.msra.mxu0 0.0
      %4612 = vmatprep.subr.mxu0 0.0
      %4613 = vmatpush1.msra.mxu0 0.0
      %4614 = vmatprep.mubr.f32.mxu0 0.0
      %4615 = vmatmul.mubr.f32.gmra.mrb[0].mxu0 %v4548
      %v4616 = vpop.f32.mrb[0].mxu0
      %v4617 = vadd.f32 0.0, %v4616
      %v4618 = vpop.f32.mrb[0].mxu0
      %4619 = vdwg.mxu0
      %v4620 = vmul.f32 %v4617, %v4617
      %v4622 = vrot.slane %v4620, 7
      %v4624 = vsub.f32 %v4617, %v4622
      %v4625 = vadd.f32 %v4624, 1e-05
      %v4626 = vrsqrt.pop %v4625
      %v4627 = vmul.f32 %v4626, %v4412
      %v4628 = vlaneseq
      %v4629 = vshrl.u32 %v4628, 7
      %v4630 = vsub.s32 1, %v4629
      %v4631 = vrot.slane %v4627, %v4630
      %v4632 = vmul.f32 %v4417, %v4631
      %v4633 = vmul.f32 %v4418, %v4631
      %v4634 = vmul.f32 %v4419, %v4631
      %v4635 = vmul.f32 %v4420, %v4631
      %v4636 = vmul.f32 %v4421, %v4631
      %v4637 = vmul.f32 %v4422, %v4631
      %v4638 = vmul.f32 %v4423, %v4631
      %v4639 = vmul.f32 %v4424, %v4631
      %v4641 = vrot.slane %v4627, 1
      %v4643 = vmul.f32 %v4617, %v4641
      %v4645 = vrot.slane %v4643, 6
      %v4647 = vsub.f32 %v4412, %v4645
      %v4648 = vlaneseq
      %v4649 = vshrl.u32 %v4648, 7
      %v4650 = vsub.s32 2, %v4649
      %v4651 = vrot.slane %v4647, %v4650
      %v4652 = vadd.f32 %v4632, %v4651
      %v4653 = vadd.f32 %v4633, %v4651
      %v4654 = vadd.f32 %v4634, %v4651
      %v4655 = vadd.f32 %v4635, %v4651
      %v4656 = vadd.f32 %v4636, %v4651
      %v4657 = vadd.f32 %v4637, %v4651
      %v4658 = vadd.f32 %v4638, %v4651
      %v4659 = vadd.f32 %v4639, %v4651
      %v4660 = vmax.f32 %v4652, 0.0
      %v4661 = vmax.f32 %v4653, 0.0
      %v4662 = vmax.f32 %v4654, 0.0
      %v4663 = vmax.f32 %v4655, 0.0
      %v4664 = vmax.f32 %v4656, 0.0
      %v4665 = vmax.f32 %v4657, 0.0
      %v4666 = vmax.f32 %v4658, 0.0
      %v4667 = vmax.f32 %v4659, 0.0
      %4668 = vst [vmem:[%s278] sm:$0xff] %v4660
      %4669 = vst [vmem:[%s278 + $0x8] sm:$0xff] %v4661
      %4670 = vst [vmem:[%s278 + $0x10] sm:$0xff] %v4662
      %4671 = vst [vmem:[%s278 + $0x18] sm:$0xff] %v4663
      %4672 = vst [vmem:[%s278 + $0x20] sm:$0xff] %v4664
      %4673 = vst [vmem:[%s278 + $0x28] sm:$0xff] %v4665
      %4674 = vst [vmem:[%s278 + $0x30] sm:$0xff] %v4666
      %4675 = vst [vmem:[%s278 + $0x38] sm:$0xff] %v4667
      %p4676 = scmp.lt.s32.totalorder %s18, 1
      %s4677 = scalar_select %p4676, %s18, 1
      %s4678 = smul.addr %s4677, 8
      %s4679 = smul.addr %s4678, 8
      %s4680 = scalar_lea.vmem %s7, %s4679
      // Predicated region
      $region49: #{up_forward.1} parent=47 // pred_check
        %p4681 = pneg %p188
      $region50: #{up_forward.1} parent=47 // pred_check_branch
        %4683 = sbr.rel (%p4681) target = $region52
      $region51: #{up_forward.1} parent=47 // pred_region
        _
      $region52: #{up_forward.1} parent=47 // pred_fallthru
        _
    $region48: #{up_forward.1} parent=5 // pred_fallthru
      _
    %p4684 = scmp.le.s32.totalorder 2, %s13
    // Predicated region
    $region53: #{up_forward.1} parent=5 // pred_check
      %p4685 = pneg %p4684
    $region54: #{up_forward.1} parent=5 // pred_check_branch
      %4687 = sbr.rel (%p4685) target = $region56
    $region55: #{up_forward.1} parent=5 // pred_region
      %s4688 = ssub.s32 %s13, 2
      // Predicated region
      $region57: #{up_forward.1} parent=55 // pred_check
        %p4689 = pneg %p194
      $region58: #{up_forward.1} parent=55 // pred_check_branch
        %4691 = sbr.rel (%p4689) target = $region60
      $region59: #{up_forward.1} parent=55 // pred_region
        %p4692 = scmp.lt.s32.totalorder %s19, 1
        %s4693 = scalar_select %p4692, %s19, 1
        %s4694 = smul.addr %s4693, 8
        %s4695 = smul.addr %s4694, 8
        %s4696 = scalar_lea.vmem %s7, %s4695
      $region60: #{up_forward.1} parent=55 // pred_fallthru
        _
    $region56: #{up_forward.1} parent=5 // pred_fallthru
      _
  $region6: #{up_forward.1} parent=0 // loop_footer
    %s17 = sadd.s32 1, %s13
  $region7: #{up_forward.1} parent=0 // loop_footer_branch
    %12 = sbr.rel target = $region3
  $region8: #{up_forward.1} parent=0 // loop_exit
    _

</llo_original>
